<compile_context>
chip_gen: v7x
topology: tpu7x:2x2x1
jax: 0.10.0
libtpu: 0.0.40
codegen_flags: <defaults>
</compile_context>

<pallas_src>
import numpy as np
import jax
import jax.numpy as jnp
from jax import lax
from jax.experimental import pallas as pl
from jax.experimental.pallas import tpu as pltpu


# --------------------------- in-kernel constant helpers --------------------------- #

def _row_shift_mat(n, k):
    # S[i, j] = 1 iff j == i + k, so (S @ a)[i, :] = a[i + k, :] (zeros past the end).
    r = lax.broadcasted_iota(jnp.int32, (n, n), 0)
    c = lax.broadcasted_iota(jnp.int32, (n, n), 1)
    return jnp.where(c == r + k, 1.0, 0.0)


def _col_shift_mat(n, k):
    # E[i, j] = 1 iff i == j + k, so (a @ E)[:, j] = a[:, j + k] (zeros past the end).
    r = lax.broadcasted_iota(jnp.int32, (n, n), 0)
    c = lax.broadcasted_iota(jnp.int32, (n, n), 1)
    return jnp.where(r == c + k, 1.0, 0.0)


def _row_decimate_mat(n_out, n_in):
    # T[i, j] = 1 iff j == 2*i, so (T @ a)[i, :] = a[2*i, :].
    r = lax.broadcasted_iota(jnp.int32, (n_out, n_in), 0)
    c = lax.broadcasted_iota(jnp.int32, (n_out, n_in), 1)
    return jnp.where(c == 2 * r, 1.0, 0.0)


def _conv_relu_pool_stage(x, w_ref, b_ref, pooled_rows, cout):
    """x: (H, Win*Cin) one image, lane = w*Cin + c (for stages >= 2 only 'even' column
    blocks carry real data; the banded weight has zero rows at the junk lanes).
    w_ref: (3, Lin, Wo*Cout) banded weights, one slab per vertical filter tap.
    Returns (pooled_rows, Wo*Cout): conv + bias + ReLU + fused 2x2 max-pool; the
    column decimation of the pool is folded into the *next* layer's weights."""
    f32 = jnp.float32
    h = x.shape[0]
    lout = w_ref.shape[2]

    s1 = _row_shift_mat(h, 1)          # a[i] -> a[i+1]
    s2 = _row_shift_mat(h, 2)          # a[i] -> a[i+2]

    # 3x3 valid conv as 3 banded MXU matmuls (vertical taps accumulated with row shifts).
    y = jnp.dot(x, w_ref[0], preferred_element_type=f32)
    y = y + jnp.dot(s1, jnp.dot(x, w_ref[1], preferred_element_type=f32),
                    preferred_element_type=f32)
    y = y + jnp.dot(s2, jnp.dot(x, w_ref[2], preferred_element_type=f32),
                    preferred_element_type=f32)
    y = jnp.maximum(y + b_ref[...], 0.0)                         # bias + ReLU

    # fused 2x2 max-pool epilogue: rows (h, h+1) then column blocks (w, w+1).
    rm = jnp.maximum(y, jnp.dot(s1, y, preferred_element_type=f32))
    cm = jnp.maximum(rm, jnp.dot(rm, _col_shift_mat(lout, cout),
                                 preferred_element_type=f32))
    # keep every second row; lane (column) decimation is folded into next-layer weights.
    return jnp.dot(_row_decimate_mat(pooled_rows, h), cm, preferred_element_type=f32)


# --------------------------------- fused kernel ----------------------------------- #

def _fused_net_kernel(x_ref,
                      w1_ref, b1_ref, w2_ref, b2_ref, w3_ref, b3_ref,
                      fc1w_ref, fc1b_ref, fc2w_ref, fc2b_ref,
                      out_ref):
    f32 = jnp.float32
    x = x_ref[0]                                                     # (32, 32*3)

    p1 = _conv_relu_pool_stage(x,  w1_ref, b1_ref, pooled_rows=15, cout=8)    # (15, 240)
    p2 = _conv_relu_pool_stage(p1, w2_ref, b2_ref, pooled_rows=6,  cout=16)   # (6, 208)
    p3 = _conv_relu_pool_stage(p2, w3_ref, b3_ref, pooled_rows=2,  cout=32)   # (2, 128)

    # fc1 over the NCHW-flattened 128 features: the final pool's column decimation and
    # torch's x.view(bs, -1) permutation are folded into fc1w (2, 128, 64).
    hfc = (jnp.dot(p3[0:1, :], fc1w_ref[0], preferred_element_type=f32)
           + jnp.dot(p3[1:2, :], fc1w_ref[1], preferred_element_type=f32)
           + fc1b_ref[...])
    hfc = jnp.maximum(hfc, 0.0)
    # TODO(synk): nn.Dropout(0.2) is identity at inference; training-mode dropout would
    # mask here with pltpu.prng_seed / pltpu.prng_random_bits instead of a new kernel.
    logits = jnp.dot(hfc, fc2w_ref[...], preferred_element_type=f32) + fc2b_ref[...]
    out_ref[0] = logits.astype(out_ref.dtype)                        # (1, n_classes)


# ------------------------- host-side one-time weight prep ------------------------- #

def _banded_conv_weights(w_oihw, block_to_col, wo):
    """Torch-layout (Cout, Cin, 3, 3) -> banded (3, n_blocks*Cin, wo*Cout) f32 weights."""
    w = np.asarray(w_oihw, np.float32)
    co, ci, kh, kw = w.shape
    nb = len(block_to_col)
    out = np.zeros((kh, nb * ci, wo * co), np.float32)
    for dh in range(kh):
        for b, wi in enumerate(block_to_col):
            if wi is None:
                continue
            for dw in range(kw):
                wcol = wi - dw
                if 0 <= wcol < wo:
                    out[dh, b * ci:(b + 1) * ci, wcol * co:(wcol + 1) * co] = w[:, :, dh, dw].T
    return out


def prepare_params(params):
    """One-time transform of torch-layout parameters into the banded / folded layouts
    consumed by the fused kernel (done once, outside the forward jit)."""
    # lane-block -> input-column map for each conv stage's input representation
    blocks1 = list(range(32))                                          # raw image cols
    blocks2 = [b // 2 if b % 2 == 0 else None for b in range(30)]      # pooled conv1
    blocks3 = [b // 2 if (b % 2 == 0 and b // 2 < 6) else None for b in range(13)]

    w1 = _banded_conv_weights(params["conv1_w"], blocks1, 30)          # (3,  96, 240)
    w2 = _banded_conv_weights(params["conv2_w"], blocks2, 13)          # (3, 240, 208)
    w3 = _banded_conv_weights(params["conv3_w"], blocks3, 4)           # (3, 208, 128)

    b1 = np.tile(np.asarray(params["conv1_b"], np.float32), 30)[None, :]
    b2 = np.tile(np.asarray(params["conv2_b"], np.float32), 13)[None, :]
    b3 = np.tile(np.asarray(params["conv3_b"], np.float32), 4)[None, :]

    # fc1: fold the stage-3 column decimation + torch NCHW flatten into the weight.
    fc1_t = np.asarray(params["fc1_w"], np.float32)                    # (64, 128) torch
    n_hidden = fc1_t.shape[0]
    fc1_eff = np.zeros((2, 128, n_hidden), np.float32)
    for h in range(2):
        for b in (0, 2):                      # valid column blocks of stage-3 output
            w = b // 2
            for c in range(32):
                fc1_eff[h, b * 32 + c, :] = fc1_t[:, c * 4 + h * 2 + w]
    fc1_b = np.asarray(params["fc1_b"], np.float32)[None, :]

    fc2_w = np.asarray(params["fc2_w"], np.float32).T.copy()           # (64, ncls)
    fc2_b = np.asarray(params["fc2_b"], np.float32)[None, :]

    raw = dict(w1=w1, b1=b1, w2=w2, b2=b2, w3=w3, b3=b3,
               fc1_w=fc1_eff, fc1_b=fc1_b, fc2_w=fc2_w, fc2_b=fc2_b)
    return {k: jnp.asarray(v, jnp.float32) for k, v in raw.items()}


# ----------------------------------- forward -------------------------------------- #

@jax.jit
def net_forward(prepared, x_nchw):
    n = x_nchw.shape[0]
    assert x_nchw.shape[1:] == (3, 32, 32), "Net requires 3x32x32 inputs (fc1 is 128->64)"
    ncls = prepared["fc2_w"].shape[1]

    # NCHW -> (N, H, W*C): lane dim = w*3 + c (lane-dense, channels innermost).
    x = jnp.transpose(x_nchw, (0, 2, 3, 1)).reshape(n, 32, 32 * 3).astype(jnp.float32)

    def full(*shape):
        return pl.BlockSpec(shape, lambda i, _s=shape: (0,) * len(_s))

    out = pl.pallas_call(
        _fused_net_kernel,
        out_shape=jax.ShapeDtypeStruct((n, 1, ncls), jnp.float32),
        grid=(n,),
        in_specs=[
            pl.BlockSpec((1, 32, 96), lambda i: (i, 0, 0)),     # one image per grid step
            full(3, 96, 240), full(1, 240),                     # conv1 banded w / bias
            full(3, 240, 208), full(1, 208),                    # conv2 banded w / bias
            full(3, 208, 128), full(1, 128),                    # conv3 banded w / bias
            full(2, 128, 64), full(1, 64),                      # fc1 (flatten folded)
            full(64, ncls), full(1, ncls),                      # fc2
        ],
        out_specs=pl.BlockSpec((1, 1, ncls), lambda i: (i, 0, 0)),
        compiler_params=pltpu.CompilerParams(
            dimension_semantics=("parallel",)),                 # megacore batch split
    )(x, prepared["w1"], prepared["b1"], prepared["w2"], prepared["b2"],
      prepared["w3"], prepared["b3"], prepared["fc1_w"], prepared["fc1_b"],
      prepared["fc2_w"], prepared["fc2_b"])
    return out.reshape(n, ncls)


# ------------------------------ pure-JAX reference --------------------------------- #

def reference_forward(params, x_nchw):
    prec = lax.Precision.HIGHEST

    def conv(x, w, b):
        y = lax.conv_general_dilated(x, w, (1, 1), "VALID",
                                     dimension_numbers=("NCHW", "OIHW", "NCHW"),
                                     precision=prec)
        return jax.nn.relu(y + b[None, :, None, None])

    def pool2(x):
        return lax.reduce_window(x, -jnp.inf, lax.max, (1, 1, 2, 2), (1, 1, 2, 2), "VALID")

    x = pool2(conv(x_nchw, params["conv1_w"], params["conv1_b"]))
    x = pool2(conv(x, params["conv2_w"], params["conv2_b"]))
    x = pool2(conv(x, params["conv3_w"], params["conv3_b"]))
    x = x.reshape(x.shape[0], -1)
    x = jax.nn.relu(jnp.dot(x, params["fc1_w"].T, precision=prec) + params["fc1_b"])
    return jnp.dot(x, params["fc2_w"].T, precision=prec) + params["fc2_b"]


# -------------------------------- parameters / main -------------------------------- #

def init_params(key, n_classes=10):
    ks = jax.random.split(key, 10)
    s = 0.1
    nrm = lambda k, shp: s * jax.random.normal(k, shp, jnp.float32)
    return {  # torch layouts: conv (Cout, Cin, KH, KW), linear (out, in)
        "conv1_w": nrm(ks[0], (8, 3, 3, 3)),    "conv1_b": nrm(ks[1], (8,)),
        "conv2_w": nrm(ks[2], (16, 8, 3, 3)),   "conv2_b": nrm(ks[3], (16,)),
        "conv3_w": nrm(ks[4], (32, 16, 3, 3)),  "conv3_b": nrm(ks[5], (32,)),
        "fc1_w":   nrm(ks[6], (64, 128)),       "fc1_b":   nrm(ks[7], (64,)),
        "fc2_w":   nrm(ks[8], (n_classes, 64)), "fc2_b":   nrm(ks[9], (n_classes,)),
    }


if __name__ == "__main__":
    n_classes = 10
    key = jax.random.PRNGKey(0)
    k_x, k_p = jax.random.split(key)
    x = jax.random.normal(k_x, (2, 3, 32, 32), jnp.float32)   # NCHW, like PyTorch
    params = init_params(k_p, n_classes=n_classes)

    prepared = prepare_params(params)                          # one-time weight transform
    logits = jax.block_until_ready(net_forward(prepared, x))

    assert logits.shape == (2, n_classes), logits.shape
    assert logits.dtype == jnp.float32

    ref = jax.block_until_ready(reference_forward(params, x))
    np.testing.assert_allclose(np.asarray(logits), np.asarray(ref), rtol=5e-2, atol=5e-2)

    print("KERNEL_OK")
</pallas_src>

<mosaic_0001>
module attributes {stable_mosaic.version = 11 : i64} {
  func.func @_fused_net_kernel(%arg0: i32, %arg1: memref<1x32x96xf32, #tpu.memory_space<vmem>>, %arg2: memref<3x96x240xf32, #tpu.memory_space<vmem>>, %arg3: memref<1x240xf32, #tpu.memory_space<vmem>>, %arg4: memref<3x240x208xf32, #tpu.memory_space<vmem>>, %arg5: memref<1x208xf32, #tpu.memory_space<vmem>>, %arg6: memref<3x208x128xf32, #tpu.memory_space<vmem>>, %arg7: memref<1x128xf32, #tpu.memory_space<vmem>>, %arg8: memref<2x128x64xf32, #tpu.memory_space<vmem>>, %arg9: memref<1x64xf32, #tpu.memory_space<vmem>>, %arg10: memref<64x10xf32, #tpu.memory_space<vmem>>, %arg11: memref<1x10xf32, #tpu.memory_space<vmem>>, %arg12: memref<1x1x10xf32, #tpu.memory_space<vmem>>) attributes {dimension_semantics = [#tpu.dimension_semantics<parallel>], iteration_bounds = array<i64: 2>, scalar_prefetch = 0 : i64, scratch_operands = 0 : i64, tpu.core_type = #tpu.core_type<tc>, window_params = [{transform_indices = @transform_0, window_bounds = array<i64: 1, 32, 96>}, {pipeline_mode = #tpu.pipeline_mode<synchronous>, transform_indices = @transform_1, window_bounds = array<i64: 3, 96, 240>}, {pipeline_mode = #tpu.pipeline_mode<synchronous>, transform_indices = @transform_2, window_bounds = array<i64: 1, 240>}, {pipeline_mode = #tpu.pipeline_mode<synchronous>, transform_indices = @transform_3, window_bounds = array<i64: 3, 240, 208>}, {pipeline_mode = #tpu.pipeline_mode<synchronous>, transform_indices = @transform_4, window_bounds = array<i64: 1, 208>}, {pipeline_mode = #tpu.pipeline_mode<synchronous>, transform_indices = @transform_5, window_bounds = array<i64: 3, 208, 128>}, {pipeline_mode = #tpu.pipeline_mode<synchronous>, transform_indices = @transform_6, window_bounds = array<i64: 1, 128>}, {pipeline_mode = #tpu.pipeline_mode<synchronous>, transform_indices = @transform_7, window_bounds = array<i64: 2, 128, 64>}, {pipeline_mode = #tpu.pipeline_mode<synchronous>, transform_indices = @transform_8, window_bounds = array<i64: 1, 64>}, {pipeline_mode = #tpu.pipeline_mode<synchronous>, transform_indices = @transform_9, window_bounds = array<i64: 64, 10>}, {pipeline_mode = #tpu.pipeline_mode<synchronous>, transform_indices = @transform_10, window_bounds = array<i64: 1, 10>}, {transform_indices = @transform_11, window_bounds = array<i64: 1, 1, 10>}]} {
    %c0 = arith.constant 0 : index
    %c0_0 = arith.constant 0 : index
    %c0_1 = arith.constant 0 : index
    %0 = vector.load %arg1[%c0, %c0_0, %c0_1] : memref<1x32x96xf32, #tpu.memory_space<vmem>>, vector<1x32x96xf32>
    %1 = vector.shape_cast %0 : vector<1x32x96xf32> to vector<32x96xf32>
    %2 = tpu.iota {dimensions = array<i32: 0>} : vector<32x32xi32>
    %3 = tpu.iota {dimensions = array<i32: 1>} : vector<32x32xi32>
    %c1_i32 = arith.constant 1 : i32
    %4 = vector.broadcast %c1_i32 : i32 to vector<32x32xi32>
    %5 = arith.addi %2, %4 : vector<32x32xi32>
    %6 = arith.cmpi eq, %3, %5 : vector<32x32xi32>
    %cst = arith.constant 1.000000e+00 : f32
    %cst_2 = arith.constant 0.000000e+00 : f32
    %7 = vector.broadcast %cst : f32 to vector<32x32xf32>
    %8 = vector.broadcast %cst_2 : f32 to vector<32x32xf32>
    %9 = arith.select %6, %7, %8 : vector<32x32xi1>, vector<32x32xf32>
    %10 = tpu.iota {dimensions = array<i32: 0>} : vector<32x32xi32>
    %11 = tpu.iota {dimensions = array<i32: 1>} : vector<32x32xi32>
    %c2_i32 = arith.constant 2 : i32
    %12 = vector.broadcast %c2_i32 : i32 to vector<32x32xi32>
    %13 = arith.addi %10, %12 : vector<32x32xi32>
    %14 = arith.cmpi eq, %11, %13 : vector<32x32xi32>
    %cst_3 = arith.constant 1.000000e+00 : f32
    %cst_4 = arith.constant 0.000000e+00 : f32
    %15 = vector.broadcast %cst_3 : f32 to vector<32x32xf32>
    %16 = vector.broadcast %cst_4 : f32 to vector<32x32xf32>
    %17 = arith.select %14, %15, %16 : vector<32x32xi1>, vector<32x32xf32>
    %c0_5 = arith.constant 0 : index
    %c0_6 = arith.constant 0 : index
    %c0_7 = arith.constant 0 : index
    %18 = vector.load %arg2[%c0_5, %c0_6, %c0_7] : memref<3x96x240xf32, #tpu.memory_space<vmem>>, vector<1x96x240xf32>
    %19 = vector.shape_cast %18 : vector<1x96x240xf32> to vector<96x240xf32>
    %cst_8 = arith.constant dense<0.000000e+00> : vector<32x240xf32>
    %20 = tpu.matmul %1, %19, %cst_8 {dimension_numbers = #tpu.dot_dimension_numbers<[1], [0], [0], [1], [0, 0, 1, 1], [], []>} : vector<32x96xf32>, vector<96x240xf32>, vector<32x240xf32> -> vector<32x240xf32>
    %c1 = arith.constant 1 : index
    %c0_9 = arith.constant 0 : index
    %c0_10 = arith.constant 0 : index
    %21 = vector.load %arg2[%c1, %c0_9, %c0_10] : memref<3x96x240xf32, #tpu.memory_space<vmem>>, vector<1x96x240xf32>
    %22 = vector.shape_cast %21 : vector<1x96x240xf32> to vector<96x240xf32>
    %cst_11 = arith.constant dense<0.000000e+00> : vector<32x240xf32>
    %23 = tpu.matmul %1, %22, %cst_11 {dimension_numbers = #tpu.dot_dimension_numbers<[1], [0], [0], [1], [0, 0, 1, 1], [], []>} : vector<32x96xf32>, vector<96x240xf32>, vector<32x240xf32> -> vector<32x240xf32>
    %cst_12 = arith.constant dense<0.000000e+00> : vector<32x240xf32>
    %24 = tpu.matmul %9, %23, %cst_12 {dimension_numbers = #tpu.dot_dimension_numbers<[1], [0], [0], [1], [0, 0, 1, 1], [], []>} : vector<32x32xf32>, vector<32x240xf32>, vector<32x240xf32> -> vector<32x240xf32>
    %25 = arith.addf %20, %24 : vector<32x240xf32>
    %c2 = arith.constant 2 : index
    %c0_13 = arith.constant 0 : index
    %c0_14 = arith.constant 0 : index
    %26 = vector.load %arg2[%c2, %c0_13, %c0_14] : memref<3x96x240xf32, #tpu.memory_space<vmem>>, vector<1x96x240xf32>
    %27 = vector.shape_cast %26 : vector<1x96x240xf32> to vector<96x240xf32>
    %cst_15 = arith.constant dense<0.000000e+00> : vector<32x240xf32>
    %28 = tpu.matmul %1, %27, %cst_15 {dimension_numbers = #tpu.dot_dimension_numbers<[1], [0], [0], [1], [0, 0, 1, 1], [], []>} : vector<32x96xf32>, vector<96x240xf32>, vector<32x240xf32> -> vector<32x240xf32>
    %cst_16 = arith.constant dense<0.000000e+00> : vector<32x240xf32>
    %29 = tpu.matmul %17, %28, %cst_16 {dimension_numbers = #tpu.dot_dimension_numbers<[1], [0], [0], [1], [0, 0, 1, 1], [], []>} : vector<32x32xf32>, vector<32x240xf32>, vector<32x240xf32> -> vector<32x240xf32>
    %30 = arith.addf %25, %29 : vector<32x240xf32>
    %c0_17 = arith.constant 0 : index
    %c0_18 = arith.constant 0 : index
    %31 = vector.load %arg3[%c0_17, %c0_18] : memref<1x240xf32, #tpu.memory_space<vmem>>, vector<1x240xf32>
    %32 = vector.broadcast %31 : vector<1x240xf32> to vector<32x240xf32>
    %33 = arith.addf %30, %32 : vector<32x240xf32>
    %cst_19 = arith.constant 0.000000e+00 : f32
    %34 = vector.broadcast %cst_19 : f32 to vector<32x240xf32>
    %35 = arith.maximumf %33, %34 : vector<32x240xf32>
    %cst_20 = arith.constant dense<0.000000e+00> : vector<32x240xf32>
    %36 = tpu.matmul %9, %35, %cst_20 {dimension_numbers = #tpu.dot_dimension_numbers<[1], [0], [0], [1], [0, 0, 1, 1], [], []>} : vector<32x32xf32>, vector<32x240xf32>, vector<32x240xf32> -> vector<32x240xf32>
    %37 = arith.maximumf %35, %36 : vector<32x240xf32>
    %38 = tpu.iota {dimensions = array<i32: 0>} : vector<240x240xi32>
    %39 = tpu.iota {dimensions = array<i32: 1>} : vector<240x240xi32>
    %c8_i32 = arith.constant 8 : i32
    %40 = vector.broadcast %c8_i32 : i32 to vector<240x240xi32>
    %41 = arith.addi %39, %40 : vector<240x240xi32>
    %42 = arith.cmpi eq, %38, %41 : vector<240x240xi32>
    %cst_21 = arith.constant 1.000000e+00 : f32
    %cst_22 = arith.constant 0.000000e+00 : f32
    %43 = vector.broadcast %cst_21 : f32 to vector<240x240xf32>
    %44 = vector.broadcast %cst_22 : f32 to vector<240x240xf32>
    %45 = arith.select %42, %43, %44 : vector<240x240xi1>, vector<240x240xf32>
    %cst_23 = arith.constant dense<0.000000e+00> : vector<32x240xf32>
    %46 = tpu.matmul %37, %45, %cst_23 {dimension_numbers = #tpu.dot_dimension_numbers<[1], [0], [0], [1], [0, 0, 1, 1], [], []>} : vector<32x240xf32>, vector<240x240xf32>, vector<32x240xf32> -> vector<32x240xf32>
    %47 = arith.maximumf %37, %46 : vector<32x240xf32>
    %48 = tpu.iota {dimensions = array<i32: 0>} : vector<15x32xi32>
    %49 = tpu.iota {dimensions = array<i32: 1>} : vector<15x32xi32>
    %c2_i32_24 = arith.constant 2 : i32
    %50 = vector.broadcast %c2_i32_24 : i32 to vector<15x32xi32>
    %51 = arith.muli %50, %48 : vector<15x32xi32>
    %52 = arith.cmpi eq, %49, %51 : vector<15x32xi32>
    %cst_25 = arith.constant 1.000000e+00 : f32
    %cst_26 = arith.constant 0.000000e+00 : f32
    %53 = vector.broadcast %cst_25 : f32 to vector<15x32xf32>
    %54 = vector.broadcast %cst_26 : f32 to vector<15x32xf32>
    %55 = arith.select %52, %53, %54 : vector<15x32xi1>, vector<15x32xf32>
    %cst_27 = arith.constant dense<0.000000e+00> : vector<15x240xf32>
    %56 = tpu.matmul %55, %47, %cst_27 {dimension_numbers = #tpu.dot_dimension_numbers<[1], [0], [0], [1], [0, 0, 1, 1], [], []>} : vector<15x32xf32>, vector<32x240xf32>, vector<15x240xf32> -> vector<15x240xf32>
    %57 = tpu.iota {dimensions = array<i32: 0>} : vector<15x15xi32>
    %58 = tpu.iota {dimensions = array<i32: 1>} : vector<15x15xi32>
    %c1_i32_28 = arith.constant 1 : i32
    %59 = vector.broadcast %c1_i32_28 : i32 to vector<15x15xi32>
    %60 = arith.addi %57, %59 : vector<15x15xi32>
    %61 = arith.cmpi eq, %58, %60 : vector<15x15xi32>
    %cst_29 = arith.constant 1.000000e+00 : f32
    %cst_30 = arith.constant 0.000000e+00 : f32
    %62 = vector.broadcast %cst_29 : f32 to vector<15x15xf32>
    %63 = vector.broadcast %cst_30 : f32 to vector<15x15xf32>
    %64 = arith.select %61, %62, %63 : vector<15x15xi1>, vector<15x15xf32>
    %65 = tpu.iota {dimensions = array<i32: 0>} : vector<15x15xi32>
    %66 = tpu.iota {dimensions = array<i32: 1>} : vector<15x15xi32>
    %c2_i32_31 = arith.constant 2 : i32
    %67 = vector.broadcast %c2_i32_31 : i32 to vector<15x15xi32>
    %68 = arith.addi %65, %67 : vector<15x15xi32>
    %69 = arith.cmpi eq, %66, %68 : vector<15x15xi32>
    %cst_32 = arith.constant 1.000000e+00 : f32
    %cst_33 = arith.constant 0.000000e+00 : f32
    %70 = vector.broadcast %cst_32 : f32 to vector<15x15xf32>
    %71 = vector.broadcast %cst_33 : f32 to vector<15x15xf32>
    %72 = arith.select %69, %70, %71 : vector<15x15xi1>, vector<15x15xf32>
    %c0_34 = arith.constant 0 : index
    %c0_35 = arith.constant 0 : index
    %c0_36 = arith.constant 0 : index
    %73 = vector.load %arg4[%c0_34, %c0_35, %c0_36] : memref<3x240x208xf32, #tpu.memory_space<vmem>>, vector<1x240x208xf32>
    %74 = vector.shape_cast %73 : vector<1x240x208xf32> to vector<240x208xf32>
    %cst_37 = arith.constant dense<0.000000e+00> : vector<15x208xf32>
    %75 = tpu.matmul %56, %74, %cst_37 {dimension_numbers = #tpu.dot_dimension_numbers<[1], [0], [0], [1], [0, 0, 1, 1], [], []>} : vector<15x240xf32>, vector<240x208xf32>, vector<15x208xf32> -> vector<15x208xf32>
    %c1_38 = arith.constant 1 : index
    %c0_39 = arith.constant 0 : index
    %c0_40 = arith.constant 0 : index
    %76 = vector.load %arg4[%c1_38, %c0_39, %c0_40] : memref<3x240x208xf32, #tpu.memory_space<vmem>>, vector<1x240x208xf32>
    %77 = vector.shape_cast %76 : vector<1x240x208xf32> to vector<240x208xf32>
    %cst_41 = arith.constant dense<0.000000e+00> : vector<15x208xf32>
    %78 = tpu.matmul %56, %77, %cst_41 {dimension_numbers = #tpu.dot_dimension_numbers<[1], [0], [0], [1], [0, 0, 1, 1], [], []>} : vector<15x240xf32>, vector<240x208xf32>, vector<15x208xf32> -> vector<15x208xf32>
    %cst_42 = arith.constant dense<0.000000e+00> : vector<15x208xf32>
    %79 = tpu.matmul %64, %78, %cst_42 {dimension_numbers = #tpu.dot_dimension_numbers<[1], [0], [0], [1], [0, 0, 1, 1], [], []>} : vector<15x15xf32>, vector<15x208xf32>, vector<15x208xf32> -> vector<15x208xf32>
    %80 = arith.addf %75, %79 : vector<15x208xf32>
    %c2_43 = arith.constant 2 : index
    %c0_44 = arith.constant 0 : index
    %c0_45 = arith.constant 0 : index
    %81 = vector.load %arg4[%c2_43, %c0_44, %c0_45] : memref<3x240x208xf32, #tpu.memory_space<vmem>>, vector<1x240x208xf32>
    %82 = vector.shape_cast %81 : vector<1x240x208xf32> to vector<240x208xf32>
    %cst_46 = arith.constant dense<0.000000e+00> : vector<15x208xf32>
    %83 = tpu.matmul %56, %82, %cst_46 {dimension_numbers = #tpu.dot_dimension_numbers<[1], [0], [0], [1], [0, 0, 1, 1], [], []>} : vector<15x240xf32>, vector<240x208xf32>, vector<15x208xf32> -> vector<15x208xf32>
    %cst_47 = arith.constant dense<0.000000e+00> : vector<15x208xf32>
    %84 = tpu.matmul %72, %83, %cst_47 {dimension_numbers = #tpu.dot_dimension_numbers<[1], [0], [0], [1], [0, 0, 1, 1], [], []>} : vector<15x15xf32>, vector<15x208xf32>, vector<15x208xf32> -> vector<15x208xf32>
    %85 = arith.addf %80, %84 : vector<15x208xf32>
    %c0_48 = arith.constant 0 : index
    %c0_49 = arith.constant 0 : index
    %86 = vector.load %arg5[%c0_48, %c0_49] : memref<1x208xf32, #tpu.memory_space<vmem>>, vector<1x208xf32>
    %87 = vector.broadcast %86 : vector<1x208xf32> to vector<15x208xf32>
    %88 = arith.addf %85, %87 : vector<15x208xf32>
    %cst_50 = arith.constant 0.000000e+00 : f32
    %89 = vector.broadcast %cst_50 : f32 to vector<15x208xf32>
    %90 = arith.maximumf %88, %89 : vector<15x208xf32>
    %cst_51 = arith.constant dense<0.000000e+00> : vector<15x208xf32>
    %91 = tpu.matmul %64, %90, %cst_51 {dimension_numbers = #tpu.dot_dimension_numbers<[1], [0], [0], [1], [0, 0, 1, 1], [], []>} : vector<15x15xf32>, vector<15x208xf32>, vector<15x208xf32> -> vector<15x208xf32>
    %92 = arith.maximumf %90, %91 : vector<15x208xf32>
    %93 = tpu.iota {dimensions = array<i32: 0>} : vector<208x208xi32>
    %94 = tpu.iota {dimensions = array<i32: 1>} : vector<208x208xi32>
    %c16_i32 = arith.constant 16 : i32
    %95 = vector.broadcast %c16_i32 : i32 to vector<208x208xi32>
    %96 = arith.addi %94, %95 : vector<208x208xi32>
    %97 = arith.cmpi eq, %93, %96 : vector<208x208xi32>
    %cst_52 = arith.constant 1.000000e+00 : f32
    %cst_53 = arith.constant 0.000000e+00 : f32
    %98 = vector.broadcast %cst_52 : f32 to vector<208x208xf32>
    %99 = vector.broadcast %cst_53 : f32 to vector<208x208xf32>
    %100 = arith.select %97, %98, %99 : vector<208x208xi1>, vector<208x208xf32>
    %cst_54 = arith.constant dense<0.000000e+00> : vector<15x208xf32>
    %101 = tpu.matmul %92, %100, %cst_54 {dimension_numbers = #tpu.dot_dimension_numbers<[1], [0], [0], [1], [0, 0, 1, 1], [], []>} : vector<15x208xf32>, vector<208x208xf32>, vector<15x208xf32> -> vector<15x208xf32>
    %102 = arith.maximumf %92, %101 : vector<15x208xf32>
    %103 = tpu.iota {dimensions = array<i32: 0>} : vector<6x15xi32>
    %104 = tpu.iota {dimensions = array<i32: 1>} : vector<6x15xi32>
    %c2_i32_55 = arith.constant 2 : i32
    %105 = vector.broadcast %c2_i32_55 : i32 to vector<6x15xi32>
    %106 = arith.muli %105, %103 : vector<6x15xi32>
    %107 = arith.cmpi eq, %104, %106 : vector<6x15xi32>
    %cst_56 = arith.constant 1.000000e+00 : f32
    %cst_57 = arith.constant 0.000000e+00 : f32
    %108 = vector.broadcast %cst_56 : f32 to vector<6x15xf32>
    %109 = vector.broadcast %cst_57 : f32 to vector<6x15xf32>
    %110 = arith.select %107, %108, %109 : vector<6x15xi1>, vector<6x15xf32>
    %cst_58 = arith.constant dense<0.000000e+00> : vector<6x208xf32>
    %111 = tpu.matmul %110, %102, %cst_58 {dimension_numbers = #tpu.dot_dimension_numbers<[1], [0], [0], [1], [0, 0, 1, 1], [], []>} : vector<6x15xf32>, vector<15x208xf32>, vector<6x208xf32> -> vector<6x208xf32>
    %112 = tpu.iota {dimensions = array<i32: 0>} : vector<6x6xi32>
    %113 = tpu.iota {dimensions = array<i32: 1>} : vector<6x6xi32>
    %c1_i32_59 = arith.constant 1 : i32
    %114 = vector.broadcast %c1_i32_59 : i32 to vector<6x6xi32>
    %115 = arith.addi %112, %114 : vector<6x6xi32>
    %116 = arith.cmpi eq, %113, %115 : vector<6x6xi32>
    %cst_60 = arith.constant 1.000000e+00 : f32
    %cst_61 = arith.constant 0.000000e+00 : f32
    %117 = vector.broadcast %cst_60 : f32 to vector<6x6xf32>
    %118 = vector.broadcast %cst_61 : f32 to vector<6x6xf32>
    %119 = arith.select %116, %117, %118 : vector<6x6xi1>, vector<6x6xf32>
    %120 = tpu.iota {dimensions = array<i32: 0>} : vector<6x6xi32>
    %121 = tpu.iota {dimensions = array<i32: 1>} : vector<6x6xi32>
    %c2_i32_62 = arith.constant 2 : i32
    %122 = vector.broadcast %c2_i32_62 : i32 to vector<6x6xi32>
    %123 = arith.addi %120, %122 : vector<6x6xi32>
    %124 = arith.cmpi eq, %121, %123 : vector<6x6xi32>
    %cst_63 = arith.constant 1.000000e+00 : f32
    %cst_64 = arith.constant 0.000000e+00 : f32
    %125 = vector.broadcast %cst_63 : f32 to vector<6x6xf32>
    %126 = vector.broadcast %cst_64 : f32 to vector<6x6xf32>
    %127 = arith.select %124, %125, %126 : vector<6x6xi1>, vector<6x6xf32>
    %c0_65 = arith.constant 0 : index
    %c0_66 = arith.constant 0 : index
    %c0_67 = arith.constant 0 : index
    %128 = vector.load %arg6[%c0_65, %c0_66, %c0_67] : memref<3x208x128xf32, #tpu.memory_space<vmem>>, vector<1x208x128xf32>
    %129 = vector.shape_cast %128 : vector<1x208x128xf32> to vector<208x128xf32>
    %cst_68 = arith.constant dense<0.000000e+00> : vector<6x128xf32>
    %130 = tpu.matmul %111, %129, %cst_68 {dimension_numbers = #tpu.dot_dimension_numbers<[1], [0], [0], [1], [0, 0, 1, 1], [], []>} : vector<6x208xf32>, vector<208x128xf32>, vector<6x128xf32> -> vector<6x128xf32>
    %c1_69 = arith.constant 1 : index
    %c0_70 = arith.constant 0 : index
    %c0_71 = arith.constant 0 : index
    %131 = vector.load %arg6[%c1_69, %c0_70, %c0_71] : memref<3x208x128xf32, #tpu.memory_space<vmem>>, vector<1x208x128xf32>
    %132 = vector.shape_cast %131 : vector<1x208x128xf32> to vector<208x128xf32>
    %cst_72 = arith.constant dense<0.000000e+00> : vector<6x128xf32>
    %133 = tpu.matmul %111, %132, %cst_72 {dimension_numbers = #tpu.dot_dimension_numbers<[1], [0], [0], [1], [0, 0, 1, 1], [], []>} : vector<6x208xf32>, vector<208x128xf32>, vector<6x128xf32> -> vector<6x128xf32>
    %cst_73 = arith.constant dense<0.000000e+00> : vector<6x128xf32>
    %134 = tpu.matmul %119, %133, %cst_73 {dimension_numbers = #tpu.dot_dimension_numbers<[1], [0], [0], [1], [0, 0, 1, 1], [], []>} : vector<6x6xf32>, vector<6x128xf32>, vector<6x128xf32> -> vector<6x128xf32>
    %135 = arith.addf %130, %134 : vector<6x128xf32>
    %c2_74 = arith.constant 2 : index
    %c0_75 = arith.constant 0 : index
    %c0_76 = arith.constant 0 : index
    %136 = vector.load %arg6[%c2_74, %c0_75, %c0_76] : memref<3x208x128xf32, #tpu.memory_space<vmem>>, vector<1x208x128xf32>
    %137 = vector.shape_cast %136 : vector<1x208x128xf32> to vector<208x128xf32>
    %cst_77 = arith.constant dense<0.000000e+00> : vector<6x128xf32>
    %138 = tpu.matmul %111, %137, %cst_77 {dimension_numbers = #tpu.dot_dimension_numbers<[1], [0], [0], [1], [0, 0, 1, 1], [], []>} : vector<6x208xf32>, vector<208x128xf32>, vector<6x128xf32> -> vector<6x128xf32>
    %cst_78 = arith.constant dense<0.000000e+00> : vector<6x128xf32>
    %139 = tpu.matmul %127, %138, %cst_78 {dimension_numbers = #tpu.dot_dimension_numbers<[1], [0], [0], [1], [0, 0, 1, 1], [], []>} : vector<6x6xf32>, vector<6x128xf32>, vector<6x128xf32> -> vector<6x128xf32>
    %140 = arith.addf %135, %139 : vector<6x128xf32>
    %c0_79 = arith.constant 0 : index
    %c0_80 = arith.constant 0 : index
    %141 = vector.load %arg7[%c0_79, %c0_80] : memref<1x128xf32, #tpu.memory_space<vmem>>, vector<1x128xf32>
    %142 = vector.broadcast %141 : vector<1x128xf32> to vector<6x128xf32>
    %143 = arith.addf %140, %142 : vector<6x128xf32>
    %cst_81 = arith.constant 0.000000e+00 : f32
    %144 = vector.broadcast %cst_81 : f32 to vector<6x128xf32>
    %145 = arith.maximumf %143, %144 : vector<6x128xf32>
    %cst_82 = arith.constant dense<0.000000e+00> : vector<6x128xf32>
    %146 = tpu.matmul %119, %145, %cst_82 {dimension_numbers = #tpu.dot_dimension_numbers<[1], [0], [0], [1], [0, 0, 1, 1], [], []>} : vector<6x6xf32>, vector<6x128xf32>, vector<6x128xf32> -> vector<6x128xf32>
    %147 = arith.maximumf %145, %146 : vector<6x128xf32>
    %148 = tpu.iota {dimensions = array<i32: 0>} : vector<128x128xi32>
    %149 = tpu.iota {dimensions = array<i32: 1>} : vector<128x128xi32>
    %c32_i32 = arith.constant 32 : i32
    %150 = vector.broadcast %c32_i32 : i32 to vector<128x128xi32>
    %151 = arith.addi %149, %150 : vector<128x128xi32>
    %152 = arith.cmpi eq, %148, %151 : vector<128x128xi32>
    %cst_83 = arith.constant 1.000000e+00 : f32
    %cst_84 = arith.constant 0.000000e+00 : f32
    %153 = vector.broadcast %cst_83 : f32 to vector<128x128xf32>
    %154 = vector.broadcast %cst_84 : f32 to vector<128x128xf32>
    %155 = arith.select %152, %153, %154 : vector<128x128xi1>, vector<128x128xf32>
    %cst_85 = arith.constant dense<0.000000e+00> : vector<6x128xf32>
    %156 = tpu.matmul %147, %155, %cst_85 {dimension_numbers = #tpu.dot_dimension_numbers<[1], [0], [0], [1], [0, 0, 1, 1], [], []>} : vector<6x128xf32>, vector<128x128xf32>, vector<6x128xf32> -> vector<6x128xf32>
    %157 = arith.maximumf %147, %156 : vector<6x128xf32>
    %158 = tpu.iota {dimensions = array<i32: 0>} : vector<2x6xi32>
    %159 = tpu.iota {dimensions = array<i32: 1>} : vector<2x6xi32>
    %c2_i32_86 = arith.constant 2 : i32
    %160 = vector.broadcast %c2_i32_86 : i32 to vector<2x6xi32>
    %161 = arith.muli %160, %158 : vector<2x6xi32>
    %162 = arith.cmpi eq, %159, %161 : vector<2x6xi32>
    %cst_87 = arith.constant 1.000000e+00 : f32
    %cst_88 = arith.constant 0.000000e+00 : f32
    %163 = vector.broadcast %cst_87 : f32 to vector<2x6xf32>
    %164 = vector.broadcast %cst_88 : f32 to vector<2x6xf32>
    %165 = arith.select %162, %163, %164 : vector<2x6xi1>, vector<2x6xf32>
    %cst_89 = arith.constant dense<0.000000e+00> : vector<2x128xf32>
    %166 = tpu.matmul %165, %157, %cst_89 {dimension_numbers = #tpu.dot_dimension_numbers<[1], [0], [0], [1], [0, 0, 1, 1], [], []>} : vector<2x6xf32>, vector<6x128xf32>, vector<2x128xf32> -> vector<2x128xf32>
    %167 = vector.extract_strided_slice %166 {offsets = [0, 0], sizes = [1, 128], strides = [1, 1]} : vector<2x128xf32> to vector<1x128xf32>
    %c0_90 = arith.constant 0 : index
    %c0_91 = arith.constant 0 : index
    %c0_92 = arith.constant 0 : index
    %168 = vector.load %arg8[%c0_90, %c0_91, %c0_92] : memref<2x128x64xf32, #tpu.memory_space<vmem>>, vector<1x128x64xf32>
    %169 = vector.shape_cast %168 : vector<1x128x64xf32> to vector<128x64xf32>
    %cst_93 = arith.constant dense<0.000000e+00> : vector<1x64xf32>
    %170 = tpu.matmul %167, %169, %cst_93 {dimension_numbers = #tpu.dot_dimension_numbers<[1], [0], [0], [1], [0, 0, 1, 1], [], []>} : vector<1x128xf32>, vector<128x64xf32>, vector<1x64xf32> -> vector<1x64xf32>
    %171 = vector.extract_strided_slice %166 {offsets = [1, 0], sizes = [1, 128], strides = [1, 1]} : vector<2x128xf32> to vector<1x128xf32>
    %c1_94 = arith.constant 1 : index
    %c0_95 = arith.constant 0 : index
    %c0_96 = arith.constant 0 : index
    %172 = vector.load %arg8[%c1_94, %c0_95, %c0_96] : memref<2x128x64xf32, #tpu.memory_space<vmem>>, vector<1x128x64xf32>
    %173 = vector.shape_cast %172 : vector<1x128x64xf32> to vector<128x64xf32>
    %cst_97 = arith.constant dense<0.000000e+00> : vector<1x64xf32>
    %174 = tpu.matmul %171, %173, %cst_97 {dimension_numbers = #tpu.dot_dimension_numbers<[1], [0], [0], [1], [0, 0, 1, 1], [], []>} : vector<1x128xf32>, vector<128x64xf32>, vector<1x64xf32> -> vector<1x64xf32>
    %175 = arith.addf %170, %174 : vector<1x64xf32>
    %c0_98 = arith.constant 0 : index
    %c0_99 = arith.constant 0 : index
    %176 = vector.load %arg9[%c0_98, %c0_99] : memref<1x64xf32, #tpu.memory_space<vmem>>, vector<1x64xf32>
    %177 = arith.addf %175, %176 : vector<1x64xf32>
    %cst_100 = arith.constant 0.000000e+00 : f32
    %178 = vector.broadcast %cst_100 : f32 to vector<1x64xf32>
    %179 = arith.maximumf %177, %178 : vector<1x64xf32>
    %c0_101 = arith.constant 0 : index
    %c0_102 = arith.constant 0 : index
    %180 = vector.load %arg10[%c0_101, %c0_102] : memref<64x10xf32, #tpu.memory_space<vmem>>, vector<64x10xf32>
    %cst_103 = arith.constant dense<0.000000e+00> : vector<1x10xf32>
    %181 = tpu.matmul %179, %180, %cst_103 {dimension_numbers = #tpu.dot_dimension_numbers<[1], [0], [0], [1], [0, 0, 1, 1], [], []>} : vector<1x64xf32>, vector<64x10xf32>, vector<1x10xf32> -> vector<1x10xf32>
    %c0_104 = arith.constant 0 : index
    %c0_105 = arith.constant 0 : index
    %182 = vector.load %arg11[%c0_104, %c0_105] : memref<1x10xf32, #tpu.memory_space<vmem>>, vector<1x10xf32>
    %183 = arith.addf %181, %182 : vector<1x10xf32>
    %c0_106 = arith.constant 0 : index
    %c0_107 = arith.constant 0 : index
    %c0_108 = arith.constant 0 : index
    %184 = vector.load %arg12[%c0_106, %c0_107, %c0_108] : memref<1x1x10xf32, #tpu.memory_space<vmem>>, vector<1x1x10xf32>
    %185 = vector.shape_cast %184 : vector<1x1x10xf32> to vector<1x10xf32>
    %186 = vector.shape_cast %183 : vector<1x10xf32> to vector<1x1x10xf32>
    tpu.vector_store %arg12[%c0_106, %c0_107, %c0_108], %186 {strides = array<i32>} : memref<1x1x10xf32, #tpu.memory_space<vmem>>, vector<1x1x10xf32>,
    return
  }
  func.func @transform_0(%arg0: i32) -> (i32, i32, i32) {
    %c0_i32 = arith.constant 0 : i32
    %c0_i32_0 = arith.constant 0 : i32
    %c0_i32_1 = arith.constant 0 : i32
    return %arg0, %c0_i32, %c0_i32_0 : i32, i32, i32
  }
  func.func @transform_1(%arg0: i32) -> (i32, i32, i32) {
    %c0_i32 = arith.constant 0 : i32
    %c0_i32_0 = arith.constant 0 : i32
    %c0_i32_1 = arith.constant 0 : i32
    %c0_i32_2 = arith.constant 0 : i32
    return %c0_i32, %c0_i32_0, %c0_i32_1 : i32, i32, i32
  }
  func.func @transform_2(%arg0: i32) -> (i32, i32) {
    %c0_i32 = arith.constant 0 : i32
    %c0_i32_0 = arith.constant 0 : i32
    %c0_i32_1 = arith.constant 0 : i32
    return %c0_i32, %c0_i32_0 : i32, i32
  }
  func.func @transform_3(%arg0: i32) -> (i32, i32, i32) {
    %c0_i32 = arith.constant 0 : i32
    %c0_i32_0 = arith.constant 0 : i32
    %c0_i32_1 = arith.constant 0 : i32
    %c0_i32_2 = arith.constant 0 : i32
    return %c0_i32, %c0_i32_0, %c0_i32_1 : i32, i32, i32
  }
  func.func @transform_4(%arg0: i32) -> (i32, i32) {
    %c0_i32 = arith.constant 0 : i32
    %c0_i32_0 = arith.constant 0 : i32
    %c0_i32_1 = arith.constant 0 : i32
    return %c0_i32, %c0_i32_0 : i32, i32
  }
  func.func @transform_5(%arg0: i32) -> (i32, i32, i32) {
    %c0_i32 = arith.constant 0 : i32
    %c0_i32_0 = arith.constant 0 : i32
    %c0_i32_1 = arith.constant 0 : i32
    %c0_i32_2 = arith.constant 0 : i32
    return %c0_i32, %c0_i32_0, %c0_i32_1 : i32, i32, i32
  }
  func.func @transform_6(%arg0: i32) -> (i32, i32) {
    %c0_i32 = arith.constant 0 : i32
    %c0_i32_0 = arith.constant 0 : i32
    %c0_i32_1 = arith.constant 0 : i32
    return %c0_i32, %c0_i32_0 : i32, i32
  }
  func.func @transform_7(%arg0: i32) -> (i32, i32, i32) {
    %c0_i32 = arith.constant 0 : i32
    %c0_i32_0 = arith.constant 0 : i32
    %c0_i32_1 = arith.constant 0 : i32
    %c0_i32_2 = arith.constant 0 : i32
    return %c0_i32, %c0_i32_0, %c0_i32_1 : i32, i32, i32
  }
  func.func @transform_8(%arg0: i32) -> (i32, i32) {
    %c0_i32 = arith.constant 0 : i32
    %c0_i32_0 = arith.constant 0 : i32
    %c0_i32_1 = arith.constant 0 : i32
    return %c0_i32, %c0_i32_0 : i32, i32
  }
  func.func @transform_9(%arg0: i32) -> (i32, i32) {
    %c0_i32 = arith.constant 0 : i32
    %c0_i32_0 = arith.constant 0 : i32
    %c0_i32_1 = arith.constant 0 : i32
    return %c0_i32, %c0_i32_0 : i32, i32
  }
  func.func @transform_10(%arg0: i32) -> (i32, i32) {
    %c0_i32 = arith.constant 0 : i32
    %c0_i32_0 = arith.constant 0 : i32
    %c0_i32_1 = arith.constant 0 : i32
    return %c0_i32, %c0_i32_0 : i32, i32
  }
  func.func @transform_11(%arg0: i32) -> (i32, i32, i32) {
    %c0_i32 = arith.constant 0 : i32
    %c0_i32_0 = arith.constant 0 : i32
    %c0_i32_1 = arith.constant 0 : i32
    return %arg0, %c0_i32, %c0_i32_0 : i32, i32, i32
  }
}

</mosaic_0001>

<llo_original>
// kernel: net_forward.1
$region0: #{net_forward.1}
  #allocation0 [shape = 'u32[]', space=smem, size = 0x4, offset = 0x4, fixed_abs, tag = 'smem constant byte address 0x4 - core index']
  #allocation1 [shape = 'u32[144,128]{1,0:T(1,128)}', space=vmem, size = 0x12000, scoped, tag = 'internal scratch']
  %s0 = inlined_call_operand.vmem [shape: f32[2,32,96], index: 0, kind: input, shape index: {}]
  %s1 = inlined_call_operand.vmem [shape: f32[3,96,240], index: 1, kind: input, shape index: {}]
  %s2 = inlined_call_operand.vmem [shape: f32[1,240], index: 2, kind: input, shape index: {}]
  %s3 = inlined_call_operand.vmem [shape: f32[3,240,208], index: 3, kind: input, shape index: {}]
  %s4 = inlined_call_operand.vmem [shape: f32[1,208], index: 4, kind: input, shape index: {}]
  %s5 = inlined_call_operand.vmem [shape: f32[3,208,128], index: 5, kind: input, shape index: {}]
  %s6 = inlined_call_operand.vmem [shape: f32[1,128], index: 6, kind: input, shape index: {}]
  %s7 = inlined_call_operand.vmem [shape: f32[2,128,64], index: 7, kind: input, shape index: {}]
  %s8 = inlined_call_operand.vmem [shape: f32[1,64], index: 8, kind: input, shape index: {}]
  %s9 = inlined_call_operand.vmem [shape: f32[64,10], index: 9, kind: input, shape index: {}]
  %s10 = inlined_call_operand.vmem [shape: f32[1,10], index: 10, kind: input, shape index: {}]
  %s11 = inlined_call_operand.hbm [shape: f32[2,1,10], index: 11, kind: output, shape index: {}]
  %s12 = sld [smem:[#allocation0]]
  $region77: #{net_forward.1} parent=0
    _
  %s14 = ssub.s32 1, %s12
  %s15 = scalar_select 0, %s14, %s12
  $region1: #{net_forward.1} parent=0
    #allocation2 [shape = 'u8[1024]{0}', space=vmem, size = 0x400, scoped, tag = 'output window, operand 0']
    #allocation3 [shape = 's32[2]{0}', space=sflag, size = 0x8, scoped, tag = 'scoped memory for net_forward.1']
    %16 = vsyncpa [#allocation3], 0
    %s17 = scalar_lea.sflag [#allocation3], 1
    %18 = vsyncpa %s17, 0
    loop: start=0, step=1, limit=4
    $region2: #{net_forward.1} parent=1 // loop_pre_header
      _
    $region3: #{net_forward.1} parent=1 // loop_header
      %s20 = sphi 0, %s24
      %p21 = scmp.ge.s32.totalorder %s20, 4
      %s30 = sphi 0, %s32
      %s33 = sphi 0, %s30
      %s34 = sphi 0, %s33
      %s50 = sphi 0, %s34
      %s54 = sphi 0, %s54
      %s56 = sphi 0, %s54
      %s57 = sphi 0, %s56
      %s71 = sphi 0, %s57
      %s75 = sphi 0, %s75
      %s77 = sphi 0, %s75
      %s78 = sphi 0, %s77
      %s92 = sphi 0, %s78
      %s96 = sphi 0, %s96
      %s98 = sphi 0, %s96
      %s99 = sphi 0, %s98
      %s113 = sphi 0, %s99
      %s117 = sphi 0, %s117
      %s119 = sphi 0, %s117
      %s120 = sphi 0, %s119
      %s134 = sphi 0, %s120
      %s138 = sphi 0, %s138
      %s140 = sphi 0, %s138
      %s141 = sphi 0, %s140
      %s155 = sphi 0, %s141
      %s159 = sphi 0, %s159
      %s161 = sphi 0, %s159
      %s162 = sphi 0, %s161
      %s176 = sphi 0, %s162
      %s180 = sphi 0, %s180
      %s182 = sphi 0, %s180
      %s183 = sphi 0, %s182
      %s197 = sphi 0, %s183
      %s201 = sphi 0, %s201
      %s203 = sphi 0, %s201
      %s204 = sphi 0, %s203
      %s218 = sphi 0, %s204
      %s222 = sphi 0, %s222
      %s224 = sphi 0, %s222
      %s225 = sphi 0, %s224
      %s239 = sphi 0, %s225
      %s243 = sphi 0, %s243
      %s245 = sphi 0, %s243
      %s246 = sphi 0, %s245
      %s260 = sphi 0, %s246
      %s266 = sphi 0, %s268
      %s269 = sphi 0, %s266
      %s270 = sphi 0, %s269
      %s286 = sphi 0, %s270
    $region4: #{net_forward.1} parent=1 // loop_header_branch
      %23 = sbr.rel (%p21) target = $region8
    $region5: #{net_forward.1} parent=1 // loop_body
      %s25 = ssub.s32 %s20, 1
      %s26 = ssub.s32 %s20, 2
      %s27 = sadd.s32 %s20, 1
      %s28 = ssub.s32 %s20, %s27
      %p29 = scmp.eq.s32.totalorder %s28, 0
      %s31 = sadd.s32 %s30, 1
      %s32 = scalar_select %p29, %s30, %s31
      %p35 = pneg %p29
      %p36 = scmp.eq.s32.totalorder %s20, 1
      %p37 = por %p35, %p36
      %p38 = scmp.ne.s32.totalorder %s30, %s33
      %p39 = scmp.eq.s32.totalorder %s20, 0
      %p40 = por %p38, %p39
      %p41 = scmp.ne.s32.totalorder %s30, %s33
      %p42 = scmp.eq.s32.totalorder %s25, 1
      %p43 = por %p41, %p42
      %p44 = scmp.ne.s32.totalorder %s33, %s34
      %p45 = scmp.eq.s32.totalorder %s25, 0
      %p46 = por %p44, %p45
      %p47 = scmp.ne.s32.totalorder %s33, %s34
      %p48 = scmp.eq.s32.totalorder %s26, 1
      %p49 = por %p47, %p48
      %p51 = scmp.ne.s32.totalorder %s34, %s50
      %p52 = scmp.eq.s32.totalorder %s26, 0
      %p53 = por %p51, %p52
      %s55 = sadd.s32 %s54, 1
      %p58 = scmp.eq.s32.totalorder %s20, 1
      %p59 = scmp.ne.s32.totalorder %s54, %s56
      %p60 = scmp.eq.s32.totalorder %s20, 0
      %p61 = por %p59, %p60
      %p62 = scmp.ne.s32.totalorder %s54, %s56
      %p63 = scmp.eq.s32.totalorder %s25, 1
      %p64 = por %p62, %p63
      %p65 = scmp.ne.s32.totalorder %s56, %s57
      %p66 = scmp.eq.s32.totalorder %s25, 0
      %p67 = por %p65, %p66
      %p68 = scmp.ne.s32.totalorder %s56, %s57
      %p69 = scmp.eq.s32.totalorder %s26, 1
      %p70 = por %p68, %p69
      %p72 = scmp.ne.s32.totalorder %s57, %s71
      %p73 = scmp.eq.s32.totalorder %s26, 0
      %p74 = por %p72, %p73
      %s76 = sadd.s32 %s75, 1
      %p79 = scmp.eq.s32.totalorder %s20, 1
      %p80 = scmp.ne.s32.totalorder %s75, %s77
      %p81 = scmp.eq.s32.totalorder %s20, 0
      %p82 = por %p80, %p81
      %p83 = scmp.ne.s32.totalorder %s75, %s77
      %p84 = scmp.eq.s32.totalorder %s25, 1
      %p85 = por %p83, %p84
      %p86 = scmp.ne.s32.totalorder %s77, %s78
      %p87 = scmp.eq.s32.totalorder %s25, 0
      %p88 = por %p86, %p87
      %p89 = scmp.ne.s32.totalorder %s77, %s78
      %p90 = scmp.eq.s32.totalorder %s26, 1
      %p91 = por %p89, %p90
      %p93 = scmp.ne.s32.totalorder %s78, %s92
      %p94 = scmp.eq.s32.totalorder %s26, 0
      %p95 = por %p93, %p94
      %s97 = sadd.s32 %s96, 1
      %p100 = scmp.eq.s32.totalorder %s20, 1
      %p101 = scmp.ne.s32.totalorder %s96, %s98
      %p102 = scmp.eq.s32.totalorder %s20, 0
      %p103 = por %p101, %p102
      %p104 = scmp.ne.s32.totalorder %s96, %s98
      %p105 = scmp.eq.s32.totalorder %s25, 1
      %p106 = por %p104, %p105
      %p107 = scmp.ne.s32.totalorder %s98, %s99
      %p108 = scmp.eq.s32.totalorder %s25, 0
      %p109 = por %p107, %p108
      %p110 = scmp.ne.s32.totalorder %s98, %s99
      %p111 = scmp.eq.s32.totalorder %s26, 1
      %p112 = por %p110, %p111
      %p114 = scmp.ne.s32.totalorder %s99, %s113
      %p115 = scmp.eq.s32.totalorder %s26, 0
      %p116 = por %p114, %p115
      %s118 = sadd.s32 %s117, 1
      %p121 = scmp.eq.s32.totalorder %s20, 1
      %p122 = scmp.ne.s32.totalorder %s117, %s119
      %p123 = scmp.eq.s32.totalorder %s20, 0
      %p124 = por %p122, %p123
      %p125 = scmp.ne.s32.totalorder %s117, %s119
      %p126 = scmp.eq.s32.totalorder %s25, 1
      %p127 = por %p125, %p126
      %p128 = scmp.ne.s32.totalorder %s119, %s120
      %p129 = scmp.eq.s32.totalorder %s25, 0
      %p130 = por %p128, %p129
      %p131 = scmp.ne.s32.totalorder %s119, %s120
      %p132 = scmp.eq.s32.totalorder %s26, 1
      %p133 = por %p131, %p132
      %p135 = scmp.ne.s32.totalorder %s120, %s134
      %p136 = scmp.eq.s32.totalorder %s26, 0
      %p137 = por %p135, %p136
      %s139 = sadd.s32 %s138, 1
      %p142 = scmp.eq.s32.totalorder %s20, 1
      %p143 = scmp.ne.s32.totalorder %s138, %s140
      %p144 = scmp.eq.s32.totalorder %s20, 0
      %p145 = por %p143, %p144
      %p146 = scmp.ne.s32.totalorder %s138, %s140
      %p147 = scmp.eq.s32.totalorder %s25, 1
      %p148 = por %p146, %p147
      %p149 = scmp.ne.s32.totalorder %s140, %s141
      %p150 = scmp.eq.s32.totalorder %s25, 0
      %p151 = por %p149, %p150
      %p152 = scmp.ne.s32.totalorder %s140, %s141
      %p153 = scmp.eq.s32.totalorder %s26, 1
      %p154 = por %p152, %p153
      %p156 = scmp.ne.s32.totalorder %s141, %s155
      %p157 = scmp.eq.s32.totalorder %s26, 0
      %p158 = por %p156, %p157
      %s160 = sadd.s32 %s159, 1
      %p163 = scmp.eq.s32.totalorder %s20, 1
      %p164 = scmp.ne.s32.totalorder %s159, %s161
      %p165 = scmp.eq.s32.totalorder %s20, 0
      %p166 = por %p164, %p165
      %p167 = scmp.ne.s32.totalorder %s159, %s161
      %p168 = scmp.eq.s32.totalorder %s25, 1
      %p169 = por %p167, %p168
      %p170 = scmp.ne.s32.totalorder %s161, %s162
      %p171 = scmp.eq.s32.totalorder %s25, 0
      %p172 = por %p170, %p171
      %p173 = scmp.ne.s32.totalorder %s161, %s162
      %p174 = scmp.eq.s32.totalorder %s26, 1
      %p175 = por %p173, %p174
      %p177 = scmp.ne.s32.totalorder %s162, %s176
      %p178 = scmp.eq.s32.totalorder %s26, 0
      %p179 = por %p177, %p178
      %s181 = sadd.s32 %s180, 1
      %p184 = scmp.eq.s32.totalorder %s20, 1
      %p185 = scmp.ne.s32.totalorder %s180, %s182
      %p186 = scmp.eq.s32.totalorder %s20, 0
      %p187 = por %p185, %p186
      %p188 = scmp.ne.s32.totalorder %s180, %s182
      %p189 = scmp.eq.s32.totalorder %s25, 1
      %p190 = por %p188, %p189
      %p191 = scmp.ne.s32.totalorder %s182, %s183
      %p192 = scmp.eq.s32.totalorder %s25, 0
      %p193 = por %p191, %p192
      %p194 = scmp.ne.s32.totalorder %s182, %s183
      %p195 = scmp.eq.s32.totalorder %s26, 1
      %p196 = por %p194, %p195
      %p198 = scmp.ne.s32.totalorder %s183, %s197
      %p199 = scmp.eq.s32.totalorder %s26, 0
      %p200 = por %p198, %p199
      %s202 = sadd.s32 %s201, 1
      %p205 = scmp.eq.s32.totalorder %s20, 1
      %p206 = scmp.ne.s32.totalorder %s201, %s203
      %p207 = scmp.eq.s32.totalorder %s20, 0
      %p208 = por %p206, %p207
      %p209 = scmp.ne.s32.totalorder %s201, %s203
      %p210 = scmp.eq.s32.totalorder %s25, 1
      %p211 = por %p209, %p210
      %p212 = scmp.ne.s32.totalorder %s203, %s204
      %p213 = scmp.eq.s32.totalorder %s25, 0
      %p214 = por %p212, %p213
      %p215 = scmp.ne.s32.totalorder %s203, %s204
      %p216 = scmp.eq.s32.totalorder %s26, 1
      %p217 = por %p215, %p216
      %p219 = scmp.ne.s32.totalorder %s204, %s218
      %p220 = scmp.eq.s32.totalorder %s26, 0
      %p221 = por %p219, %p220
      %s223 = sadd.s32 %s222, 1
      %p226 = scmp.eq.s32.totalorder %s20, 1
      %p227 = scmp.ne.s32.totalorder %s222, %s224
      %p228 = scmp.eq.s32.totalorder %s20, 0
      %p229 = por %p227, %p228
      %p230 = scmp.ne.s32.totalorder %s222, %s224
      %p231 = scmp.eq.s32.totalorder %s25, 1
      %p232 = por %p230, %p231
      %p233 = scmp.ne.s32.totalorder %s224, %s225
      %p234 = scmp.eq.s32.totalorder %s25, 0
      %p235 = por %p233, %p234
      %p236 = scmp.ne.s32.totalorder %s224, %s225
      %p237 = scmp.eq.s32.totalorder %s26, 1
      %p238 = por %p236, %p237
      %p240 = scmp.ne.s32.totalorder %s225, %s239
      %p241 = scmp.eq.s32.totalorder %s26, 0
      %p242 = por %p240, %p241
      %s244 = sadd.s32 %s243, 1
      %p247 = scmp.eq.s32.totalorder %s20, 1
      %p248 = scmp.ne.s32.totalorder %s243, %s245
      %p249 = scmp.eq.s32.totalorder %s20, 0
      %p250 = por %p248, %p249
      %p251 = scmp.ne.s32.totalorder %s243, %s245
      %p252 = scmp.eq.s32.totalorder %s25, 1
      %p253 = por %p251, %p252
      %p254 = scmp.ne.s32.totalorder %s245, %s246
      %p255 = scmp.eq.s32.totalorder %s25, 0
      %p256 = por %p254, %p255
      %p257 = scmp.ne.s32.totalorder %s245, %s246
      %p258 = scmp.eq.s32.totalorder %s26, 1
      %p259 = por %p257, %p258
      %p261 = scmp.ne.s32.totalorder %s246, %s260
      %p262 = scmp.eq.s32.totalorder %s26, 0
      %p263 = por %p261, %p262
      %s264 = ssub.s32 %s20, %s27
      %p265 = scmp.eq.s32.totalorder %s264, 0
      %s267 = sadd.s32 %s266, 1
      %s268 = scalar_select %p265, %s266, %s267
      %p271 = pneg %p265
      %p272 = scmp.eq.s32.totalorder %s20, 1
      %p273 = por %p271, %p272
      %p274 = scmp.ne.s32.totalorder %s266, %s269
      %p275 = scmp.eq.s32.totalorder %s20, 0
      %p276 = por %p274, %p275
      %p277 = scmp.ne.s32.totalorder %s266, %s269
      %p278 = scmp.eq.s32.totalorder %s25, 1
      %p279 = por %p277, %p278
      %p280 = scmp.ne.s32.totalorder %s269, %s270
      %p281 = scmp.eq.s32.totalorder %s25, 0
      %p282 = por %p280, %p281
      %p283 = scmp.ne.s32.totalorder %s269, %s270
      %p284 = scmp.eq.s32.totalorder %s26, 1
      %p285 = por %p283, %p284
      %p287 = scmp.ne.s32.totalorder %s270, %s286
      %p288 = scmp.eq.s32.totalorder %s26, 0
      %p289 = por %p287, %p288
      %p290 = scmp.le.s32.totalorder 1, %s20
      %p291 = scmp.lt.s32.totalorder %s20, 3
      %p292 = pnand %p290, %p291
      %p293 = pneg %p292
      // Predicated region
      $region9: #{net_forward.1} parent=5 // pred_check
        _
      $region10: #{net_forward.1} parent=5 // pred_check_branch
        %295 = sbr.rel (%p292) target = $region12
      $region11: #{net_forward.1} parent=5 // pred_region
        %s296 = ssub.s32 %s20, 1
        // Predicated region
        $region13: #{net_forward.1} parent=11 // pred_check
          %p297 = pneg %p67
        $region14: #{net_forward.1} parent=11 // pred_check_branch
          %299 = sbr.rel (%p297) target = $region16
        $region15: #{net_forward.1} parent=11 // pred_region
          _
        $region16: #{net_forward.1} parent=11 // pred_fallthru
          _
        // Predicated region
        $region17: #{net_forward.1} parent=11 // pred_check
          %p300 = pneg %p88
        $region18: #{net_forward.1} parent=11 // pred_check_branch
          %302 = sbr.rel (%p300) target = $region20
        $region19: #{net_forward.1} parent=11 // pred_region
          _
        $region20: #{net_forward.1} parent=11 // pred_fallthru
          _
        // Predicated region
        $region21: #{net_forward.1} parent=11 // pred_check
          %p303 = pneg %p109
        $region22: #{net_forward.1} parent=11 // pred_check_branch
          %305 = sbr.rel (%p303) target = $region24
        $region23: #{net_forward.1} parent=11 // pred_region
          _
        $region24: #{net_forward.1} parent=11 // pred_fallthru
          _
        // Predicated region
        $region25: #{net_forward.1} parent=11 // pred_check
          %p306 = pneg %p130
        $region26: #{net_forward.1} parent=11 // pred_check_branch
          %308 = sbr.rel (%p306) target = $region28
        $region27: #{net_forward.1} parent=11 // pred_region
          _
        $region28: #{net_forward.1} parent=11 // pred_fallthru
          _
        // Predicated region
        $region29: #{net_forward.1} parent=11 // pred_check
          %p309 = pneg %p151
        $region30: #{net_forward.1} parent=11 // pred_check_branch
          %311 = sbr.rel (%p309) target = $region32
        $region31: #{net_forward.1} parent=11 // pred_region
          _
        $region32: #{net_forward.1} parent=11 // pred_fallthru
          _
        // Predicated region
        $region33: #{net_forward.1} parent=11 // pred_check
          %p312 = pneg %p172
        $region34: #{net_forward.1} parent=11 // pred_check_branch
          %314 = sbr.rel (%p312) target = $region36
        $region35: #{net_forward.1} parent=11 // pred_region
          _
        $region36: #{net_forward.1} parent=11 // pred_fallthru
          _
        // Predicated region
        $region37: #{net_forward.1} parent=11 // pred_check
          %p315 = pneg %p193
        $region38: #{net_forward.1} parent=11 // pred_check_branch
          %317 = sbr.rel (%p315) target = $region40
        $region39: #{net_forward.1} parent=11 // pred_region
          _
        $region40: #{net_forward.1} parent=11 // pred_fallthru
          _
        // Predicated region
        $region41: #{net_forward.1} parent=11 // pred_check
          %p318 = pneg %p214
        $region42: #{net_forward.1} parent=11 // pred_check_branch
          %320 = sbr.rel (%p318) target = $region44
        $region43: #{net_forward.1} parent=11 // pred_region
          _
        $region44: #{net_forward.1} parent=11 // pred_fallthru
          _
        // Predicated region
        $region45: #{net_forward.1} parent=11 // pred_check
          %p321 = pneg %p235
        $region46: #{net_forward.1} parent=11 // pred_check_branch
          %323 = sbr.rel (%p321) target = $region48
        $region47: #{net_forward.1} parent=11 // pred_region
          _
        $region48: #{net_forward.1} parent=11 // pred_fallthru
          _
        // Predicated region
        $region49: #{net_forward.1} parent=11 // pred_check
          %p324 = pneg %p256
        $region50: #{net_forward.1} parent=11 // pred_check_branch
          %326 = sbr.rel (%p324) target = $region52
        $region51: #{net_forward.1} parent=11 // pred_region
          _
        $region52: #{net_forward.1} parent=11 // pred_fallthru
          _
      $region12: #{net_forward.1} parent=5 // pred_fallthru
        _
      %p327 = scmp.lt.s32.totalorder %s20, 2
      // Predicated region
      $region53: #{net_forward.1} parent=5 // pred_check
        %p328 = pneg %p327
      $region54: #{net_forward.1} parent=5 // pred_check_branch
        %330 = sbr.rel (%p328) target = $region56
      $region55: #{net_forward.1} parent=5 // pred_region
        // Predicated region
        $region57: #{net_forward.1} parent=55 // pred_check
          %p331 = pneg %p40
        $region58: #{net_forward.1} parent=55 // pred_check_branch
          %333 = sbr.rel (%p331) target = $region60
        $region59: #{net_forward.1} parent=55 // pred_region
          %p334 = scmp.lt.s32.totalorder %s20, 1
          %s335 = scalar_select %p334, %s20, 1
          %s336 = smul.addr %s335, 4
          %s337 = smul.addr %s336, 8
          %s338 = scalar_lea.vmem %s0, %s337
        $region60: #{net_forward.1} parent=55 // pred_fallthru
          _
      $region56: #{net_forward.1} parent=5 // pred_fallthru
        _
      %p339 = scmp.le.s32.totalorder 1, %s20
      %p340 = scmp.lt.s32.totalorder %s20, 3
      %p341 = pnand %p339, %p340
      %p342 = pneg %p341
      // Predicated region
      $region61: #{net_forward.1} parent=5 // pred_check
        _
      $region62: #{net_forward.1} parent=5 // pred_check_branch
        %344 = sbr.rel (%p341) target = $region64
      $region63: #{net_forward.1} parent=5 // pred_region
        %s345 = ssub.s32 %s20, 1
        %p346 = scmp.lt.s32.totalorder %s25, 1
        %s347 = scalar_select %p346, %s25, 1
        %s348 = smul.addr %s347, 4
        %s349 = smul.addr %s348, 8
        %s350 = scalar_lea.vmem %s0, %s349
        %p351 = pneg %p46
        %p352 = pneg %p43
        %p353 = pneg %p67
        %p354 = pneg %p64
        %p355 = pneg %p88
        %p356 = pneg %p85
        %p357 = pneg %p109
        %p358 = pneg %p106
        %p359 = pneg %p130
        %p360 = pneg %p127
        %p361 = pneg %p151
        %p362 = pneg %p148
        %p363 = pneg %p172
        %p364 = pneg %p169
        %p365 = pneg %p193
        %p366 = pneg %p190
        %p367 = pneg %p214
        %p368 = pneg %p211
        %p369 = pneg %p235
        %p370 = pneg %p232
        %p371 = pneg %p256
        %p372 = pneg %p253
        %p373 = pneg %p282
        %p374 = pneg %p279
        %s375 = sand.u32 %s269, 1
        %s376 = scalar_lea.sflag [#allocation3], %s375
        %s377 = sand.u32 %s269, 1
        %s378 = scalar_lea.vmem [#allocation2], %s377
        %p379 = scmp.lt.s32.totalorder %s25, 1
        %s380 = scalar_select %p379, %s25, 1
        %s381 = smul.addr %s380, 4
        %s382 = smul.addr %s381, 8
        %s383 = scalar_lea.vmem %s0, %s382
        %v384 = vld [vmem:[%s383] sm:$0xff]
        %v385 = vld [vmem:[%s383 + $0x8] sm:$0xff]
        %v386 = vld [vmem:[%s383 + $0x10] sm:$0xff]
        %v387 = vld [vmem:[%s383 + $0x18] sm:$0xff]
        %v388 = vlaneseq
        %v389 = vshrl.u32 %v388, 7
        %v390 = vadd.s32 %v389, 8
        %v391 = vadd.s32 %v389, 16
        %v392 = vadd.s32 %v389, 24
        %v393 = vlaneseq
        %v394 = vand.u32 %v393, 127
        %v395 = vadd.s32 %v389, 1
        %v396 = vadd.s32 %v390, 1
        %v397 = vadd.s32 %v391, 1
        %v398 = vadd.s32 %v392, 1
        %vm399 = vcmp.eq.s32.totalorder %v394, %v395
        %vm400 = vcmp.eq.s32.totalorder %v394, %v396
        %vm401 = vcmp.eq.s32.totalorder %v394, %v397
        %vm402 = vcmp.eq.s32.totalorder %v394, %v398
        %v403 = vsel %vm399, 1.0, 0.0
        %v404 = vsel %vm400, 1.0, 0.0
        %v405 = vsel %vm401, 1.0, 0.0
        %v406 = vsel %vm402, 1.0, 0.0
        %v407 = vadd.s32 %v389, 2
        %v408 = vadd.s32 %v390, 2
        %v409 = vadd.s32 %v391, 2
        %v410 = vadd.s32 %v392, 2
        %vm411 = vcmp.eq.s32.totalorder %v394, %v407
        %vm412 = vcmp.eq.s32.totalorder %v394, %v408
        %vm413 = vcmp.eq.s32.totalorder %v394, %v409
        %vm414 = vcmp.eq.s32.totalorder %v394, %v410
        %v415 = vsel %vm411, 1.0, 0.0
        %v416 = vsel %vm412, 1.0, 0.0
        %v417 = vsel %vm413, 1.0, 0.0
        %v418 = vsel %vm414, 1.0, 0.0
        %v419 = vld [vmem:[%s1] sm:$0xff]
        %v420 = vld [vmem:[%s1 + $0x8] sm:$0xff]
        %v421 = vld [vmem:[%s1 + $0x10] sm:$0xff]
        %v422 = vld [vmem:[%s1 + $0x18] sm:$0xff]
        %v423 = vld [vmem:[%s1 + $0x20] sm:$0xff]
        %v424 = vld [vmem:[%s1 + $0x28] sm:$0xff]
        %v425 = vld [vmem:[%s1 + $0x30] sm:$0xff]
        %v426 = vld [vmem:[%s1 + $0x38] sm:$0xff]
        %v427 = vld [vmem:[%s1 + $0x40] sm:$0xff]
        %v428 = vld [vmem:[%s1 + $0x48] sm:$0xff]
        %v429 = vld [vmem:[%s1 + $0x50] sm:$0xff]
        %v430 = vld [vmem:[%s1 + $0x58] sm:$0xff]
        %v431 = vld [vmem:[%s1 + $0x60] sm:$0xff]
        %v432 = vld [vmem:[%s1 + $0x68] sm:$0xff]
        %v433 = vld [vmem:[%s1 + $0x70] sm:$0xff]
        %v434 = vld [vmem:[%s1 + $0x78] sm:$0xff]
        %v435 = vld [vmem:[%s1 + $0x80] sm:$0xff]
        %v436 = vld [vmem:[%s1 + $0x88] sm:$0xff]
        %v437 = vld [vmem:[%s1 + $0x90] sm:$0xff]
        %v438 = vld [vmem:[%s1 + $0x98] sm:$0xff]
        %v439 = vld [vmem:[%s1 + $0xa0] sm:$0xff]
        %v440 = vld [vmem:[%s1 + $0xa8] sm:$0xff]
        %v441 = vld [vmem:[%s1 + $0xb0] sm:$0xff]
        %v442 = vld [vmem:[%s1 + $0xb8] sm:$0xff]
        %s443 = scalar_lea.vmem %s1, 192
        %v444 = vld [vmem:[%s443] sm:$0xff]
        %v445 = vld [vmem:[%s443 + $0x8] sm:$0xff]
        %v446 = vld [vmem:[%s443 + $0x10] sm:$0xff]
        %v447 = vld [vmem:[%s443 + $0x18] sm:$0xff]
        %v448 = vld [vmem:[%s443 + $0x20] sm:$0xff]
        %v449 = vld [vmem:[%s443 + $0x28] sm:$0xff]
        %v450 = vld [vmem:[%s443 + $0x30] sm:$0xff]
        %v451 = vld [vmem:[%s443 + $0x38] sm:$0xff]
        %v452 = vld [vmem:[%s443 + $0x40] sm:$0xff]
        %v453 = vld [vmem:[%s443 + $0x48] sm:$0xff]
        %v454 = vld [vmem:[%s443 + $0x50] sm:$0xff]
        %v455 = vld [vmem:[%s443 + $0x58] sm:$0xff]
        %v456 = vld [vmem:[%s443 + $0x60] sm:$0xff]
        %v457 = vld [vmem:[%s443 + $0x68] sm:$0xff]
        %v458 = vld [vmem:[%s443 + $0x70] sm:$0xff]
        %v459 = vld [vmem:[%s443 + $0x78] sm:$0xff]
        %v460 = vld [vmem:[%s443 + $0x80] sm:$0xff]
        %v461 = vld [vmem:[%s443 + $0x88] sm:$0xff]
        %v462 = vld [vmem:[%s443 + $0x90] sm:$0xff]
        %v463 = vld [vmem:[%s443 + $0x98] sm:$0xff]
        %v464 = vld [vmem:[%s443 + $0xa0] sm:$0xff]
        %v465 = vld [vmem:[%s443 + $0xa8] sm:$0xff]
        %v466 = vld [vmem:[%s443 + $0xb0] sm:$0xff]
        %v467 = vld [vmem:[%s443 + $0xb8] sm:$0xff]
        %vm468 = vcmask 785408
        %v470 = vsel %vm468, %v384, 0
        %v473 = vsel %vm468, %v385, 0
        %v476 = vsel %vm468, %v386, 0
        %v479 = vsel %vm468, %v387, 0
        %481 = vmatprep.subr.mxu0 %v445
        %482 = vmatpush1.msra.mxu0 %v444
        %483 = vmatprep.subr.mxu0 %v447
        %484 = vmatpush1.msra.mxu0 %v446
        %485 = vmatprep.subr.mxu0 %v449
        %486 = vmatpush1.msra.mxu0 %v448
        %487 = vmatprep.subr.mxu0 %v451
        %488 = vmatpush1.msra.mxu0 %v450
        %489 = vmatprep.subr.mxu0 %v453
        %490 = vmatpush1.msra.mxu0 %v452
        %491 = vmatprep.subr.mxu0 %v455
        %492 = vmatpush1.msra.mxu0 %v454
        %493 = vmatprep.subr.mxu0 %v457
        %494 = vmatpush1.msra.mxu0 %v456
        %495 = vmatprep.subr.mxu0 %v459
        %496 = vmatpush1.msra.mxu0 %v458
        %497 = vmatprep.subr.mxu0 %v461
        %498 = vmatpush1.msra.mxu0 %v460
        %499 = vmatprep.subr.mxu0 %v463
        %500 = vmatpush1.msra.mxu0 %v462
        %501 = vmatprep.subr.mxu0 %v465
        %502 = vmatpush1.msra.mxu0 %v464
        %503 = vmatprep.subr.mxu0 %v467
        %504 = vmatpush1.msra.mxu0 %v466
        %505 = vmatprep.subr.mxu0 0.0
        %506 = vmatpush1.msra.mxu0 0.0
        %507 = vmatprep.subr.mxu0 0.0
        %508 = vmatpush1.msra.mxu0 0.0
        %509 = vmatprep.subr.mxu0 0.0
        %510 = vmatpush1.msra.mxu0 0.0
        %511 = vmatprep.subr.mxu0 0.0
        %512 = vmatpush1.msra.mxu0 0.0
        %513 = vmatprep.subr.mxu0 0.0
        %514 = vmatpush1.msra.mxu0 0.0
        %515 = vmatprep.subr.mxu0 0.0
        %516 = vmatpush1.msra.mxu0 0.0
        %517 = vmatprep.subr.mxu0 0.0
        %518 = vmatpush1.msra.mxu0 0.0
        %519 = vmatprep.subr.mxu0 0.0
        %520 = vmatpush1.msra.mxu0 0.0
        %521 = vmatprep.subr.mxu0 0.0
        %522 = vmatpush1.msra.mxu0 0.0
        %523 = vmatprep.subr.mxu0 0.0
        %524 = vmatpush1.msra.mxu0 0.0
        %525 = vmatprep.subr.mxu0 0.0
        %526 = vmatpush1.msra.mxu0 0.0
        %527 = vmatprep.subr.mxu0 0.0
        %528 = vmatpush1.msra.mxu0 0.0
        %529 = vmatprep.subr.mxu0 0.0
        %530 = vmatpush1.msra.mxu0 0.0
        %531 = vmatprep.subr.mxu0 0.0
        %532 = vmatpush1.msra.mxu0 0.0
        %533 = vmatprep.subr.mxu0 0.0
        %534 = vmatpush1.msra.mxu0 0.0
        %535 = vmatprep.subr.mxu0 0.0
        %536 = vmatpush1.msra.mxu0 0.0
        %537 = vmatprep.subr.mxu0 0.0
        %538 = vmatpush1.msra.mxu0 0.0
        %539 = vmatprep.subr.mxu0 0.0
        %540 = vmatpush1.msra.mxu0 0.0
        %541 = vmatprep.subr.mxu0 0.0
        %542 = vmatpush1.msra.mxu0 0.0
        %543 = vmatprep.subr.mxu0 0.0
        %544 = vmatpush1.msra.mxu0 0.0
        %545 = vmatprep.mubr.f32.mxu0 0.0
        %546 = vmatmul.mubr.f32.gmra.mrb[0].mxu0 %v470
        %v547 = vpop.f32.mrb[0].mxu0
        %v548 = vadd.f32 0.0, %v547
        %v549 = vpop.f32.mrb[0].mxu0
        %v550 = vadd.f32 0.0, %v549
        %551 = vmatprep.mubr.f32.mxu0 0.0
        %552 = vmatmul.mubr.f32.gmra.mrb[0].mxu0 %v473
        %v553 = vpop.f32.mrb[0].mxu0
        %v554 = vadd.f32 0.0, %v553
        %v555 = vpop.f32.mrb[0].mxu0
        %v556 = vadd.f32 0.0, %v555
        %557 = vmatprep.mubr.f32.mxu0 0.0
        %558 = vmatmul.mubr.f32.gmra.mrb[0].mxu0 %v476
        %v559 = vpop.f32.mrb[0].mxu0
        %v560 = vadd.f32 0.0, %v559
        %v561 = vpop.f32.mrb[0].mxu0
        %v562 = vadd.f32 0.0, %v561
        %563 = vmatprep.mubr.f32.mxu0 0.0
        %564 = vmatmul.mubr.f32.gmra.mrb[0].mxu0 %v479
        %v565 = vpop.f32.mrb[0].mxu0
        %v566 = vadd.f32 0.0, %v565
        %v567 = vpop.f32.mrb[0].mxu0
        %v568 = vadd.f32 0.0, %v567
        %569 = vdwg.mxu0
        %vm570 = vcmask 261120
        %v572 = vsel %vm570, %v403, 0
        %v575 = vsel %vm570, %v404, 0
        %v578 = vsel %vm570, %v405, 0
        %v581 = vsel %vm570, %v406, 0
        %583 = vmatprep.subr.mxu0 %v550
        %584 = vmatpush1.msra.mxu0 %v548
        %585 = vmatprep.subr.mxu0 %v556
        %586 = vmatpush1.msra.mxu0 %v554
        %587 = vmatprep.subr.mxu0 %v562
        %588 = vmatpush1.msra.mxu0 %v560
        %589 = vmatprep.subr.mxu0 %v568
        %590 = vmatpush1.msra.mxu0 %v566
        %591 = vmatprep.subr.mxu0 0.0
        %592 = vmatpush1.msra.mxu0 0.0
        %593 = vmatprep.subr.mxu0 0.0
        %594 = vmatpush1.msra.mxu0 0.0
        %595 = vmatprep.subr.mxu0 0.0
        %596 = vmatpush1.msra.mxu0 0.0
        %597 = vmatprep.subr.mxu0 0.0
        %598 = vmatpush1.msra.mxu0 0.0
        %599 = vmatprep.subr.mxu0 0.0
        %600 = vmatpush1.msra.mxu0 0.0
        %601 = vmatprep.subr.mxu0 0.0
        %602 = vmatpush1.msra.mxu0 0.0
        %603 = vmatprep.subr.mxu0 0.0
        %604 = vmatpush1.msra.mxu0 0.0
        %605 = vmatprep.subr.mxu0 0.0
        %606 = vmatpush1.msra.mxu0 0.0
        %607 = vmatprep.subr.mxu0 0.0
        %608 = vmatpush1.msra.mxu0 0.0
        %609 = vmatprep.subr.mxu0 0.0
        %610 = vmatpush1.msra.mxu0 0.0
        %611 = vmatprep.subr.mxu0 0.0
        %612 = vmatpush1.msra.mxu0 0.0
        %613 = vmatprep.subr.mxu0 0.0
        %614 = vmatpush1.msra.mxu0 0.0
        %615 = vmatprep.subr.mxu0 0.0
        %616 = vmatpush1.msra.mxu0 0.0
        %617 = vmatprep.subr.mxu0 0.0
        %618 = vmatpush1.msra.mxu0 0.0
        %619 = vmatprep.subr.mxu0 0.0
        %620 = vmatpush1.msra.mxu0 0.0
        %621 = vmatprep.subr.mxu0 0.0
        %622 = vmatpush1.msra.mxu0 0.0
        %623 = vmatprep.subr.mxu0 0.0
        %624 = vmatpush1.msra.mxu0 0.0
        %625 = vmatprep.subr.mxu0 0.0
        %626 = vmatpush1.msra.mxu0 0.0
        %627 = vmatprep.subr.mxu0 0.0
        %628 = vmatpush1.msra.mxu0 0.0
        %629 = vmatprep.subr.mxu0 0.0
        %630 = vmatpush1.msra.mxu0 0.0
        %631 = vmatprep.subr.mxu0 0.0
        %632 = vmatpush1.msra.mxu0 0.0
        %633 = vmatprep.subr.mxu0 0.0
        %634 = vmatpush1.msra.mxu0 0.0
        %635 = vmatprep.subr.mxu0 0.0
        %636 = vmatpush1.msra.mxu0 0.0
        %637 = vmatprep.subr.mxu0 0.0
        %638 = vmatpush1.msra.mxu0 0.0
        %639 = vmatprep.subr.mxu0 0.0
        %640 = vmatpush1.msra.mxu0 0.0
        %641 = vmatprep.subr.mxu0 0.0
        %642 = vmatpush1.msra.mxu0 0.0
        %643 = vmatprep.subr.mxu0 0.0
        %644 = vmatpush1.msra.mxu0 0.0
        %645 = vmatprep.subr.mxu0 0.0
        %646 = vmatpush1.msra.mxu0 0.0
        %647 = vmatprep.mubr.f32.mxu0 0.0
        %648 = vmatmul.mubr.f32.gmra.mrb[0].mxu0 %v572
        %v649 = vpop.f32.mrb[0].mxu0
        %v650 = vadd.f32 0.0, %v649
        %v651 = vpop.f32.mrb[0].mxu0
        %v652 = vadd.f32 0.0, %v651
        %653 = vmatprep.mubr.f32.mxu0 0.0
        %654 = vmatmul.mubr.f32.gmra.mrb[0].mxu0 %v575
        %v655 = vpop.f32.mrb[0].mxu0
        %v656 = vadd.f32 0.0, %v655
        %v657 = vpop.f32.mrb[0].mxu0
        %v658 = vadd.f32 0.0, %v657
        %659 = vmatprep.mubr.f32.mxu0 0.0
        %660 = vmatmul.mubr.f32.gmra.mrb[0].mxu0 %v578
        %v661 = vpop.f32.mrb[0].mxu0
        %v662 = vadd.f32 0.0, %v661
        %v663 = vpop.f32.mrb[0].mxu0
        %v664 = vadd.f32 0.0, %v663
        %665 = vmatprep.mubr.f32.mxu0 0.0
        %666 = vmatmul.mubr.f32.gmra.mrb[0].mxu0 %v581
        %v667 = vpop.f32.mrb[0].mxu0
        %v668 = vadd.f32 0.0, %v667
        %v669 = vpop.f32.mrb[0].mxu0
        %v670 = vadd.f32 0.0, %v669
        %671 = vdwg.mxu0
        %672 = vmatprep.subr.mxu0 %v420
        %673 = vmatpush1.msra.mxu0 %v419
        %674 = vmatprep.subr.mxu0 %v422
        %675 = vmatpush1.msra.mxu0 %v421
        %676 = vmatprep.subr.mxu0 %v424
        %677 = vmatpush1.msra.mxu0 %v423
        %678 = vmatprep.subr.mxu0 %v426
        %679 = vmatpush1.msra.mxu0 %v425
        %680 = vmatprep.subr.mxu0 %v428
        %681 = vmatpush1.msra.mxu0 %v427
        %682 = vmatprep.subr.mxu0 %v430
        %683 = vmatpush1.msra.mxu0 %v429
        %684 = vmatprep.subr.mxu0 %v432
        %685 = vmatpush1.msra.mxu0 %v431
        %686 = vmatprep.subr.mxu0 %v434
        %687 = vmatpush1.msra.mxu0 %v433
        %688 = vmatprep.subr.mxu0 %v436
        %689 = vmatpush1.msra.mxu0 %v435
        %690 = vmatprep.subr.mxu0 %v438
        %691 = vmatpush1.msra.mxu0 %v437
        %692 = vmatprep.subr.mxu0 %v440
        %693 = vmatpush1.msra.mxu0 %v439
        %694 = vmatprep.subr.mxu0 %v442
        %695 = vmatpush1.msra.mxu0 %v441
        %696 = vmatprep.subr.mxu0 0.0
        %697 = vmatpush1.msra.mxu0 0.0
        %698 = vmatprep.subr.mxu0 0.0
        %699 = vmatpush1.msra.mxu0 0.0
        %700 = vmatprep.subr.mxu0 0.0
        %701 = vmatpush1.msra.mxu0 0.0
        %702 = vmatprep.subr.mxu0 0.0
        %703 = vmatpush1.msra.mxu0 0.0
        %704 = vmatprep.subr.mxu0 0.0
        %705 = vmatpush1.msra.mxu0 0.0
        %706 = vmatprep.subr.mxu0 0.0
        %707 = vmatpush1.msra.mxu0 0.0
        %708 = vmatprep.subr.mxu0 0.0
        %709 = vmatpush1.msra.mxu0 0.0
        %710 = vmatprep.subr.mxu0 0.0
        %711 = vmatpush1.msra.mxu0 0.0
        %712 = vmatprep.subr.mxu0 0.0
        %713 = vmatpush1.msra.mxu0 0.0
        %714 = vmatprep.subr.mxu0 0.0
        %715 = vmatpush1.msra.mxu0 0.0
        %716 = vmatprep.subr.mxu0 0.0
        %717 = vmatpush1.msra.mxu0 0.0
        %718 = vmatprep.subr.mxu0 0.0
        %719 = vmatpush1.msra.mxu0 0.0
        %720 = vmatprep.subr.mxu0 0.0
        %721 = vmatpush1.msra.mxu0 0.0
        %722 = vmatprep.subr.mxu0 0.0
        %723 = vmatpush1.msra.mxu0 0.0
        %724 = vmatprep.subr.mxu0 0.0
        %725 = vmatpush1.msra.mxu0 0.0
        %726 = vmatprep.subr.mxu0 0.0
        %727 = vmatpush1.msra.mxu0 0.0
        %728 = vmatprep.subr.mxu0 0.0
        %729 = vmatpush1.msra.mxu0 0.0
        %730 = vmatprep.subr.mxu0 0.0
        %731 = vmatpush1.msra.mxu0 0.0
        %732 = vmatprep.subr.mxu0 0.0
        %733 = vmatpush1.msra.mxu0 0.0
        %734 = vmatprep.subr.mxu0 0.0
        %735 = vmatpush1.msra.mxu0 0.0
        %736 = vmatprep.mubr.f32.mxu0 0.0
        %737 = vmatmul.mubr.f32.gmra.mrb[0].mxu0 %v470
        %v738 = vpop.f32.mrb[0].mxu0
        %v739 = vadd.f32 %v650, %v738
        %v740 = vpop.f32.mrb[0].mxu0
        %v741 = vadd.f32 %v652, %v740
        %742 = vmatprep.mubr.f32.mxu0 0.0
        %743 = vmatmul.mubr.f32.gmra.mrb[0].mxu0 %v473
        %v744 = vpop.f32.mrb[0].mxu0
        %v745 = vadd.f32 %v656, %v744
        %v746 = vpop.f32.mrb[0].mxu0
        %v747 = vadd.f32 %v658, %v746
        %748 = vmatprep.mubr.f32.mxu0 0.0
        %749 = vmatmul.mubr.f32.gmra.mrb[0].mxu0 %v476
        %v750 = vpop.f32.mrb[0].mxu0
        %v751 = vadd.f32 %v662, %v750
        %v752 = vpop.f32.mrb[0].mxu0
        %v753 = vadd.f32 %v664, %v752
        %754 = vmatprep.mubr.f32.mxu0 0.0
        %755 = vmatmul.mubr.f32.gmra.mrb[0].mxu0 %v479
        %v756 = vpop.f32.mrb[0].mxu0
        %v757 = vadd.f32 %v668, %v756
        %v758 = vpop.f32.mrb[0].mxu0
        %v759 = vadd.f32 %v670, %v758
        %760 = vdwg.mxu0
        %s761 = scalar_lea.vmem %s1, 384
        %v762 = vld [vmem:[%s761] sm:$0xff]
        %v763 = vld [vmem:[%s761 + $0x8] sm:$0xff]
        %v764 = vld [vmem:[%s761 + $0x10] sm:$0xff]
        %v765 = vld [vmem:[%s761 + $0x18] sm:$0xff]
        %v766 = vld [vmem:[%s761 + $0x20] sm:$0xff]
        %v767 = vld [vmem:[%s761 + $0x28] sm:$0xff]
        %v768 = vld [vmem:[%s761 + $0x30] sm:$0xff]
        %v769 = vld [vmem:[%s761 + $0x38] sm:$0xff]
        %v770 = vld [vmem:[%s761 + $0x40] sm:$0xff]
        %v771 = vld [vmem:[%s761 + $0x48] sm:$0xff]
        %v772 = vld [vmem:[%s761 + $0x50] sm:$0xff]
        %v773 = vld [vmem:[%s761 + $0x58] sm:$0xff]
        %v774 = vld [vmem:[%s761 + $0x60] sm:$0xff]
        %v775 = vld [vmem:[%s761 + $0x68] sm:$0xff]
        %v776 = vld [vmem:[%s761 + $0x70] sm:$0xff]
        %v777 = vld [vmem:[%s761 + $0x78] sm:$0xff]
        %v778 = vld [vmem:[%s761 + $0x80] sm:$0xff]
        %v779 = vld [vmem:[%s761 + $0x88] sm:$0xff]
        %v780 = vld [vmem:[%s761 + $0x90] sm:$0xff]
        %v781 = vld [vmem:[%s761 + $0x98] sm:$0xff]
        %v782 = vld [vmem:[%s761 + $0xa0] sm:$0xff]
        %v783 = vld [vmem:[%s761 + $0xa8] sm:$0xff]
        %v784 = vld [vmem:[%s761 + $0xb0] sm:$0xff]
        %v785 = vld [vmem:[%s761 + $0xb8] sm:$0xff]
        %786 = vmatprep.subr.mxu0 %v763
        %787 = vmatpush1.msra.mxu0 %v762
        %788 = vmatprep.subr.mxu0 %v765
        %789 = vmatpush1.msra.mxu0 %v764
        %790 = vmatprep.subr.mxu0 %v767
        %791 = vmatpush1.msra.mxu0 %v766
        %792 = vmatprep.subr.mxu0 %v769
        %793 = vmatpush1.msra.mxu0 %v768
        %794 = vmatprep.subr.mxu0 %v771
        %795 = vmatpush1.msra.mxu0 %v770
        %796 = vmatprep.subr.mxu0 %v773
        %797 = vmatpush1.msra.mxu0 %v772
        %798 = vmatprep.subr.mxu0 %v775
        %799 = vmatpush1.msra.mxu0 %v774
        %800 = vmatprep.subr.mxu0 %v777
        %801 = vmatpush1.msra.mxu0 %v776
        %802 = vmatprep.subr.mxu0 %v779
        %803 = vmatpush1.msra.mxu0 %v778
        %804 = vmatprep.subr.mxu0 %v781
        %805 = vmatpush1.msra.mxu0 %v780
        %806 = vmatprep.subr.mxu0 %v783
        %807 = vmatpush1.msra.mxu0 %v782
        %808 = vmatprep.subr.mxu0 %v785
        %809 = vmatpush1.msra.mxu0 %v784
        %810 = vmatprep.subr.mxu0 0.0
        %811 = vmatpush1.msra.mxu0 0.0
        %812 = vmatprep.subr.mxu0 0.0
        %813 = vmatpush1.msra.mxu0 0.0
        %814 = vmatprep.subr.mxu0 0.0
        %815 = vmatpush1.msra.mxu0 0.0
        %816 = vmatprep.subr.mxu0 0.0
        %817 = vmatpush1.msra.mxu0 0.0
        %818 = vmatprep.subr.mxu0 0.0
        %819 = vmatpush1.msra.mxu0 0.0
        %820 = vmatprep.subr.mxu0 0.0
        %821 = vmatpush1.msra.mxu0 0.0
        %822 = vmatprep.subr.mxu0 0.0
        %823 = vmatpush1.msra.mxu0 0.0
        %824 = vmatprep.subr.mxu0 0.0
        %825 = vmatpush1.msra.mxu0 0.0
        %826 = vmatprep.subr.mxu0 0.0
        %827 = vmatpush1.msra.mxu0 0.0
        %828 = vmatprep.subr.mxu0 0.0
        %829 = vmatpush1.msra.mxu0 0.0
        %830 = vmatprep.subr.mxu0 0.0
        %831 = vmatpush1.msra.mxu0 0.0
        %832 = vmatprep.subr.mxu0 0.0
        %833 = vmatpush1.msra.mxu0 0.0
        %834 = vmatprep.subr.mxu0 0.0
        %835 = vmatpush1.msra.mxu0 0.0
        %836 = vmatprep.subr.mxu0 0.0
        %837 = vmatpush1.msra.mxu0 0.0
        %838 = vmatprep.subr.mxu0 0.0
        %839 = vmatpush1.msra.mxu0 0.0
        %840 = vmatprep.subr.mxu0 0.0
        %841 = vmatpush1.msra.mxu0 0.0
        %842 = vmatprep.subr.mxu0 0.0
        %843 = vmatpush1.msra.mxu0 0.0
        %844 = vmatprep.subr.mxu0 0.0
        %845 = vmatpush1.msra.mxu0 0.0
        %846 = vmatprep.subr.mxu0 0.0
        %847 = vmatpush1.msra.mxu0 0.0
        %848 = vmatprep.subr.mxu0 0.0
        %849 = vmatpush1.msra.mxu0 0.0
        %850 = vmatprep.mubr.f32.mxu0 0.0
        %851 = vmatmul.mubr.f32.gmra.mrb[0].mxu0 %v470
        %v852 = vpop.f32.mrb[0].mxu0
        %v853 = vadd.f32 0.0, %v852
        %v854 = vpop.f32.mrb[0].mxu0
        %v855 = vadd.f32 0.0, %v854
        %856 = vmatprep.mubr.f32.mxu0 0.0
        %857 = vmatmul.mubr.f32.gmra.mrb[0].mxu0 %v473
        %v858 = vpop.f32.mrb[0].mxu0
        %v859 = vadd.f32 0.0, %v858
        %v860 = vpop.f32.mrb[0].mxu0
        %v861 = vadd.f32 0.0, %v860
        %862 = vmatprep.mubr.f32.mxu0 0.0
        %863 = vmatmul.mubr.f32.gmra.mrb[0].mxu0 %v476
        %v864 = vpop.f32.mrb[0].mxu0
        %v865 = vadd.f32 0.0, %v864
        %v866 = vpop.f32.mrb[0].mxu0
        %v867 = vadd.f32 0.0, %v866
        %868 = vmatprep.mubr.f32.mxu0 0.0
        %869 = vmatmul.mubr.f32.gmra.mrb[0].mxu0 %v479
        %v870 = vpop.f32.mrb[0].mxu0
        %v871 = vadd.f32 0.0, %v870
        %v872 = vpop.f32.mrb[0].mxu0
        %v873 = vadd.f32 0.0, %v872
        %874 = vdwg.mxu0
        %v876 = vsel %vm570, %v415, 0
        %v879 = vsel %vm570, %v416, 0
        %v882 = vsel %vm570, %v417, 0
        %v885 = vsel %vm570, %v418, 0
        %887 = vmatprep.subr.mxu0 %v855
        %888 = vmatpush1.msra.mxu0 %v853
        %889 = vmatprep.subr.mxu0 %v861
        %890 = vmatpush1.msra.mxu0 %v859
        %891 = vmatprep.subr.mxu0 %v867
        %892 = vmatpush1.msra.mxu0 %v865
        %893 = vmatprep.subr.mxu0 %v873
        %894 = vmatpush1.msra.mxu0 %v871
        %895 = vmatprep.subr.mxu0 0.0
        %896 = vmatpush1.msra.mxu0 0.0
        %897 = vmatprep.subr.mxu0 0.0
        %898 = vmatpush1.msra.mxu0 0.0
        %899 = vmatprep.subr.mxu0 0.0
        %900 = vmatpush1.msra.mxu0 0.0
        %901 = vmatprep.subr.mxu0 0.0
        %902 = vmatpush1.msra.mxu0 0.0
        %903 = vmatprep.subr.mxu0 0.0
        %904 = vmatpush1.msra.mxu0 0.0
        %905 = vmatprep.subr.mxu0 0.0
        %906 = vmatpush1.msra.mxu0 0.0
        %907 = vmatprep.subr.mxu0 0.0
        %908 = vmatpush1.msra.mxu0 0.0
        %909 = vmatprep.subr.mxu0 0.0
        %910 = vmatpush1.msra.mxu0 0.0
        %911 = vmatprep.subr.mxu0 0.0
        %912 = vmatpush1.msra.mxu0 0.0
        %913 = vmatprep.subr.mxu0 0.0
        %914 = vmatpush1.msra.mxu0 0.0
        %915 = vmatprep.subr.mxu0 0.0
        %916 = vmatpush1.msra.mxu0 0.0
        %917 = vmatprep.subr.mxu0 0.0
        %918 = vmatpush1.msra.mxu0 0.0
        %919 = vmatprep.subr.mxu0 0.0
        %920 = vmatpush1.msra.mxu0 0.0
        %921 = vmatprep.subr.mxu0 0.0
        %922 = vmatpush1.msra.mxu0 0.0
        %923 = vmatprep.subr.mxu0 0.0
        %924 = vmatpush1.msra.mxu0 0.0
        %925 = vmatprep.subr.mxu0 0.0
        %926 = vmatpush1.msra.mxu0 0.0
        %927 = vmatprep.subr.mxu0 0.0
        %928 = vmatpush1.msra.mxu0 0.0
        %929 = vmatprep.subr.mxu0 0.0
        %930 = vmatpush1.msra.mxu0 0.0
        %931 = vmatprep.subr.mxu0 0.0
        %932 = vmatpush1.msra.mxu0 0.0
        %933 = vmatprep.subr.mxu0 0.0
        %934 = vmatpush1.msra.mxu0 0.0
        %935 = vmatprep.subr.mxu0 0.0
        %936 = vmatpush1.msra.mxu0 0.0
        %937 = vmatprep.subr.mxu0 0.0
        %938 = vmatpush1.msra.mxu0 0.0
        %939 = vmatprep.subr.mxu0 0.0
        %940 = vmatpush1.msra.mxu0 0.0
        %941 = vmatprep.subr.mxu0 0.0
        %942 = vmatpush1.msra.mxu0 0.0
        %943 = vmatprep.subr.mxu0 0.0
        %944 = vmatpush1.msra.mxu0 0.0
        %945 = vmatprep.subr.mxu0 0.0
        %946 = vmatpush1.msra.mxu0 0.0
        %947 = vmatprep.subr.mxu0 0.0
        %948 = vmatpush1.msra.mxu0 0.0
        %949 = vmatprep.subr.mxu0 0.0
        %950 = vmatpush1.msra.mxu0 0.0
        %951 = vmatprep.mubr.f32.mxu0 0.0
        %952 = vmatmul.mubr.f32.gmra.mrb[0].mxu0 %v876
        %v953 = vpop.f32.mrb[0].mxu0
        %v954 = vadd.f32 0.0, %v953
        %v955 = vpop.f32.mrb[0].mxu0
        %v956 = vadd.f32 0.0, %v955
        %957 = vmatprep.mubr.f32.mxu0 0.0
        %958 = vmatmul.mubr.f32.gmra.mrb[0].mxu0 %v879
        %v959 = vpop.f32.mrb[0].mxu0
        %v960 = vadd.f32 0.0, %v959
        %v961 = vpop.f32.mrb[0].mxu0
        %v962 = vadd.f32 0.0, %v961
        %963 = vmatprep.mubr.f32.mxu0 0.0
        %964 = vmatmul.mubr.f32.gmra.mrb[0].mxu0 %v882
        %v965 = vpop.f32.mrb[0].mxu0
        %v966 = vadd.f32 0.0, %v965
        %v967 = vpop.f32.mrb[0].mxu0
        %v968 = vadd.f32 0.0, %v967
        %969 = vmatprep.mubr.f32.mxu0 0.0
        %970 = vmatmul.mubr.f32.gmra.mrb[0].mxu0 %v885
        %v971 = vpop.f32.mrb[0].mxu0
        %v972 = vadd.f32 0.0, %v971
        %v973 = vpop.f32.mrb[0].mxu0
        %v974 = vadd.f32 0.0, %v973
        %975 = vdwg.mxu0
        %v976 = vadd.f32 %v739, %v954
        %v977 = vadd.f32 %v741, %v956
        %v978 = vadd.f32 %v745, %v960
        %v979 = vadd.f32 %v747, %v962
        %v980 = vadd.f32 %v751, %v966
        %v981 = vadd.f32 %v753, %v968
        %v982 = vadd.f32 %v757, %v972
        %v983 = vadd.f32 %v759, %v974
        %v984 = vld [vmem:[%s2] sm:$0x3]
        %v986 = vlaneseq
        %v987 = vshrl.u32 %v986, 7
        %v988 = vsub.s32 0, %v987
        %v989 = vrot.slane %v984, %v988
        %v990 = vlaneseq
        %v991 = vshrl.u32 %v990, 7
        %v992 = vsub.s32 1, %v991
        %v993 = vrot.slane %v984, %v992
        %v996 = vadd.f32 %v976, %v989
        %v997 = vadd.f32 %v977, %v993
        %v998 = vadd.f32 %v978, %v989
        %v999 = vadd.f32 %v979, %v993
        %v1000 = vadd.f32 %v980, %v989
        %v1001 = vadd.f32 %v981, %v993
        %v1002 = vadd.f32 %v982, %v989
        %v1003 = vadd.f32 %v983, %v993
        %v1004 = vmax.f32 %v996, 0.0
        %v1005 = vmax.f32 %v997, 0.0
        %v1006 = vmax.f32 %v998, 0.0
        %v1007 = vmax.f32 %v999, 0.0
        %v1008 = vmax.f32 %v1000, 0.0
        %v1009 = vmax.f32 %v1001, 0.0
        %v1010 = vmax.f32 %v1002, 0.0
        %v1011 = vmax.f32 %v1003, 0.0
        %1012 = vmatprep.subr.mxu0 %v1005
        %1013 = vmatpush1.msra.mxu0 %v1004
        %1014 = vmatprep.subr.mxu0 %v1007
        %1015 = vmatpush1.msra.mxu0 %v1006
        %1016 = vmatprep.subr.mxu0 %v1009
        %1017 = vmatpush1.msra.mxu0 %v1008
        %1018 = vmatprep.subr.mxu0 %v1011
        %1019 = vmatpush1.msra.mxu0 %v1010
        %1020 = vmatprep.subr.mxu0 0.0
        %1021 = vmatpush1.msra.mxu0 0.0
        %1022 = vmatprep.subr.mxu0 0.0
        %1023 = vmatpush1.msra.mxu0 0.0
        %1024 = vmatprep.subr.mxu0 0.0
        %1025 = vmatpush1.msra.mxu0 0.0
        %1026 = vmatprep.subr.mxu0 0.0
        %1027 = vmatpush1.msra.mxu0 0.0
        %1028 = vmatprep.subr.mxu0 0.0
        %1029 = vmatpush1.msra.mxu0 0.0
        %1030 = vmatprep.subr.mxu0 0.0
        %1031 = vmatpush1.msra.mxu0 0.0
        %1032 = vmatprep.subr.mxu0 0.0
        %1033 = vmatpush1.msra.mxu0 0.0
        %1034 = vmatprep.subr.mxu0 0.0
        %1035 = vmatpush1.msra.mxu0 0.0
        %1036 = vmatprep.subr.mxu0 0.0
        %1037 = vmatpush1.msra.mxu0 0.0
        %1038 = vmatprep.subr.mxu0 0.0
        %1039 = vmatpush1.msra.mxu0 0.0
        %1040 = vmatprep.subr.mxu0 0.0
        %1041 = vmatpush1.msra.mxu0 0.0
        %1042 = vmatprep.subr.mxu0 0.0
        %1043 = vmatpush1.msra.mxu0 0.0
        %1044 = vmatprep.subr.mxu0 0.0
        %1045 = vmatpush1.msra.mxu0 0.0
        %1046 = vmatprep.subr.mxu0 0.0
        %1047 = vmatpush1.msra.mxu0 0.0
        %1048 = vmatprep.subr.mxu0 0.0
        %1049 = vmatpush1.msra.mxu0 0.0
        %1050 = vmatprep.subr.mxu0 0.0
        %1051 = vmatpush1.msra.mxu0 0.0
        %1052 = vmatprep.subr.mxu0 0.0
        %1053 = vmatpush1.msra.mxu0 0.0
        %1054 = vmatprep.subr.mxu0 0.0
        %1055 = vmatpush1.msra.mxu0 0.0
        %1056 = vmatprep.subr.mxu0 0.0
        %1057 = vmatpush1.msra.mxu0 0.0
        %1058 = vmatprep.subr.mxu0 0.0
        %1059 = vmatpush1.msra.mxu0 0.0
        %1060 = vmatprep.subr.mxu0 0.0
        %1061 = vmatpush1.msra.mxu0 0.0
        %1062 = vmatprep.subr.mxu0 0.0
        %1063 = vmatpush1.msra.mxu0 0.0
        %1064 = vmatprep.subr.mxu0 0.0
        %1065 = vmatpush1.msra.mxu0 0.0
        %1066 = vmatprep.subr.mxu0 0.0
        %1067 = vmatpush1.msra.mxu0 0.0
        %1068 = vmatprep.subr.mxu0 0.0
        %1069 = vmatpush1.msra.mxu0 0.0
        %1070 = vmatprep.subr.mxu0 0.0
        %1071 = vmatpush1.msra.mxu0 0.0
        %1072 = vmatprep.subr.mxu0 0.0
        %1073 = vmatpush1.msra.mxu0 0.0
        %1074 = vmatprep.subr.mxu0 0.0
        %1075 = vmatpush1.msra.mxu0 0.0
        %1076 = vmatprep.mubr.f32.mxu0 0.0
        %1077 = vmatmul.mubr.f32.gmra.mrb[0].mxu0 %v572
        %v1078 = vpop.f32.mrb[0].mxu0
        %v1079 = vadd.f32 0.0, %v1078
        %v1080 = vpop.f32.mrb[0].mxu0
        %v1081 = vadd.f32 0.0, %v1080
        %1082 = vmatprep.mubr.f32.mxu0 0.0
        %1083 = vmatmul.mubr.f32.gmra.mrb[0].mxu0 %v575
        %v1084 = vpop.f32.mrb[0].mxu0
        %v1085 = vadd.f32 0.0, %v1084
        %v1086 = vpop.f32.mrb[0].mxu0
        %v1087 = vadd.f32 0.0, %v1086
        %1088 = vmatprep.mubr.f32.mxu0 0.0
        %1089 = vmatmul.mubr.f32.gmra.mrb[0].mxu0 %v578
        %v1090 = vpop.f32.mrb[0].mxu0
        %v1091 = vadd.f32 0.0, %v1090
        %v1092 = vpop.f32.mrb[0].mxu0
        %v1093 = vadd.f32 0.0, %v1092
        %1094 = vmatprep.mubr.f32.mxu0 0.0
        %1095 = vmatmul.mubr.f32.gmra.mrb[0].mxu0 %v581
        %v1096 = vpop.f32.mrb[0].mxu0
        %v1097 = vadd.f32 0.0, %v1096
        %v1098 = vpop.f32.mrb[0].mxu0
        %v1099 = vadd.f32 0.0, %v1098
        %1100 = vdwg.mxu0
        %v1101 = vmax.f32 %v1004, %v1079
        %v1102 = vmax.f32 %v1005, %v1081
        %v1103 = vmax.f32 %v1006, %v1085
        %v1104 = vmax.f32 %v1007, %v1087
        %v1105 = vmax.f32 %v1008, %v1091
        %v1106 = vmax.f32 %v1009, %v1093
        %v1107 = vmax.f32 %v1010, %v1097
        %v1108 = vmax.f32 %v1011, %v1099
        %v1109 = vadd.s32 %v389, 32
        %v1110 = vadd.s32 %v389, 40
        %v1111 = vadd.s32 %v389, 48
        %v1112 = vadd.s32 %v389, 56
        %v1113 = vadd.s32 %v389, 64
        %v1114 = vadd.s32 %v389, 72
        %v1115 = vadd.s32 %v389, 80
        %v1116 = vadd.s32 %v389, 88
        %v1117 = vadd.s32 %v389, 96
        %v1118 = vadd.s32 %v389, 104
        %v1119 = vadd.s32 %v389, 112
        %v1120 = vadd.s32 %v389, 120
        %v1121 = vadd.s32 %v389, 128
        %v1122 = vadd.s32 %v389, 136
        %v1123 = vadd.s32 %v389, 144
        %v1124 = vadd.s32 %v389, 152
        %v1125 = vadd.s32 %v389, 160
        %v1126 = vadd.s32 %v389, 168
        %v1127 = vadd.s32 %v389, 176
        %v1128 = vadd.s32 %v389, 184
        %v1129 = vadd.s32 %v389, 192
        %v1130 = vadd.s32 %v389, 200
        %v1131 = vadd.s32 %v389, 208
        %v1132 = vadd.s32 %v389, 216
        %v1133 = vadd.s32 %v389, 224
        %v1134 = vadd.s32 %v389, 232
        %v1135 = vadd.s32 %v394, 128
        %v1136 = vadd.s32 %v394, 8
        %v1137 = vadd.s32 %v1135, 8
        %vm1138 = vcmp.eq.s32.totalorder %v389, %v1136
        %vm1139 = vcmp.eq.s32.totalorder %v389, %v1137
        %vm1140 = vcmp.eq.s32.totalorder %v390, %v1136
        %vm1141 = vcmp.eq.s32.totalorder %v390, %v1137
        %vm1142 = vcmp.eq.s32.totalorder %v391, %v1136
        %vm1143 = vcmp.eq.s32.totalorder %v391, %v1137
        %vm1144 = vcmp.eq.s32.totalorder %v392, %v1136
        %vm1145 = vcmp.eq.s32.totalorder %v392, %v1137
        %vm1146 = vcmp.eq.s32.totalorder %v1109, %v1136
        %vm1147 = vcmp.eq.s32.totalorder %v1109, %v1137
        %vm1148 = vcmp.eq.s32.totalorder %v1110, %v1136
        %vm1149 = vcmp.eq.s32.totalorder %v1110, %v1137
        %vm1150 = vcmp.eq.s32.totalorder %v1111, %v1136
        %vm1151 = vcmp.eq.s32.totalorder %v1111, %v1137
        %vm1152 = vcmp.eq.s32.totalorder %v1112, %v1136
        %vm1153 = vcmp.eq.s32.totalorder %v1112, %v1137
        %vm1154 = vcmp.eq.s32.totalorder %v1113, %v1136
        %vm1155 = vcmp.eq.s32.totalorder %v1113, %v1137
        %vm1156 = vcmp.eq.s32.totalorder %v1114, %v1136
        %vm1157 = vcmp.eq.s32.totalorder %v1114, %v1137
        %vm1158 = vcmp.eq.s32.totalorder %v1115, %v1136
        %vm1159 = vcmp.eq.s32.totalorder %v1115, %v1137
        %vm1160 = vcmp.eq.s32.totalorder %v1116, %v1136
        %vm1161 = vcmp.eq.s32.totalorder %v1116, %v1137
        %vm1162 = vcmp.eq.s32.totalorder %v1117, %v1136
        %vm1163 = vcmp.eq.s32.totalorder %v1117, %v1137
        %vm1164 = vcmp.eq.s32.totalorder %v1118, %v1136
        %vm1165 = vcmp.eq.s32.totalorder %v1118, %v1137
        %vm1166 = vcmp.eq.s32.totalorder %v1119, %v1136
        %vm1167 = vcmp.eq.s32.totalorder %v1119, %v1137
        %vm1168 = vcmp.eq.s32.totalorder %v1120, %v1136
        %vm1169 = vcmp.eq.s32.totalorder %v1120, %v1137
        %vm1170 = vcmp.eq.s32.totalorder %v1121, %v1136
        %vm1171 = vcmp.eq.s32.totalorder %v1121, %v1137
        %vm1172 = vcmp.eq.s32.totalorder %v1122, %v1136
        %vm1173 = vcmp.eq.s32.totalorder %v1122, %v1137
        %vm1174 = vcmp.eq.s32.totalorder %v1123, %v1136
        %vm1175 = vcmp.eq.s32.totalorder %v1123, %v1137
        %vm1176 = vcmp.eq.s32.totalorder %v1124, %v1136
        %vm1177 = vcmp.eq.s32.totalorder %v1124, %v1137
        %vm1178 = vcmp.eq.s32.totalorder %v1125, %v1136
        %vm1179 = vcmp.eq.s32.totalorder %v1125, %v1137
        %vm1180 = vcmp.eq.s32.totalorder %v1126, %v1136
        %vm1181 = vcmp.eq.s32.totalorder %v1126, %v1137
        %vm1182 = vcmp.eq.s32.totalorder %v1127, %v1136
        %vm1183 = vcmp.eq.s32.totalorder %v1127, %v1137
        %vm1184 = vcmp.eq.s32.totalorder %v1128, %v1136
        %vm1185 = vcmp.eq.s32.totalorder %v1128, %v1137
        %vm1186 = vcmp.eq.s32.totalorder %v1129, %v1136
        %vm1187 = vcmp.eq.s32.totalorder %v1129, %v1137
        %vm1188 = vcmp.eq.s32.totalorder %v1130, %v1136
        %vm1189 = vcmp.eq.s32.totalorder %v1130, %v1137
        %vm1190 = vcmp.eq.s32.totalorder %v1131, %v1136
        %vm1191 = vcmp.eq.s32.totalorder %v1131, %v1137
        %vm1192 = vcmp.eq.s32.totalorder %v1132, %v1136
        %vm1193 = vcmp.eq.s32.totalorder %v1132, %v1137
        %vm1194 = vcmp.eq.s32.totalorder %v1133, %v1136
        %vm1195 = vcmp.eq.s32.totalorder %v1133, %v1137
        %vm1196 = vcmp.eq.s32.totalorder %v1134, %v1136
        %vm1197 = vcmp.eq.s32.totalorder %v1134, %v1137
        %v1198 = vsel %vm1138, 1.0, 0.0
        %v1199 = vsel %vm1139, 1.0, 0.0
        %v1200 = vsel %vm1140, 1.0, 0.0
        %v1201 = vsel %vm1141, 1.0, 0.0
        %v1202 = vsel %vm1142, 1.0, 0.0
        %v1203 = vsel %vm1143, 1.0, 0.0
        %v1204 = vsel %vm1144, 1.0, 0.0
        %v1205 = vsel %vm1145, 1.0, 0.0
        %v1206 = vsel %vm1146, 1.0, 0.0
        %v1207 = vsel %vm1147, 1.0, 0.0
        %v1208 = vsel %vm1148, 1.0, 0.0
        %v1209 = vsel %vm1149, 1.0, 0.0
        %v1210 = vsel %vm1150, 1.0, 0.0
        %v1211 = vsel %vm1151, 1.0, 0.0
        %v1212 = vsel %vm1152, 1.0, 0.0
        %v1213 = vsel %vm1153, 1.0, 0.0
        %v1214 = vsel %vm1154, 1.0, 0.0
        %v1215 = vsel %vm1155, 1.0, 0.0
        %v1216 = vsel %vm1156, 1.0, 0.0
        %v1217 = vsel %vm1157, 1.0, 0.0
        %v1218 = vsel %vm1158, 1.0, 0.0
        %v1219 = vsel %vm1159, 1.0, 0.0
        %v1220 = vsel %vm1160, 1.0, 0.0
        %v1221 = vsel %vm1161, 1.0, 0.0
        %v1222 = vsel %vm1162, 1.0, 0.0
        %v1223 = vsel %vm1163, 1.0, 0.0
        %v1224 = vsel %vm1164, 1.0, 0.0
        %v1225 = vsel %vm1165, 1.0, 0.0
        %v1226 = vsel %vm1166, 1.0, 0.0
        %v1227 = vsel %vm1167, 1.0, 0.0
        %v1228 = vsel %vm1168, 1.0, 0.0
        %v1229 = vsel %vm1169, 1.0, 0.0
        %v1230 = vsel %vm1170, 1.0, 0.0
        %v1231 = vsel %vm1171, 1.0, 0.0
        %v1232 = vsel %vm1172, 1.0, 0.0
        %v1233 = vsel %vm1173, 1.0, 0.0
        %v1234 = vsel %vm1174, 1.0, 0.0
        %v1235 = vsel %vm1175, 1.0, 0.0
        %v1236 = vsel %vm1176, 1.0, 0.0
        %v1237 = vsel %vm1177, 1.0, 0.0
        %v1238 = vsel %vm1178, 1.0, 0.0
        %v1239 = vsel %vm1179, 1.0, 0.0
        %v1240 = vsel %vm1180, 1.0, 0.0
        %v1241 = vsel %vm1181, 1.0, 0.0
        %v1242 = vsel %vm1182, 1.0, 0.0
        %v1243 = vsel %vm1183, 1.0, 0.0
        %v1244 = vsel %vm1184, 1.0, 0.0
        %v1245 = vsel %vm1185, 1.0, 0.0
        %v1246 = vsel %vm1186, 1.0, 0.0
        %v1247 = vsel %vm1187, 1.0, 0.0
        %v1248 = vsel %vm1188, 1.0, 0.0
        %v1249 = vsel %vm1189, 1.0, 0.0
        %v1250 = vsel %vm1190, 1.0, 0.0
        %v1251 = vsel %vm1191, 1.0, 0.0
        %v1252 = vsel %vm1192, 1.0, 0.0
        %v1253 = vsel %vm1193, 1.0, 0.0
        %v1254 = vsel %vm1194, 1.0, 0.0
        %v1255 = vsel %vm1195, 1.0, 0.0
        %v1256 = vsel %vm1196, 1.0, 0.0
        %v1257 = vsel %vm1197, 1.0, 0.0
        %vm1258 = vcmask 916480
        %v1260 = vsel %vm1258, %v1102, 0
        %v1263 = vsel %vm1258, %v1104, 0
        %v1266 = vsel %vm1258, %v1106, 0
        %v1269 = vsel %vm1258, %v1108, 0
        %1271 = vmatprep.subr.mxu0 %v1199
        %1272 = vmatpush1.msra.mxu0 %v1198
        %1273 = vmatprep.subr.mxu0 %v1201
        %1274 = vmatpush1.msra.mxu0 %v1200
        %1275 = vmatprep.subr.mxu0 %v1203
        %1276 = vmatpush1.msra.mxu0 %v1202
        %1277 = vmatprep.subr.mxu0 %v1205
        %1278 = vmatpush1.msra.mxu0 %v1204
        %1279 = vmatprep.subr.mxu0 %v1207
        %1280 = vmatpush1.msra.mxu0 %v1206
        %1281 = vmatprep.subr.mxu0 %v1209
        %1282 = vmatpush1.msra.mxu0 %v1208
        %1283 = vmatprep.subr.mxu0 %v1211
        %1284 = vmatpush1.msra.mxu0 %v1210
        %1285 = vmatprep.subr.mxu0 %v1213
        %1286 = vmatpush1.msra.mxu0 %v1212
        %1287 = vmatprep.subr.mxu0 %v1215
        %1288 = vmatpush1.msra.mxu0 %v1214
        %1289 = vmatprep.subr.mxu0 %v1217
        %1290 = vmatpush1.msra.mxu0 %v1216
        %1291 = vmatprep.subr.mxu0 %v1219
        %1292 = vmatpush1.msra.mxu0 %v1218
        %1293 = vmatprep.subr.mxu0 %v1221
        %1294 = vmatpush1.msra.mxu0 %v1220
        %1295 = vmatprep.subr.mxu0 %v1223
        %1296 = vmatpush1.msra.mxu0 %v1222
        %1297 = vmatprep.subr.mxu0 %v1225
        %1298 = vmatpush1.msra.mxu0 %v1224
        %1299 = vmatprep.subr.mxu0 %v1227
        %1300 = vmatpush1.msra.mxu0 %v1226
        %1301 = vmatprep.subr.mxu0 %v1229
        %1302 = vmatpush1.msra.mxu0 %v1228
        %1303 = vmatprep.subr.mxu0 %v1231
        %1304 = vmatpush1.msra.mxu0 %v1230
        %1305 = vmatprep.subr.mxu0 %v1233
        %1306 = vmatpush1.msra.mxu0 %v1232
        %1307 = vmatprep.subr.mxu0 %v1235
        %1308 = vmatpush1.msra.mxu0 %v1234
        %1309 = vmatprep.subr.mxu0 %v1237
        %1310 = vmatpush1.msra.mxu0 %v1236
        %1311 = vmatprep.subr.mxu0 %v1239
        %1312 = vmatpush1.msra.mxu0 %v1238
        %1313 = vmatprep.subr.mxu0 %v1241
        %1314 = vmatpush1.msra.mxu0 %v1240
        %1315 = vmatprep.subr.mxu0 %v1243
        %1316 = vmatpush1.msra.mxu0 %v1242
        %1317 = vmatprep.subr.mxu0 %v1245
        %1318 = vmatpush1.msra.mxu0 %v1244
        %1319 = vmatprep.subr.mxu0 %v1247
        %1320 = vmatpush1.msra.mxu0 %v1246
        %1321 = vmatprep.subr.mxu0 %v1249
        %1322 = vmatpush1.msra.mxu0 %v1248
        %1323 = vmatprep.subr.mxu0 %v1251
        %1324 = vmatpush1.msra.mxu0 %v1250
        %1325 = vmatprep.subr.mxu0 %v1253
        %1326 = vmatpush1.msra.mxu0 %v1252
        %1327 = vmatprep.subr.mxu0 %v1255
        %1328 = vmatpush1.msra.mxu0 %v1254
        %1329 = vmatprep.subr.mxu0 %v1257
        %1330 = vmatpush1.msra.mxu0 %v1256
        %1331 = vmatprep.subr.mxu0 0.0
        %1332 = vmatpush1.msra.mxu0 0.0
        %1333 = vmatprep.subr.mxu0 0.0
        %1334 = vmatpush1.msra.mxu0 0.0
        %1335 = vmatprep.mubr.f32.mxu0 %v1260
        %1336 = vmatmul.mubr.f32.gmra.mrb[0].mxu0 %v1101
        %v1337 = vpop.f32.mrb[0].mxu0
        %v1338 = vadd.f32 0.0, %v1337
        %v1339 = vpop.f32.mrb[0].mxu0
        %v1340 = vadd.f32 0.0, %v1339
        %1341 = vmatprep.mubr.f32.mxu0 %v1263
        %1342 = vmatmul.mubr.f32.gmra.mrb[0].mxu0 %v1103
        %v1343 = vpop.f32.mrb[0].mxu0
        %v1344 = vadd.f32 0.0, %v1343
        %v1345 = vpop.f32.mrb[0].mxu0
        %v1346 = vadd.f32 0.0, %v1345
        %1347 = vmatprep.mubr.f32.mxu0 %v1266
        %1348 = vmatmul.mubr.f32.gmra.mrb[0].mxu0 %v1105
        %v1349 = vpop.f32.mrb[0].mxu0
        %v1350 = vadd.f32 0.0, %v1349
        %v1351 = vpop.f32.mrb[0].mxu0
        %v1352 = vadd.f32 0.0, %v1351
        %1353 = vmatprep.mubr.f32.mxu0 %v1269
        %1354 = vmatmul.mubr.f32.gmra.mrb[0].mxu0 %v1107
        %v1355 = vpop.f32.mrb[0].mxu0
        %v1356 = vadd.f32 0.0, %v1355
        %v1357 = vpop.f32.mrb[0].mxu0
        %v1358 = vadd.f32 0.0, %v1357
        %1359 = vdwg.mxu0
        %v1360 = vmax.f32 %v1101, %v1338
        %v1361 = vmax.f32 %v1102, %v1340
        %v1362 = vmax.f32 %v1103, %v1344
        %v1363 = vmax.f32 %v1104, %v1346
        %v1364 = vmax.f32 %v1105, %v1350
        %v1365 = vmax.f32 %v1106, %v1352
        %v1366 = vmax.f32 %v1107, %v1356
        %v1367 = vmax.f32 %v1108, %v1358
        %v1368 = vmul.u32 %v389, 2
        %v1369 = vmul.u32 %v390, 2
        %vm1370 = vcmp.eq.s32.totalorder %v394, %v1368
        %vm1371 = vcmp.eq.s32.totalorder %v394, %v1369
        %v1372 = vsel %vm1370, 1.0, 0.0
        %v1373 = vsel %vm1371, 1.0, 0.0
        %v1375 = vsel %vm570, %v1372, 0
        %v1378 = vsel %vm570, %v1373, 0
        %1380 = vmatprep.subr.mxu0 %v1361
        %1381 = vmatpush1.msra.mxu0 %v1360
        %1382 = vmatprep.subr.mxu0 %v1363
        %1383 = vmatpush1.msra.mxu0 %v1362
        %1384 = vmatprep.subr.mxu0 %v1365
        %1385 = vmatpush1.msra.mxu0 %v1364
        %1386 = vmatprep.subr.mxu0 %v1367
        %1387 = vmatpush1.msra.mxu0 %v1366
        %1388 = vmatprep.subr.mxu0 0.0
        %1389 = vmatpush1.msra.mxu0 0.0
        %1390 = vmatprep.subr.mxu0 0.0
        %1391 = vmatpush1.msra.mxu0 0.0
        %1392 = vmatprep.subr.mxu0 0.0
        %1393 = vmatpush1.msra.mxu0 0.0
        %1394 = vmatprep.subr.mxu0 0.0
        %1395 = vmatpush1.msra.mxu0 0.0
        %1396 = vmatprep.subr.mxu0 0.0
        %1397 = vmatpush1.msra.mxu0 0.0
        %1398 = vmatprep.subr.mxu0 0.0
        %1399 = vmatpush1.msra.mxu0 0.0
        %1400 = vmatprep.subr.mxu0 0.0
        %1401 = vmatpush1.msra.mxu0 0.0
        %1402 = vmatprep.subr.mxu0 0.0
        %1403 = vmatpush1.msra.mxu0 0.0
        %1404 = vmatprep.subr.mxu0 0.0
        %1405 = vmatpush1.msra.mxu0 0.0
        %1406 = vmatprep.subr.mxu0 0.0
        %1407 = vmatpush1.msra.mxu0 0.0
        %1408 = vmatprep.subr.mxu0 0.0
        %1409 = vmatpush1.msra.mxu0 0.0
        %1410 = vmatprep.subr.mxu0 0.0
        %1411 = vmatpush1.msra.mxu0 0.0
        %1412 = vmatprep.subr.mxu0 0.0
        %1413 = vmatpush1.msra.mxu0 0.0
        %1414 = vmatprep.subr.mxu0 0.0
        %1415 = vmatpush1.msra.mxu0 0.0
        %1416 = vmatprep.subr.mxu0 0.0
        %1417 = vmatpush1.msra.mxu0 0.0
        %1418 = vmatprep.subr.mxu0 0.0
        %1419 = vmatpush1.msra.mxu0 0.0
        %1420 = vmatprep.subr.mxu0 0.0
        %1421 = vmatpush1.msra.mxu0 0.0
        %1422 = vmatprep.subr.mxu0 0.0
        %1423 = vmatpush1.msra.mxu0 0.0
        %1424 = vmatprep.subr.mxu0 0.0
        %1425 = vmatpush1.msra.mxu0 0.0
        %1426 = vmatprep.subr.mxu0 0.0
        %1427 = vmatpush1.msra.mxu0 0.0
        %1428 = vmatprep.subr.mxu0 0.0
        %1429 = vmatpush1.msra.mxu0 0.0
        %1430 = vmatprep.subr.mxu0 0.0
        %1431 = vmatpush1.msra.mxu0 0.0
        %1432 = vmatprep.subr.mxu0 0.0
        %1433 = vmatpush1.msra.mxu0 0.0
        %1434 = vmatprep.subr.mxu0 0.0
        %1435 = vmatpush1.msra.mxu0 0.0
        %1436 = vmatprep.subr.mxu0 0.0
        %1437 = vmatpush1.msra.mxu0 0.0
        %1438 = vmatprep.subr.mxu0 0.0
        %1439 = vmatpush1.msra.mxu0 0.0
        %1440 = vmatprep.subr.mxu0 0.0
        %1441 = vmatpush1.msra.mxu0 0.0
        %1442 = vmatprep.subr.mxu0 0.0
        %1443 = vmatpush1.msra.mxu0 0.0
        %1444 = vmatprep.mubr.f32.mxu0 0.0
        %1445 = vmatmul.mubr.f32.gmra.mrb[0].mxu0 %v1375
        %v1446 = vpop.f32.mrb[0].mxu0
        %v1447 = vadd.f32 0.0, %v1446
        %v1448 = vpop.f32.mrb[0].mxu0
        %v1449 = vadd.f32 0.0, %v1448
        %1450 = vmatprep.mubr.f32.mxu0 0.0
        %1451 = vmatmul.mubr.f32.gmra.mrb[0].mxu0 %v1378
        %v1452 = vpop.f32.mrb[0].mxu0
        %v1453 = vadd.f32 0.0, %v1452
        %v1454 = vpop.f32.mrb[0].mxu0
        %v1455 = vadd.f32 0.0, %v1454
        %1456 = vdwg.mxu0
        %v1457 = vld [vmem:[%s3] sm:$0xff]
        %v1458 = vld [vmem:[%s3 + $0x8] sm:$0xff]
        %v1459 = vld [vmem:[%s3 + $0x10] sm:$0xff]
        %v1460 = vld [vmem:[%s3 + $0x18] sm:$0xff]
        %v1461 = vld [vmem:[%s3 + $0x20] sm:$0xff]
        %v1462 = vld [vmem:[%s3 + $0x28] sm:$0xff]
        %v1463 = vld [vmem:[%s3 + $0x30] sm:$0xff]
        %v1464 = vld [vmem:[%s3 + $0x38] sm:$0xff]
        %v1465 = vld [vmem:[%s3 + $0x40] sm:$0xff]
        %v1466 = vld [vmem:[%s3 + $0x48] sm:$0xff]
        %v1467 = vld [vmem:[%s3 + $0x50] sm:$0xff]
        %v1468 = vld [vmem:[%s3 + $0x58] sm:$0xff]
        %v1469 = vld [vmem:[%s3 + $0x60] sm:$0xff]
        %v1470 = vld [vmem:[%s3 + $0x68] sm:$0xff]
        %v1471 = vld [vmem:[%s3 + $0x70] sm:$0xff]
        %v1472 = vld [vmem:[%s3 + $0x78] sm:$0xff]
        %v1473 = vld [vmem:[%s3 + $0x80] sm:$0xff]
        %v1474 = vld [vmem:[%s3 + $0x88] sm:$0xff]
        %v1475 = vld [vmem:[%s3 + $0x90] sm:$0xff]
        %v1476 = vld [vmem:[%s3 + $0x98] sm:$0xff]
        %v1477 = vld [vmem:[%s3 + $0xa0] sm:$0xff]
        %v1478 = vld [vmem:[%s3 + $0xa8] sm:$0xff]
        %v1479 = vld [vmem:[%s3 + $0xb0] sm:$0xff]
        %v1480 = vld [vmem:[%s3 + $0xb8] sm:$0xff]
        %v1481 = vld [vmem:[%s3 + $0xc0] sm:$0xff]
        %v1482 = vld [vmem:[%s3 + $0xc8] sm:$0xff]
        %v1483 = vld [vmem:[%s3 + $0xd0] sm:$0xff]
        %v1484 = vld [vmem:[%s3 + $0xd8] sm:$0xff]
        %v1485 = vld [vmem:[%s3 + $0xe0] sm:$0xff]
        %v1486 = vld [vmem:[%s3 + $0xe8] sm:$0xff]
        %v1487 = vld [vmem:[%s3 + $0xf0] sm:$0xff]
        %v1488 = vld [vmem:[%s3 + $0xf8] sm:$0xff]
        %v1489 = vld [vmem:[%s3 + $0x100] sm:$0xff]
        %v1490 = vld [vmem:[%s3 + $0x108] sm:$0xff]
        %v1491 = vld [vmem:[%s3 + $0x110] sm:$0xff]
        %v1492 = vld [vmem:[%s3 + $0x118] sm:$0xff]
        %v1493 = vld [vmem:[%s3 + $0x120] sm:$0xff]
        %v1494 = vld [vmem:[%s3 + $0x128] sm:$0xff]
        %v1495 = vld [vmem:[%s3 + $0x130] sm:$0xff]
        %v1496 = vld [vmem:[%s3 + $0x138] sm:$0xff]
        %v1497 = vld [vmem:[%s3 + $0x140] sm:$0xff]
        %v1498 = vld [vmem:[%s3 + $0x148] sm:$0xff]
        %v1499 = vld [vmem:[%s3 + $0x150] sm:$0xff]
        %v1500 = vld [vmem:[%s3 + $0x158] sm:$0xff]
        %v1501 = vld [vmem:[%s3 + $0x160] sm:$0xff]
        %v1502 = vld [vmem:[%s3 + $0x168] sm:$0xff]
        %v1503 = vld [vmem:[%s3 + $0x170] sm:$0xff]
        %v1504 = vld [vmem:[%s3 + $0x178] sm:$0xff]
        %v1505 = vld [vmem:[%s3 + $0x180] sm:$0xff]
        %v1506 = vld [vmem:[%s3 + $0x188] sm:$0xff]
        %v1507 = vld [vmem:[%s3 + $0x190] sm:$0xff]
        %v1508 = vld [vmem:[%s3 + $0x198] sm:$0xff]
        %v1509 = vld [vmem:[%s3 + $0x1a0] sm:$0xff]
        %v1510 = vld [vmem:[%s3 + $0x1a8] sm:$0xff]
        %v1511 = vld [vmem:[%s3 + $0x1b0] sm:$0xff]
        %v1512 = vld [vmem:[%s3 + $0x1b8] sm:$0xff]
        %v1513 = vld [vmem:[%s3 + $0x1c0] sm:$0xff]
        %v1514 = vld [vmem:[%s3 + $0x1c8] sm:$0xff]
        %v1515 = vld [vmem:[%s3 + $0x1d0] sm:$0xff]
        %v1516 = vld [vmem:[%s3 + $0x1d8] sm:$0xff]
        %s1517 = scalar_lea.vmem %s3, 480
        %v1518 = vld [vmem:[%s1517] sm:$0xff]
        %v1519 = vld [vmem:[%s1517 + $0x8] sm:$0xff]
        %v1520 = vld [vmem:[%s1517 + $0x10] sm:$0xff]
        %v1521 = vld [vmem:[%s1517 + $0x18] sm:$0xff]
        %v1522 = vld [vmem:[%s1517 + $0x20] sm:$0xff]
        %v1523 = vld [vmem:[%s1517 + $0x28] sm:$0xff]
        %v1524 = vld [vmem:[%s1517 + $0x30] sm:$0xff]
        %v1525 = vld [vmem:[%s1517 + $0x38] sm:$0xff]
        %v1526 = vld [vmem:[%s1517 + $0x40] sm:$0xff]
        %v1527 = vld [vmem:[%s1517 + $0x48] sm:$0xff]
        %v1528 = vld [vmem:[%s1517 + $0x50] sm:$0xff]
        %v1529 = vld [vmem:[%s1517 + $0x58] sm:$0xff]
        %v1530 = vld [vmem:[%s1517 + $0x60] sm:$0xff]
        %v1531 = vld [vmem:[%s1517 + $0x68] sm:$0xff]
        %v1532 = vld [vmem:[%s1517 + $0x70] sm:$0xff]
        %v1533 = vld [vmem:[%s1517 + $0x78] sm:$0xff]
        %v1534 = vld [vmem:[%s1517 + $0x80] sm:$0xff]
        %v1535 = vld [vmem:[%s1517 + $0x88] sm:$0xff]
        %v1536 = vld [vmem:[%s1517 + $0x90] sm:$0xff]
        %v1537 = vld [vmem:[%s1517 + $0x98] sm:$0xff]
        %v1538 = vld [vmem:[%s1517 + $0xa0] sm:$0xff]
        %v1539 = vld [vmem:[%s1517 + $0xa8] sm:$0xff]
        %v1540 = vld [vmem:[%s1517 + $0xb0] sm:$0xff]
        %v1541 = vld [vmem:[%s1517 + $0xb8] sm:$0xff]
        %v1542 = vld [vmem:[%s1517 + $0xc0] sm:$0xff]
        %v1543 = vld [vmem:[%s1517 + $0xc8] sm:$0xff]
        %v1544 = vld [vmem:[%s1517 + $0xd0] sm:$0xff]
        %v1545 = vld [vmem:[%s1517 + $0xd8] sm:$0xff]
        %v1546 = vld [vmem:[%s1517 + $0xe0] sm:$0xff]
        %v1547 = vld [vmem:[%s1517 + $0xe8] sm:$0xff]
        %v1548 = vld [vmem:[%s1517 + $0xf0] sm:$0xff]
        %v1549 = vld [vmem:[%s1517 + $0xf8] sm:$0xff]
        %v1550 = vld [vmem:[%s1517 + $0x100] sm:$0xff]
        %v1551 = vld [vmem:[%s1517 + $0x108] sm:$0xff]
        %v1552 = vld [vmem:[%s1517 + $0x110] sm:$0xff]
        %v1553 = vld [vmem:[%s1517 + $0x118] sm:$0xff]
        %v1554 = vld [vmem:[%s1517 + $0x120] sm:$0xff]
        %v1555 = vld [vmem:[%s1517 + $0x128] sm:$0xff]
        %v1556 = vld [vmem:[%s1517 + $0x130] sm:$0xff]
        %v1557 = vld [vmem:[%s1517 + $0x138] sm:$0xff]
        %v1558 = vld [vmem:[%s1517 + $0x140] sm:$0xff]
        %v1559 = vld [vmem:[%s1517 + $0x148] sm:$0xff]
        %v1560 = vld [vmem:[%s1517 + $0x150] sm:$0xff]
        %v1561 = vld [vmem:[%s1517 + $0x158] sm:$0xff]
        %v1562 = vld [vmem:[%s1517 + $0x160] sm:$0xff]
        %v1563 = vld [vmem:[%s1517 + $0x168] sm:$0xff]
        %v1564 = vld [vmem:[%s1517 + $0x170] sm:$0xff]
        %v1565 = vld [vmem:[%s1517 + $0x178] sm:$0xff]
        %v1566 = vld [vmem:[%s1517 + $0x180] sm:$0xff]
        %v1567 = vld [vmem:[%s1517 + $0x188] sm:$0xff]
        %v1568 = vld [vmem:[%s1517 + $0x190] sm:$0xff]
        %v1569 = vld [vmem:[%s1517 + $0x198] sm:$0xff]
        %v1570 = vld [vmem:[%s1517 + $0x1a0] sm:$0xff]
        %v1571 = vld [vmem:[%s1517 + $0x1a8] sm:$0xff]
        %v1572 = vld [vmem:[%s1517 + $0x1b0] sm:$0xff]
        %v1573 = vld [vmem:[%s1517 + $0x1b8] sm:$0xff]
        %v1574 = vld [vmem:[%s1517 + $0x1c0] sm:$0xff]
        %v1575 = vld [vmem:[%s1517 + $0x1c8] sm:$0xff]
        %v1576 = vld [vmem:[%s1517 + $0x1d0] sm:$0xff]
        %v1577 = vld [vmem:[%s1517 + $0x1d8] sm:$0xff]
        %v1579 = vsel %vm1258, %v1449, 0
        %v1582 = vsel %vm1258, %v1455, 0
        %1584 = vmatprep.subr.mxu0 %v1519
        %1585 = vmatpush1.msra.mxu0 %v1518
        %1586 = vmatprep.subr.mxu0 %v1521
        %1587 = vmatpush1.msra.mxu0 %v1520
        %1588 = vmatprep.subr.mxu0 %v1523
        %1589 = vmatpush1.msra.mxu0 %v1522
        %1590 = vmatprep.subr.mxu0 %v1525
        %1591 = vmatpush1.msra.mxu0 %v1524
        %1592 = vmatprep.subr.mxu0 %v1527
        %1593 = vmatpush1.msra.mxu0 %v1526
        %1594 = vmatprep.subr.mxu0 %v1529
        %1595 = vmatpush1.msra.mxu0 %v1528
        %1596 = vmatprep.subr.mxu0 %v1531
        %1597 = vmatpush1.msra.mxu0 %v1530
        %1598 = vmatprep.subr.mxu0 %v1533
        %1599 = vmatpush1.msra.mxu0 %v1532
        %1600 = vmatprep.subr.mxu0 %v1535
        %1601 = vmatpush1.msra.mxu0 %v1534
        %1602 = vmatprep.subr.mxu0 %v1537
        %1603 = vmatpush1.msra.mxu0 %v1536
        %1604 = vmatprep.subr.mxu0 %v1539
        %1605 = vmatpush1.msra.mxu0 %v1538
        %1606 = vmatprep.subr.mxu0 %v1541
        %1607 = vmatpush1.msra.mxu0 %v1540
        %1608 = vmatprep.subr.mxu0 %v1543
        %1609 = vmatpush1.msra.mxu0 %v1542
        %1610 = vmatprep.subr.mxu0 %v1545
        %1611 = vmatpush1.msra.mxu0 %v1544
        %1612 = vmatprep.subr.mxu0 %v1547
        %1613 = vmatpush1.msra.mxu0 %v1546
        %1614 = vmatprep.subr.mxu0 %v1549
        %1615 = vmatpush1.msra.mxu0 %v1548
        %1616 = vmatprep.subr.mxu0 %v1551
        %1617 = vmatpush1.msra.mxu0 %v1550
        %1618 = vmatprep.subr.mxu0 %v1553
        %1619 = vmatpush1.msra.mxu0 %v1552
        %1620 = vmatprep.subr.mxu0 %v1555
        %1621 = vmatpush1.msra.mxu0 %v1554
        %1622 = vmatprep.subr.mxu0 %v1557
        %1623 = vmatpush1.msra.mxu0 %v1556
        %1624 = vmatprep.subr.mxu0 %v1559
        %1625 = vmatpush1.msra.mxu0 %v1558
        %1626 = vmatprep.subr.mxu0 %v1561
        %1627 = vmatpush1.msra.mxu0 %v1560
        %1628 = vmatprep.subr.mxu0 %v1563
        %1629 = vmatpush1.msra.mxu0 %v1562
        %1630 = vmatprep.subr.mxu0 %v1565
        %1631 = vmatpush1.msra.mxu0 %v1564
        %1632 = vmatprep.subr.mxu0 %v1567
        %1633 = vmatpush1.msra.mxu0 %v1566
        %1634 = vmatprep.subr.mxu0 %v1569
        %1635 = vmatpush1.msra.mxu0 %v1568
        %1636 = vmatprep.subr.mxu0 %v1571
        %1637 = vmatpush1.msra.mxu0 %v1570
        %1638 = vmatprep.subr.mxu0 %v1573
        %1639 = vmatpush1.msra.mxu0 %v1572
        %1640 = vmatprep.subr.mxu0 %v1575
        %1641 = vmatpush1.msra.mxu0 %v1574
        %1642 = vmatprep.subr.mxu0 %v1577
        %1643 = vmatpush1.msra.mxu0 %v1576
        %1644 = vmatprep.subr.mxu0 0.0
        %1645 = vmatpush1.msra.mxu0 0.0
        %1646 = vmatprep.subr.mxu0 0.0
        %1647 = vmatpush1.msra.mxu0 0.0
        %1648 = vmatprep.mubr.f32.mxu0 %v1579
        %1649 = vmatmul.mubr.f32.gmra.mrb[0].mxu0 %v1447
        %v1650 = vpop.f32.mrb[0].mxu0
        %v1651 = vadd.f32 0.0, %v1650
        %v1652 = vpop.f32.mrb[0].mxu0
        %v1653 = vadd.f32 0.0, %v1652
        %1654 = vmatprep.mubr.f32.mxu0 %v1582
        %1655 = vmatmul.mubr.f32.gmra.mrb[0].mxu0 %v1453
        %v1656 = vpop.f32.mrb[0].mxu0
        %v1657 = vadd.f32 0.0, %v1656
        %v1658 = vpop.f32.mrb[0].mxu0
        %v1659 = vadd.f32 0.0, %v1658
        %1660 = vdwg.mxu0
        %vm1661 = vcmask 121856
        %v1662 = vsel %vm1661, %v403, 0
        %v1664 = vsel %vm1661, %v404, 0
        %vm1666 = vcmask 1046528
        %v1668 = vsel %vm1666, %v1657, 0
        %v1671 = vsel %vm1666, %v1659, 0
        %1673 = vmatprep.subr.mxu0 %v1653
        %1674 = vmatpush1.msra.mxu0 %v1651
        %1675 = vmatprep.subr.mxu0 %v1671
        %1676 = vmatpush1.msra.mxu0 %v1668
        %1677 = vmatprep.subr.mxu0 0.0
        %1678 = vmatpush1.msra.mxu0 0.0
        %1679 = vmatprep.subr.mxu0 0.0
        %1680 = vmatpush1.msra.mxu0 0.0
        %1681 = vmatprep.subr.mxu0 0.0
        %1682 = vmatpush1.msra.mxu0 0.0
        %1683 = vmatprep.subr.mxu0 0.0
        %1684 = vmatpush1.msra.mxu0 0.0
        %1685 = vmatprep.subr.mxu0 0.0
        %1686 = vmatpush1.msra.mxu0 0.0
        %1687 = vmatprep.subr.mxu0 0.0
        %1688 = vmatpush1.msra.mxu0 0.0
        %1689 = vmatprep.subr.mxu0 0.0
        %1690 = vmatpush1.msra.mxu0 0.0
        %1691 = vmatprep.subr.mxu0 0.0
        %1692 = vmatpush1.msra.mxu0 0.0
        %1693 = vmatprep.subr.mxu0 0.0
        %1694 = vmatpush1.msra.mxu0 0.0
        %1695 = vmatprep.subr.mxu0 0.0
        %1696 = vmatpush1.msra.mxu0 0.0
        %1697 = vmatprep.subr.mxu0 0.0
        %1698 = vmatpush1.msra.mxu0 0.0
        %1699 = vmatprep.subr.mxu0 0.0
        %1700 = vmatpush1.msra.mxu0 0.0
        %1701 = vmatprep.subr.mxu0 0.0
        %1702 = vmatpush1.msra.mxu0 0.0
        %1703 = vmatprep.subr.mxu0 0.0
        %1704 = vmatpush1.msra.mxu0 0.0
        %1705 = vmatprep.subr.mxu0 0.0
        %1706 = vmatpush1.msra.mxu0 0.0
        %1707 = vmatprep.subr.mxu0 0.0
        %1708 = vmatpush1.msra.mxu0 0.0
        %1709 = vmatprep.subr.mxu0 0.0
        %1710 = vmatpush1.msra.mxu0 0.0
        %1711 = vmatprep.subr.mxu0 0.0
        %1712 = vmatpush1.msra.mxu0 0.0
        %1713 = vmatprep.subr.mxu0 0.0
        %1714 = vmatpush1.msra.mxu0 0.0
        %1715 = vmatprep.subr.mxu0 0.0
        %1716 = vmatpush1.msra.mxu0 0.0
        %1717 = vmatprep.subr.mxu0 0.0
        %1718 = vmatpush1.msra.mxu0 0.0
        %1719 = vmatprep.subr.mxu0 0.0
        %1720 = vmatpush1.msra.mxu0 0.0
        %1721 = vmatprep.subr.mxu0 0.0
        %1722 = vmatpush1.msra.mxu0 0.0
        %1723 = vmatprep.subr.mxu0 0.0
        %1724 = vmatpush1.msra.mxu0 0.0
        %1725 = vmatprep.subr.mxu0 0.0
        %1726 = vmatpush1.msra.mxu0 0.0
        %1727 = vmatprep.subr.mxu0 0.0
        %1728 = vmatpush1.msra.mxu0 0.0
        %1729 = vmatprep.subr.mxu0 0.0
        %1730 = vmatpush1.msra.mxu0 0.0
        %1731 = vmatprep.subr.mxu0 0.0
        %1732 = vmatpush1.msra.mxu0 0.0
        %1733 = vmatprep.subr.mxu0 0.0
        %1734 = vmatpush1.msra.mxu0 0.0
        %1735 = vmatprep.subr.mxu0 0.0
        %1736 = vmatpush1.msra.mxu0 0.0
        %1737 = vmatprep.mubr.f32.mxu0 0.0
        %1738 = vmatmul.mubr.f32.gmra.mrb[0].mxu0 %v1662
        %v1739 = vpop.f32.mrb[0].mxu0
        %v1740 = vadd.f32 0.0, %v1739
        %v1741 = vpop.f32.mrb[0].mxu0
        %v1742 = vadd.f32 0.0, %v1741
        %1743 = vmatprep.mubr.f32.mxu0 0.0
        %1744 = vmatmul.mubr.f32.gmra.mrb[0].mxu0 %v1664
        %v1745 = vpop.f32.mrb[0].mxu0
        %v1746 = vadd.f32 0.0, %v1745
        %v1747 = vpop.f32.mrb[0].mxu0
        %v1748 = vadd.f32 0.0, %v1747
        %1749 = vdwg.mxu0
        %1750 = vmatprep.subr.mxu0 %v1458
        %1751 = vmatpush1.msra.mxu0 %v1457
        %1752 = vmatprep.subr.mxu0 %v1460
        %1753 = vmatpush1.msra.mxu0 %v1459
        %1754 = vmatprep.subr.mxu0 %v1462
        %1755 = vmatpush1.msra.mxu0 %v1461
        %1756 = vmatprep.subr.mxu0 %v1464
        %1757 = vmatpush1.msra.mxu0 %v1463
        %1758 = vmatprep.subr.mxu0 %v1466
        %1759 = vmatpush1.msra.mxu0 %v1465
        %1760 = vmatprep.subr.mxu0 %v1468
        %1761 = vmatpush1.msra.mxu0 %v1467
        %1762 = vmatprep.subr.mxu0 %v1470
        %1763 = vmatpush1.msra.mxu0 %v1469
        %1764 = vmatprep.subr.mxu0 %v1472
        %1765 = vmatpush1.msra.mxu0 %v1471
        %1766 = vmatprep.subr.mxu0 %v1474
        %1767 = vmatpush1.msra.mxu0 %v1473
        %1768 = vmatprep.subr.mxu0 %v1476
        %1769 = vmatpush1.msra.mxu0 %v1475
        %1770 = vmatprep.subr.mxu0 %v1478
        %1771 = vmatpush1.msra.mxu0 %v1477
        %1772 = vmatprep.subr.mxu0 %v1480
        %1773 = vmatpush1.msra.mxu0 %v1479
        %1774 = vmatprep.subr.mxu0 %v1482
        %1775 = vmatpush1.msra.mxu0 %v1481
        %1776 = vmatprep.subr.mxu0 %v1484
        %1777 = vmatpush1.msra.mxu0 %v1483
        %1778 = vmatprep.subr.mxu0 %v1486
        %1779 = vmatpush1.msra.mxu0 %v1485
        %1780 = vmatprep.subr.mxu0 %v1488
        %1781 = vmatpush1.msra.mxu0 %v1487
        %1782 = vmatprep.subr.mxu0 %v1490
        %1783 = vmatpush1.msra.mxu0 %v1489
        %1784 = vmatprep.subr.mxu0 %v1492
        %1785 = vmatpush1.msra.mxu0 %v1491
        %1786 = vmatprep.subr.mxu0 %v1494
        %1787 = vmatpush1.msra.mxu0 %v1493
        %1788 = vmatprep.subr.mxu0 %v1496
        %1789 = vmatpush1.msra.mxu0 %v1495
        %1790 = vmatprep.subr.mxu0 %v1498
        %1791 = vmatpush1.msra.mxu0 %v1497
        %1792 = vmatprep.subr.mxu0 %v1500
        %1793 = vmatpush1.msra.mxu0 %v1499
        %1794 = vmatprep.subr.mxu0 %v1502
        %1795 = vmatpush1.msra.mxu0 %v1501
        %1796 = vmatprep.subr.mxu0 %v1504
        %1797 = vmatpush1.msra.mxu0 %v1503
        %1798 = vmatprep.subr.mxu0 %v1506
        %1799 = vmatpush1.msra.mxu0 %v1505
        %1800 = vmatprep.subr.mxu0 %v1508
        %1801 = vmatpush1.msra.mxu0 %v1507
        %1802 = vmatprep.subr.mxu0 %v1510
        %1803 = vmatpush1.msra.mxu0 %v1509
        %1804 = vmatprep.subr.mxu0 %v1512
        %1805 = vmatpush1.msra.mxu0 %v1511
        %1806 = vmatprep.subr.mxu0 %v1514
        %1807 = vmatpush1.msra.mxu0 %v1513
        %1808 = vmatprep.subr.mxu0 %v1516
        %1809 = vmatpush1.msra.mxu0 %v1515
        %1810 = vmatprep.subr.mxu0 0.0
        %1811 = vmatpush1.msra.mxu0 0.0
        %1812 = vmatprep.subr.mxu0 0.0
        %1813 = vmatpush1.msra.mxu0 0.0
        %1814 = vmatprep.mubr.f32.mxu0 %v1579
        %1815 = vmatmul.mubr.f32.gmra.mrb[0].mxu0 %v1447
        %v1816 = vpop.f32.mrb[0].mxu0
        %v1817 = vadd.f32 %v1740, %v1816
        %v1818 = vpop.f32.mrb[0].mxu0
        %v1819 = vadd.f32 %v1742, %v1818
        %1820 = vmatprep.mubr.f32.mxu0 %v1582
        %1821 = vmatmul.mubr.f32.gmra.mrb[0].mxu0 %v1453
        %v1822 = vpop.f32.mrb[0].mxu0
        %v1823 = vadd.f32 %v1746, %v1822
        %v1824 = vpop.f32.mrb[0].mxu0
        %v1825 = vadd.f32 %v1748, %v1824
        %1826 = vdwg.mxu0
        %s1827 = scalar_lea.vmem %s3, 960
        %v1828 = vld [vmem:[%s1827] sm:$0xff]
        %v1829 = vld [vmem:[%s1827 + $0x8] sm:$0xff]
        %v1830 = vld [vmem:[%s1827 + $0x10] sm:$0xff]
        %v1831 = vld [vmem:[%s1827 + $0x18] sm:$0xff]
        %v1832 = vld [vmem:[%s1827 + $0x20] sm:$0xff]
        %v1833 = vld [vmem:[%s1827 + $0x28] sm:$0xff]
        %v1834 = vld [vmem:[%s1827 + $0x30] sm:$0xff]
        %v1835 = vld [vmem:[%s1827 + $0x38] sm:$0xff]
        %v1836 = vld [vmem:[%s1827 + $0x40] sm:$0xff]
        %v1837 = vld [vmem:[%s1827 + $0x48] sm:$0xff]
        %v1838 = vld [vmem:[%s1827 + $0x50] sm:$0xff]
        %v1839 = vld [vmem:[%s1827 + $0x58] sm:$0xff]
        %v1840 = vld [vmem:[%s1827 + $0x60] sm:$0xff]
        %v1841 = vld [vmem:[%s1827 + $0x68] sm:$0xff]
        %v1842 = vld [vmem:[%s1827 + $0x70] sm:$0xff]
        %v1843 = vld [vmem:[%s1827 + $0x78] sm:$0xff]
        %v1844 = vld [vmem:[%s1827 + $0x80] sm:$0xff]
        %v1845 = vld [vmem:[%s1827 + $0x88] sm:$0xff]
        %v1846 = vld [vmem:[%s1827 + $0x90] sm:$0xff]
        %v1847 = vld [vmem:[%s1827 + $0x98] sm:$0xff]
        %v1848 = vld [vmem:[%s1827 + $0xa0] sm:$0xff]
        %v1849 = vld [vmem:[%s1827 + $0xa8] sm:$0xff]
        %v1850 = vld [vmem:[%s1827 + $0xb0] sm:$0xff]
        %v1851 = vld [vmem:[%s1827 + $0xb8] sm:$0xff]
        %v1852 = vld [vmem:[%s1827 + $0xc0] sm:$0xff]
        %v1853 = vld [vmem:[%s1827 + $0xc8] sm:$0xff]
        %v1854 = vld [vmem:[%s1827 + $0xd0] sm:$0xff]
        %v1855 = vld [vmem:[%s1827 + $0xd8] sm:$0xff]
        %v1856 = vld [vmem:[%s1827 + $0xe0] sm:$0xff]
        %v1857 = vld [vmem:[%s1827 + $0xe8] sm:$0xff]
        %v1858 = vld [vmem:[%s1827 + $0xf0] sm:$0xff]
        %v1859 = vld [vmem:[%s1827 + $0xf8] sm:$0xff]
        %v1860 = vld [vmem:[%s1827 + $0x100] sm:$0xff]
        %v1861 = vld [vmem:[%s1827 + $0x108] sm:$0xff]
        %v1862 = vld [vmem:[%s1827 + $0x110] sm:$0xff]
        %v1863 = vld [vmem:[%s1827 + $0x118] sm:$0xff]
        %v1864 = vld [vmem:[%s1827 + $0x120] sm:$0xff]
        %v1865 = vld [vmem:[%s1827 + $0x128] sm:$0xff]
        %v1866 = vld [vmem:[%s1827 + $0x130] sm:$0xff]
        %v1867 = vld [vmem:[%s1827 + $0x138] sm:$0xff]
        %v1868 = vld [vmem:[%s1827 + $0x140] sm:$0xff]
        %v1869 = vld [vmem:[%s1827 + $0x148] sm:$0xff]
        %v1870 = vld [vmem:[%s1827 + $0x150] sm:$0xff]
        %v1871 = vld [vmem:[%s1827 + $0x158] sm:$0xff]
        %v1872 = vld [vmem:[%s1827 + $0x160] sm:$0xff]
        %v1873 = vld [vmem:[%s1827 + $0x168] sm:$0xff]
        %v1874 = vld [vmem:[%s1827 + $0x170] sm:$0xff]
        %v1875 = vld [vmem:[%s1827 + $0x178] sm:$0xff]
        %v1876 = vld [vmem:[%s1827 + $0x180] sm:$0xff]
        %v1877 = vld [vmem:[%s1827 + $0x188] sm:$0xff]
        %v1878 = vld [vmem:[%s1827 + $0x190] sm:$0xff]
        %v1879 = vld [vmem:[%s1827 + $0x198] sm:$0xff]
        %v1880 = vld [vmem:[%s1827 + $0x1a0] sm:$0xff]
        %v1881 = vld [vmem:[%s1827 + $0x1a8] sm:$0xff]
        %v1882 = vld [vmem:[%s1827 + $0x1b0] sm:$0xff]
        %v1883 = vld [vmem:[%s1827 + $0x1b8] sm:$0xff]
        %v1884 = vld [vmem:[%s1827 + $0x1c0] sm:$0xff]
        %v1885 = vld [vmem:[%s1827 + $0x1c8] sm:$0xff]
        %v1886 = vld [vmem:[%s1827 + $0x1d0] sm:$0xff]
        %v1887 = vld [vmem:[%s1827 + $0x1d8] sm:$0xff]
        %1888 = vmatprep.subr.mxu0 %v1829
        %1889 = vmatpush1.msra.mxu0 %v1828
        %1890 = vmatprep.subr.mxu0 %v1831
        %1891 = vmatpush1.msra.mxu0 %v1830
        %1892 = vmatprep.subr.mxu0 %v1833
        %1893 = vmatpush1.msra.mxu0 %v1832
        %1894 = vmatprep.subr.mxu0 %v1835
        %1895 = vmatpush1.msra.mxu0 %v1834
        %1896 = vmatprep.subr.mxu0 %v1837
        %1897 = vmatpush1.msra.mxu0 %v1836
        %1898 = vmatprep.subr.mxu0 %v1839
        %1899 = vmatpush1.msra.mxu0 %v1838
        %1900 = vmatprep.subr.mxu0 %v1841
        %1901 = vmatpush1.msra.mxu0 %v1840
        %1902 = vmatprep.subr.mxu0 %v1843
        %1903 = vmatpush1.msra.mxu0 %v1842
        %1904 = vmatprep.subr.mxu0 %v1845
        %1905 = vmatpush1.msra.mxu0 %v1844
        %1906 = vmatprep.subr.mxu0 %v1847
        %1907 = vmatpush1.msra.mxu0 %v1846
        %1908 = vmatprep.subr.mxu0 %v1849
        %1909 = vmatpush1.msra.mxu0 %v1848
        %1910 = vmatprep.subr.mxu0 %v1851
        %1911 = vmatpush1.msra.mxu0 %v1850
        %1912 = vmatprep.subr.mxu0 %v1853
        %1913 = vmatpush1.msra.mxu0 %v1852
        %1914 = vmatprep.subr.mxu0 %v1855
        %1915 = vmatpush1.msra.mxu0 %v1854
        %1916 = vmatprep.subr.mxu0 %v1857
        %1917 = vmatpush1.msra.mxu0 %v1856
        %1918 = vmatprep.subr.mxu0 %v1859
        %1919 = vmatpush1.msra.mxu0 %v1858
        %1920 = vmatprep.subr.mxu0 %v1861
        %1921 = vmatpush1.msra.mxu0 %v1860
        %1922 = vmatprep.subr.mxu0 %v1863
        %1923 = vmatpush1.msra.mxu0 %v1862
        %1924 = vmatprep.subr.mxu0 %v1865
        %1925 = vmatpush1.msra.mxu0 %v1864
        %1926 = vmatprep.subr.mxu0 %v1867
        %1927 = vmatpush1.msra.mxu0 %v1866
        %1928 = vmatprep.subr.mxu0 %v1869
        %1929 = vmatpush1.msra.mxu0 %v1868
        %1930 = vmatprep.subr.mxu0 %v1871
        %1931 = vmatpush1.msra.mxu0 %v1870
        %1932 = vmatprep.subr.mxu0 %v1873
        %1933 = vmatpush1.msra.mxu0 %v1872
        %1934 = vmatprep.subr.mxu0 %v1875
        %1935 = vmatpush1.msra.mxu0 %v1874
        %1936 = vmatprep.subr.mxu0 %v1877
        %1937 = vmatpush1.msra.mxu0 %v1876
        %1938 = vmatprep.subr.mxu0 %v1879
        %1939 = vmatpush1.msra.mxu0 %v1878
        %1940 = vmatprep.subr.mxu0 %v1881
        %1941 = vmatpush1.msra.mxu0 %v1880
        %1942 = vmatprep.subr.mxu0 %v1883
        %1943 = vmatpush1.msra.mxu0 %v1882
        %1944 = vmatprep.subr.mxu0 %v1885
        %1945 = vmatpush1.msra.mxu0 %v1884
        %1946 = vmatprep.subr.mxu0 %v1887
        %1947 = vmatpush1.msra.mxu0 %v1886
        %1948 = vmatprep.subr.mxu0 0.0
        %1949 = vmatpush1.msra.mxu0 0.0
        %1950 = vmatprep.subr.mxu0 0.0
        %1951 = vmatpush1.msra.mxu0 0.0
        %1952 = vmatprep.mubr.f32.mxu0 %v1579
        %1953 = vmatmul.mubr.f32.gmra.mrb[0].mxu0 %v1447
        %v1954 = vpop.f32.mrb[0].mxu0
        %v1955 = vadd.f32 0.0, %v1954
        %v1956 = vpop.f32.mrb[0].mxu0
        %v1957 = vadd.f32 0.0, %v1956
        %1958 = vmatprep.mubr.f32.mxu0 %v1582
        %1959 = vmatmul.mubr.f32.gmra.mrb[0].mxu0 %v1453
        %v1960 = vpop.f32.mrb[0].mxu0
        %v1961 = vadd.f32 0.0, %v1960
        %v1962 = vpop.f32.mrb[0].mxu0
        %v1963 = vadd.f32 0.0, %v1962
        %1964 = vdwg.mxu0
        %v1965 = vsel %vm1661, %v415, 0
        %v1967 = vsel %vm1661, %v416, 0
        %v1970 = vsel %vm1666, %v1961, 0
        %v1973 = vsel %vm1666, %v1963, 0
        %1975 = vmatprep.subr.mxu0 %v1957
        %1976 = vmatpush1.msra.mxu0 %v1955
        %1977 = vmatprep.subr.mxu0 %v1973
        %1978 = vmatpush1.msra.mxu0 %v1970
        %1979 = vmatprep.subr.mxu0 0.0
        %1980 = vmatpush1.msra.mxu0 0.0
        %1981 = vmatprep.subr.mxu0 0.0
        %1982 = vmatpush1.msra.mxu0 0.0
        %1983 = vmatprep.subr.mxu0 0.0
        %1984 = vmatpush1.msra.mxu0 0.0
        %1985 = vmatprep.subr.mxu0 0.0
        %1986 = vmatpush1.msra.mxu0 0.0
        %1987 = vmatprep.subr.mxu0 0.0
        %1988 = vmatpush1.msra.mxu0 0.0
        %1989 = vmatprep.subr.mxu0 0.0
        %1990 = vmatpush1.msra.mxu0 0.0
        %1991 = vmatprep.subr.mxu0 0.0
        %1992 = vmatpush1.msra.mxu0 0.0
        %1993 = vmatprep.subr.mxu0 0.0
        %1994 = vmatpush1.msra.mxu0 0.0
        %1995 = vmatprep.subr.mxu0 0.0
        %1996 = vmatpush1.msra.mxu0 0.0
        %1997 = vmatprep.subr.mxu0 0.0
        %1998 = vmatpush1.msra.mxu0 0.0
        %1999 = vmatprep.subr.mxu0 0.0
        %2000 = vmatpush1.msra.mxu0 0.0
        %2001 = vmatprep.subr.mxu0 0.0
        %2002 = vmatpush1.msra.mxu0 0.0
        %2003 = vmatprep.subr.mxu0 0.0
        %2004 = vmatpush1.msra.mxu0 0.0
        %2005 = vmatprep.subr.mxu0 0.0
        %2006 = vmatpush1.msra.mxu0 0.0
        %2007 = vmatprep.subr.mxu0 0.0
        %2008 = vmatpush1.msra.mxu0 0.0
        %2009 = vmatprep.subr.mxu0 0.0
        %2010 = vmatpush1.msra.mxu0 0.0
        %2011 = vmatprep.subr.mxu0 0.0
        %2012 = vmatpush1.msra.mxu0 0.0
        %2013 = vmatprep.subr.mxu0 0.0
        %2014 = vmatpush1.msra.mxu0 0.0
        %2015 = vmatprep.subr.mxu0 0.0
        %2016 = vmatpush1.msra.mxu0 0.0
        %2017 = vmatprep.subr.mxu0 0.0
        %2018 = vmatpush1.msra.mxu0 0.0
        %2019 = vmatprep.subr.mxu0 0.0
        %2020 = vmatpush1.msra.mxu0 0.0
        %2021 = vmatprep.subr.mxu0 0.0
        %2022 = vmatpush1.msra.mxu0 0.0
        %2023 = vmatprep.subr.mxu0 0.0
        %2024 = vmatpush1.msra.mxu0 0.0
        %2025 = vmatprep.subr.mxu0 0.0
        %2026 = vmatpush1.msra.mxu0 0.0
        %2027 = vmatprep.subr.mxu0 0.0
        %2028 = vmatpush1.msra.mxu0 0.0
        %2029 = vmatprep.subr.mxu0 0.0
        %2030 = vmatpush1.msra.mxu0 0.0
        %2031 = vmatprep.subr.mxu0 0.0
        %2032 = vmatpush1.msra.mxu0 0.0
        %2033 = vmatprep.subr.mxu0 0.0
        %2034 = vmatpush1.msra.mxu0 0.0
        %2035 = vmatprep.subr.mxu0 0.0
        %2036 = vmatpush1.msra.mxu0 0.0
        %2037 = vmatprep.subr.mxu0 0.0
        %2038 = vmatpush1.msra.mxu0 0.0
        %2039 = vmatprep.mubr.f32.mxu0 0.0
        %2040 = vmatmul.mubr.f32.gmra.mrb[0].mxu0 %v1965
        %v2041 = vpop.f32.mrb[0].mxu0
        %v2042 = vadd.f32 0.0, %v2041
        %v2043 = vpop.f32.mrb[0].mxu0
        %v2044 = vadd.f32 0.0, %v2043
        %2045 = vmatprep.mubr.f32.mxu0 0.0
        %2046 = vmatmul.mubr.f32.gmra.mrb[0].mxu0 %v1967
        %v2047 = vpop.f32.mrb[0].mxu0
        %v2048 = vadd.f32 0.0, %v2047
        %v2049 = vpop.f32.mrb[0].mxu0
        %v2050 = vadd.f32 0.0, %v2049
        %2051 = vdwg.mxu0
        %v2052 = vadd.f32 %v1817, %v2042
        %v2053 = vadd.f32 %v1819, %v2044
        %v2054 = vadd.f32 %v1823, %v2048
        %v2055 = vadd.f32 %v1825, %v2050
        %v2056 = vld [vmem:[%s4] sm:$0x3]
        %v2058 = vlaneseq
        %v2059 = vshrl.u32 %v2058, 7
        %v2060 = vsub.s32 0, %v2059
        %v2061 = vrot.slane %v2056, %v2060
        %v2062 = vlaneseq
        %v2063 = vshrl.u32 %v2062, 7
        %v2064 = vsub.s32 1, %v2063
        %v2065 = vrot.slane %v2056, %v2064
        %v2068 = vadd.f32 %v2052, %v2061
        %v2069 = vadd.f32 %v2053, %v2065
        %v2070 = vadd.f32 %v2054, %v2061
        %v2071 = vadd.f32 %v2055, %v2065
        %v2072 = vmax.f32 %v2068, 0.0
        %v2073 = vmax.f32 %v2069, 0.0
        %v2074 = vmax.f32 %v2070, 0.0
        %v2075 = vmax.f32 %v2071, 0.0
        %v2077 = vsel %vm1666, %v2074, 0
        %v2080 = vsel %vm1666, %v2075, 0
        %2082 = vmatprep.subr.mxu0 %v2073
        %2083 = vmatpush1.msra.mxu0 %v2072
        %2084 = vmatprep.subr.mxu0 %v2080
        %2085 = vmatpush1.msra.mxu0 %v2077
        %2086 = vmatprep.subr.mxu0 0.0
        %2087 = vmatpush1.msra.mxu0 0.0
        %2088 = vmatprep.subr.mxu0 0.0
        %2089 = vmatpush1.msra.mxu0 0.0
        %2090 = vmatprep.subr.mxu0 0.0
        %2091 = vmatpush1.msra.mxu0 0.0
        %2092 = vmatprep.subr.mxu0 0.0
        %2093 = vmatpush1.msra.mxu0 0.0
        %2094 = vmatprep.subr.mxu0 0.0
        %2095 = vmatpush1.msra.mxu0 0.0
        %2096 = vmatprep.subr.mxu0 0.0
        %2097 = vmatpush1.msra.mxu0 0.0
        %2098 = vmatprep.subr.mxu0 0.0
        %2099 = vmatpush1.msra.mxu0 0.0
        %2100 = vmatprep.subr.mxu0 0.0
        %2101 = vmatpush1.msra.mxu0 0.0
        %2102 = vmatprep.subr.mxu0 0.0
        %2103 = vmatpush1.msra.mxu0 0.0
        %2104 = vmatprep.subr.mxu0 0.0
        %2105 = vmatpush1.msra.mxu0 0.0
        %2106 = vmatprep.subr.mxu0 0.0
        %2107 = vmatpush1.msra.mxu0 0.0
        %2108 = vmatprep.subr.mxu0 0.0
        %2109 = vmatpush1.msra.mxu0 0.0
        %2110 = vmatprep.subr.mxu0 0.0
        %2111 = vmatpush1.msra.mxu0 0.0
        %2112 = vmatprep.subr.mxu0 0.0
        %2113 = vmatpush1.msra.mxu0 0.0
        %2114 = vmatprep.subr.mxu0 0.0
        %2115 = vmatpush1.msra.mxu0 0.0
        %2116 = vmatprep.subr.mxu0 0.0
        %2117 = vmatpush1.msra.mxu0 0.0
        %2118 = vmatprep.subr.mxu0 0.0
        %2119 = vmatpush1.msra.mxu0 0.0
        %2120 = vmatprep.subr.mxu0 0.0
        %2121 = vmatpush1.msra.mxu0 0.0
        %2122 = vmatprep.subr.mxu0 0.0
        %2123 = vmatpush1.msra.mxu0 0.0
        %2124 = vmatprep.subr.mxu0 0.0
        %2125 = vmatpush1.msra.mxu0 0.0
        %2126 = vmatprep.subr.mxu0 0.0
        %2127 = vmatpush1.msra.mxu0 0.0
        %2128 = vmatprep.subr.mxu0 0.0
        %2129 = vmatpush1.msra.mxu0 0.0
        %2130 = vmatprep.subr.mxu0 0.0
        %2131 = vmatpush1.msra.mxu0 0.0
        %2132 = vmatprep.subr.mxu0 0.0
        %2133 = vmatpush1.msra.mxu0 0.0
        %2134 = vmatprep.subr.mxu0 0.0
        %2135 = vmatpush1.msra.mxu0 0.0
        %2136 = vmatprep.subr.mxu0 0.0
        %2137 = vmatpush1.msra.mxu0 0.0
        %2138 = vmatprep.subr.mxu0 0.0
        %2139 = vmatpush1.msra.mxu0 0.0
        %2140 = vmatprep.subr.mxu0 0.0
        %2141 = vmatpush1.msra.mxu0 0.0
        %2142 = vmatprep.subr.mxu0 0.0
        %2143 = vmatpush1.msra.mxu0 0.0
        %2144 = vmatprep.subr.mxu0 0.0
        %2145 = vmatpush1.msra.mxu0 0.0
        %2146 = vmatprep.mubr.f32.mxu0 0.0
        %2147 = vmatmul.mubr.f32.gmra.mrb[0].mxu0 %v1662
        %v2148 = vpop.f32.mrb[0].mxu0
        %v2149 = vadd.f32 0.0, %v2148
        %v2150 = vpop.f32.mrb[0].mxu0
        %v2151 = vadd.f32 0.0, %v2150
        %2152 = vmatprep.mubr.f32.mxu0 0.0
        %2153 = vmatmul.mubr.f32.gmra.mrb[0].mxu0 %v1664
        %v2154 = vpop.f32.mrb[0].mxu0
        %v2155 = vadd.f32 0.0, %v2154
        %v2156 = vpop.f32.mrb[0].mxu0
        %v2157 = vadd.f32 0.0, %v2156
        %2158 = vdwg.mxu0
        %v2159 = vmax.f32 %v2072, %v2149
        %v2160 = vmax.f32 %v2073, %v2151
        %v2161 = vmax.f32 %v2074, %v2155
        %v2162 = vmax.f32 %v2075, %v2157
        %v2163 = vadd.s32 %v394, 16
        %v2164 = vadd.s32 %v1135, 16
        %vm2165 = vcmp.eq.s32.totalorder %v389, %v2163
        %vm2166 = vcmp.eq.s32.totalorder %v389, %v2164
        %vm2167 = vcmp.eq.s32.totalorder %v390, %v2163
        %vm2168 = vcmp.eq.s32.totalorder %v390, %v2164
        %vm2169 = vcmp.eq.s32.totalorder %v391, %v2163
        %vm2170 = vcmp.eq.s32.totalorder %v391, %v2164
        %vm2171 = vcmp.eq.s32.totalorder %v392, %v2163
        %vm2172 = vcmp.eq.s32.totalorder %v392, %v2164
        %vm2173 = vcmp.eq.s32.totalorder %v1109, %v2163
        %vm2174 = vcmp.eq.s32.totalorder %v1109, %v2164
        %vm2175 = vcmp.eq.s32.totalorder %v1110, %v2163
        %vm2176 = vcmp.eq.s32.totalorder %v1110, %v2164
        %vm2177 = vcmp.eq.s32.totalorder %v1111, %v2163
        %vm2178 = vcmp.eq.s32.totalorder %v1111, %v2164
        %vm2179 = vcmp.eq.s32.totalorder %v1112, %v2163
        %vm2180 = vcmp.eq.s32.totalorder %v1112, %v2164
        %vm2181 = vcmp.eq.s32.totalorder %v1113, %v2163
        %vm2182 = vcmp.eq.s32.totalorder %v1113, %v2164
        %vm2183 = vcmp.eq.s32.totalorder %v1114, %v2163
        %vm2184 = vcmp.eq.s32.totalorder %v1114, %v2164
        %vm2185 = vcmp.eq.s32.totalorder %v1115, %v2163
        %vm2186 = vcmp.eq.s32.totalorder %v1115, %v2164
        %vm2187 = vcmp.eq.s32.totalorder %v1116, %v2163
        %vm2188 = vcmp.eq.s32.totalorder %v1116, %v2164
        %vm2189 = vcmp.eq.s32.totalorder %v1117, %v2163
        %vm2190 = vcmp.eq.s32.totalorder %v1117, %v2164
        %vm2191 = vcmp.eq.s32.totalorder %v1118, %v2163
        %vm2192 = vcmp.eq.s32.totalorder %v1118, %v2164
        %vm2193 = vcmp.eq.s32.totalorder %v1119, %v2163
        %vm2194 = vcmp.eq.s32.totalorder %v1119, %v2164
        %vm2195 = vcmp.eq.s32.totalorder %v1120, %v2163
        %vm2196 = vcmp.eq.s32.totalorder %v1120, %v2164
        %vm2197 = vcmp.eq.s32.totalorder %v1121, %v2163
        %vm2198 = vcmp.eq.s32.totalorder %v1121, %v2164
        %vm2199 = vcmp.eq.s32.totalorder %v1122, %v2163
        %vm2200 = vcmp.eq.s32.totalorder %v1122, %v2164
        %vm2201 = vcmp.eq.s32.totalorder %v1123, %v2163
        %vm2202 = vcmp.eq.s32.totalorder %v1123, %v2164
        %vm2203 = vcmp.eq.s32.totalorder %v1124, %v2163
        %vm2204 = vcmp.eq.s32.totalorder %v1124, %v2164
        %vm2205 = vcmp.eq.s32.totalorder %v1125, %v2163
        %vm2206 = vcmp.eq.s32.totalorder %v1125, %v2164
        %vm2207 = vcmp.eq.s32.totalorder %v1126, %v2163
        %vm2208 = vcmp.eq.s32.totalorder %v1126, %v2164
        %vm2209 = vcmp.eq.s32.totalorder %v1127, %v2163
        %vm2210 = vcmp.eq.s32.totalorder %v1127, %v2164
        %vm2211 = vcmp.eq.s32.totalorder %v1128, %v2163
        %vm2212 = vcmp.eq.s32.totalorder %v1128, %v2164
        %vm2213 = vcmp.eq.s32.totalorder %v1129, %v2163
        %vm2214 = vcmp.eq.s32.totalorder %v1129, %v2164
        %vm2215 = vcmp.eq.s32.totalorder %v1130, %v2163
        %vm2216 = vcmp.eq.s32.totalorder %v1130, %v2164
        %v2217 = vsel %vm2165, 1.0, 0.0
        %v2218 = vsel %vm2166, 1.0, 0.0
        %v2219 = vsel %vm2167, 1.0, 0.0
        %v2220 = vsel %vm2168, 1.0, 0.0
        %v2221 = vsel %vm2169, 1.0, 0.0
        %v2222 = vsel %vm2170, 1.0, 0.0
        %v2223 = vsel %vm2171, 1.0, 0.0
        %v2224 = vsel %vm2172, 1.0, 0.0
        %v2225 = vsel %vm2173, 1.0, 0.0
        %v2226 = vsel %vm2174, 1.0, 0.0
        %v2227 = vsel %vm2175, 1.0, 0.0
        %v2228 = vsel %vm2176, 1.0, 0.0
        %v2229 = vsel %vm2177, 1.0, 0.0
        %v2230 = vsel %vm2178, 1.0, 0.0
        %v2231 = vsel %vm2179, 1.0, 0.0
        %v2232 = vsel %vm2180, 1.0, 0.0
        %v2233 = vsel %vm2181, 1.0, 0.0
        %v2234 = vsel %vm2182, 1.0, 0.0
        %v2235 = vsel %vm2183, 1.0, 0.0
        %v2236 = vsel %vm2184, 1.0, 0.0
        %v2237 = vsel %vm2185, 1.0, 0.0
        %v2238 = vsel %vm2186, 1.0, 0.0
        %v2239 = vsel %vm2187, 1.0, 0.0
        %v2240 = vsel %vm2188, 1.0, 0.0
        %v2241 = vsel %vm2189, 1.0, 0.0
        %v2242 = vsel %vm2190, 1.0, 0.0
        %v2243 = vsel %vm2191, 1.0, 0.0
        %v2244 = vsel %vm2192, 1.0, 0.0
        %v2245 = vsel %vm2193, 1.0, 0.0
        %v2246 = vsel %vm2194, 1.0, 0.0
        %v2247 = vsel %vm2195, 1.0, 0.0
        %v2248 = vsel %vm2196, 1.0, 0.0
        %v2249 = vsel %vm2197, 1.0, 0.0
        %v2250 = vsel %vm2198, 1.0, 0.0
        %v2251 = vsel %vm2199, 1.0, 0.0
        %v2252 = vsel %vm2200, 1.0, 0.0
        %v2253 = vsel %vm2201, 1.0, 0.0
        %v2254 = vsel %vm2202, 1.0, 0.0
        %v2255 = vsel %vm2203, 1.0, 0.0
        %v2256 = vsel %vm2204, 1.0, 0.0
        %v2257 = vsel %vm2205, 1.0, 0.0
        %v2258 = vsel %vm2206, 1.0, 0.0
        %v2259 = vsel %vm2207, 1.0, 0.0
        %v2260 = vsel %vm2208, 1.0, 0.0
        %v2261 = vsel %vm2209, 1.0, 0.0
        %v2262 = vsel %vm2210, 1.0, 0.0
        %v2263 = vsel %vm2211, 1.0, 0.0
        %v2264 = vsel %vm2212, 1.0, 0.0
        %v2265 = vsel %vm2213, 1.0, 0.0
        %v2266 = vsel %vm2214, 1.0, 0.0
        %v2267 = vsel %vm2215, 1.0, 0.0
        %v2268 = vsel %vm2216, 1.0, 0.0
        %vm2269 = vcmask 654336
        %v2271 = vsel %vm2269, %v2160, 0
        %v2274 = vsel %vm2269, %v2162, 0
        %2276 = vmatprep.subr.mxu0 %v2218
        %2277 = vmatpush1.msra.mxu0 %v2217
        %2278 = vmatprep.subr.mxu0 %v2220
        %2279 = vmatpush1.msra.mxu0 %v2219
        %2280 = vmatprep.subr.mxu0 %v2222
        %2281 = vmatpush1.msra.mxu0 %v2221
        %2282 = vmatprep.subr.mxu0 %v2224
        %2283 = vmatpush1.msra.mxu0 %v2223
        %2284 = vmatprep.subr.mxu0 %v2226
        %2285 = vmatpush1.msra.mxu0 %v2225
        %2286 = vmatprep.subr.mxu0 %v2228
        %2287 = vmatpush1.msra.mxu0 %v2227
        %2288 = vmatprep.subr.mxu0 %v2230
        %2289 = vmatpush1.msra.mxu0 %v2229
        %2290 = vmatprep.subr.mxu0 %v2232
        %2291 = vmatpush1.msra.mxu0 %v2231
        %2292 = vmatprep.subr.mxu0 %v2234
        %2293 = vmatpush1.msra.mxu0 %v2233
        %2294 = vmatprep.subr.mxu0 %v2236
        %2295 = vmatpush1.msra.mxu0 %v2235
        %2296 = vmatprep.subr.mxu0 %v2238
        %2297 = vmatpush1.msra.mxu0 %v2237
        %2298 = vmatprep.subr.mxu0 %v2240
        %2299 = vmatpush1.msra.mxu0 %v2239
        %2300 = vmatprep.subr.mxu0 %v2242
        %2301 = vmatpush1.msra.mxu0 %v2241
        %2302 = vmatprep.subr.mxu0 %v2244
        %2303 = vmatpush1.msra.mxu0 %v2243
        %2304 = vmatprep.subr.mxu0 %v2246
        %2305 = vmatpush1.msra.mxu0 %v2245
        %2306 = vmatprep.subr.mxu0 %v2248
        %2307 = vmatpush1.msra.mxu0 %v2247
        %2308 = vmatprep.subr.mxu0 %v2250
        %2309 = vmatpush1.msra.mxu0 %v2249
        %2310 = vmatprep.subr.mxu0 %v2252
        %2311 = vmatpush1.msra.mxu0 %v2251
        %2312 = vmatprep.subr.mxu0 %v2254
        %2313 = vmatpush1.msra.mxu0 %v2253
        %2314 = vmatprep.subr.mxu0 %v2256
        %2315 = vmatpush1.msra.mxu0 %v2255
        %2316 = vmatprep.subr.mxu0 %v2258
        %2317 = vmatpush1.msra.mxu0 %v2257
        %2318 = vmatprep.subr.mxu0 %v2260
        %2319 = vmatpush1.msra.mxu0 %v2259
        %2320 = vmatprep.subr.mxu0 %v2262
        %2321 = vmatpush1.msra.mxu0 %v2261
        %2322 = vmatprep.subr.mxu0 %v2264
        %2323 = vmatpush1.msra.mxu0 %v2263
        %2324 = vmatprep.subr.mxu0 %v2266
        %2325 = vmatpush1.msra.mxu0 %v2265
        %2326 = vmatprep.subr.mxu0 %v2268
        %2327 = vmatpush1.msra.mxu0 %v2267
        %2328 = vmatprep.subr.mxu0 0.0
        %2329 = vmatpush1.msra.mxu0 0.0
        %2330 = vmatprep.subr.mxu0 0.0
        %2331 = vmatpush1.msra.mxu0 0.0
        %2332 = vmatprep.subr.mxu0 0.0
        %2333 = vmatpush1.msra.mxu0 0.0
        %2334 = vmatprep.subr.mxu0 0.0
        %2335 = vmatpush1.msra.mxu0 0.0
        %2336 = vmatprep.subr.mxu0 0.0
        %2337 = vmatpush1.msra.mxu0 0.0
        %2338 = vmatprep.subr.mxu0 0.0
        %2339 = vmatpush1.msra.mxu0 0.0
        %2340 = vmatprep.mubr.f32.mxu0 %v2271
        %2341 = vmatmul.mubr.f32.gmra.mrb[0].mxu0 %v2159
        %v2342 = vpop.f32.mrb[0].mxu0
        %v2343 = vadd.f32 0.0, %v2342
        %v2344 = vpop.f32.mrb[0].mxu0
        %v2345 = vadd.f32 0.0, %v2344
        %2346 = vmatprep.mubr.f32.mxu0 %v2274
        %2347 = vmatmul.mubr.f32.gmra.mrb[0].mxu0 %v2161
        %v2348 = vpop.f32.mrb[0].mxu0
        %v2349 = vadd.f32 0.0, %v2348
        %v2350 = vpop.f32.mrb[0].mxu0
        %v2351 = vadd.f32 0.0, %v2350
        %2352 = vdwg.mxu0
        %v2353 = vmax.f32 %v2159, %v2343
        %v2354 = vmax.f32 %v2160, %v2345
        %v2355 = vmax.f32 %v2161, %v2349
        %v2356 = vmax.f32 %v2162, %v2351
        %v2357 = vsel %vm1661, %v1372, 0
        %v2360 = vsel %vm1666, %v2355, 0
        %v2363 = vsel %vm1666, %v2356, 0
        %2365 = vmatprep.subr.mxu0 %v2354
        %2366 = vmatpush1.msra.mxu0 %v2353
        %2367 = vmatprep.subr.mxu0 %v2363
        %2368 = vmatpush1.msra.mxu0 %v2360
        %2369 = vmatprep.subr.mxu0 0.0
        %2370 = vmatpush1.msra.mxu0 0.0
        %2371 = vmatprep.subr.mxu0 0.0
        %2372 = vmatpush1.msra.mxu0 0.0
        %2373 = vmatprep.subr.mxu0 0.0
        %2374 = vmatpush1.msra.mxu0 0.0
        %2375 = vmatprep.subr.mxu0 0.0
        %2376 = vmatpush1.msra.mxu0 0.0
        %2377 = vmatprep.subr.mxu0 0.0
        %2378 = vmatpush1.msra.mxu0 0.0
        %2379 = vmatprep.subr.mxu0 0.0
        %2380 = vmatpush1.msra.mxu0 0.0
        %2381 = vmatprep.subr.mxu0 0.0
        %2382 = vmatpush1.msra.mxu0 0.0
        %2383 = vmatprep.subr.mxu0 0.0
        %2384 = vmatpush1.msra.mxu0 0.0
        %2385 = vmatprep.subr.mxu0 0.0
        %2386 = vmatpush1.msra.mxu0 0.0
        %2387 = vmatprep.subr.mxu0 0.0
        %2388 = vmatpush1.msra.mxu0 0.0
        %2389 = vmatprep.subr.mxu0 0.0
        %2390 = vmatpush1.msra.mxu0 0.0
        %2391 = vmatprep.subr.mxu0 0.0
        %2392 = vmatpush1.msra.mxu0 0.0
        %2393 = vmatprep.subr.mxu0 0.0
        %2394 = vmatpush1.msra.mxu0 0.0
        %2395 = vmatprep.subr.mxu0 0.0
        %2396 = vmatpush1.msra.mxu0 0.0
        %2397 = vmatprep.subr.mxu0 0.0
        %2398 = vmatpush1.msra.mxu0 0.0
        %2399 = vmatprep.subr.mxu0 0.0
        %2400 = vmatpush1.msra.mxu0 0.0
        %2401 = vmatprep.subr.mxu0 0.0
        %2402 = vmatpush1.msra.mxu0 0.0
        %2403 = vmatprep.subr.mxu0 0.0
        %2404 = vmatpush1.msra.mxu0 0.0
        %2405 = vmatprep.subr.mxu0 0.0
        %2406 = vmatpush1.msra.mxu0 0.0
        %2407 = vmatprep.subr.mxu0 0.0
        %2408 = vmatpush1.msra.mxu0 0.0
        %2409 = vmatprep.subr.mxu0 0.0
        %2410 = vmatpush1.msra.mxu0 0.0
        %2411 = vmatprep.subr.mxu0 0.0
        %2412 = vmatpush1.msra.mxu0 0.0
        %2413 = vmatprep.subr.mxu0 0.0
        %2414 = vmatpush1.msra.mxu0 0.0
        %2415 = vmatprep.subr.mxu0 0.0
        %2416 = vmatpush1.msra.mxu0 0.0
        %2417 = vmatprep.subr.mxu0 0.0
        %2418 = vmatpush1.msra.mxu0 0.0
        %2419 = vmatprep.subr.mxu0 0.0
        %2420 = vmatpush1.msra.mxu0 0.0
        %2421 = vmatprep.subr.mxu0 0.0
        %2422 = vmatpush1.msra.mxu0 0.0
        %2423 = vmatprep.subr.mxu0 0.0
        %2424 = vmatpush1.msra.mxu0 0.0
        %2425 = vmatprep.subr.mxu0 0.0
        %2426 = vmatpush1.msra.mxu0 0.0
        %2427 = vmatprep.subr.mxu0 0.0
        %2428 = vmatpush1.msra.mxu0 0.0
        %2429 = vmatprep.mubr.f32.mxu0 0.0
        %2430 = vmatmul.mubr.f32.gmra.mrb[0].mxu0 %v2357
        %v2431 = vpop.f32.mrb[0].mxu0
        %v2432 = vadd.f32 0.0, %v2431
        %v2433 = vpop.f32.mrb[0].mxu0
        %v2434 = vadd.f32 0.0, %v2433
        %2435 = vdwg.mxu0
        %v2436 = vld [vmem:[%s5] sm:$0xff]
        %v2437 = vld [vmem:[%s5 + $0x8] sm:$0xff]
        %v2438 = vld [vmem:[%s5 + $0x10] sm:$0xff]
        %v2439 = vld [vmem:[%s5 + $0x18] sm:$0xff]
        %v2440 = vld [vmem:[%s5 + $0x20] sm:$0xff]
        %v2441 = vld [vmem:[%s5 + $0x28] sm:$0xff]
        %v2442 = vld [vmem:[%s5 + $0x30] sm:$0xff]
        %v2443 = vld [vmem:[%s5 + $0x38] sm:$0xff]
        %v2444 = vld [vmem:[%s5 + $0x40] sm:$0xff]
        %v2445 = vld [vmem:[%s5 + $0x48] sm:$0xff]
        %v2446 = vld [vmem:[%s5 + $0x50] sm:$0xff]
        %v2447 = vld [vmem:[%s5 + $0x58] sm:$0xff]
        %v2448 = vld [vmem:[%s5 + $0x60] sm:$0xff]
        %v2449 = vld [vmem:[%s5 + $0x68] sm:$0xff]
        %v2450 = vld [vmem:[%s5 + $0x70] sm:$0xff]
        %v2451 = vld [vmem:[%s5 + $0x78] sm:$0xff]
        %v2452 = vld [vmem:[%s5 + $0x80] sm:$0xff]
        %v2453 = vld [vmem:[%s5 + $0x88] sm:$0xff]
        %v2454 = vld [vmem:[%s5 + $0x90] sm:$0xff]
        %v2455 = vld [vmem:[%s5 + $0x98] sm:$0xff]
        %v2456 = vld [vmem:[%s5 + $0xa0] sm:$0xff]
        %v2457 = vld [vmem:[%s5 + $0xa8] sm:$0xff]
        %v2458 = vld [vmem:[%s5 + $0xb0] sm:$0xff]
        %v2459 = vld [vmem:[%s5 + $0xb8] sm:$0xff]
        %v2460 = vld [vmem:[%s5 + $0xc0] sm:$0xff]
        %v2461 = vld [vmem:[%s5 + $0xc8] sm:$0xff]
        %s2462 = scalar_lea.vmem %s5, 208
        %v2463 = vld [vmem:[%s2462] sm:$0xff]
        %v2464 = vld [vmem:[%s2462 + $0x8] sm:$0xff]
        %v2465 = vld [vmem:[%s2462 + $0x10] sm:$0xff]
        %v2466 = vld [vmem:[%s2462 + $0x18] sm:$0xff]
        %v2467 = vld [vmem:[%s2462 + $0x20] sm:$0xff]
        %v2468 = vld [vmem:[%s2462 + $0x28] sm:$0xff]
        %v2469 = vld [vmem:[%s2462 + $0x30] sm:$0xff]
        %v2470 = vld [vmem:[%s2462 + $0x38] sm:$0xff]
        %v2471 = vld [vmem:[%s2462 + $0x40] sm:$0xff]
        %v2472 = vld [vmem:[%s2462 + $0x48] sm:$0xff]
        %v2473 = vld [vmem:[%s2462 + $0x50] sm:$0xff]
        %v2474 = vld [vmem:[%s2462 + $0x58] sm:$0xff]
        %v2475 = vld [vmem:[%s2462 + $0x60] sm:$0xff]
        %v2476 = vld [vmem:[%s2462 + $0x68] sm:$0xff]
        %v2477 = vld [vmem:[%s2462 + $0x70] sm:$0xff]
        %v2478 = vld [vmem:[%s2462 + $0x78] sm:$0xff]
        %v2479 = vld [vmem:[%s2462 + $0x80] sm:$0xff]
        %v2480 = vld [vmem:[%s2462 + $0x88] sm:$0xff]
        %v2481 = vld [vmem:[%s2462 + $0x90] sm:$0xff]
        %v2482 = vld [vmem:[%s2462 + $0x98] sm:$0xff]
        %v2483 = vld [vmem:[%s2462 + $0xa0] sm:$0xff]
        %v2484 = vld [vmem:[%s2462 + $0xa8] sm:$0xff]
        %v2485 = vld [vmem:[%s2462 + $0xb0] sm:$0xff]
        %v2486 = vld [vmem:[%s2462 + $0xb8] sm:$0xff]
        %v2487 = vld [vmem:[%s2462 + $0xc0] sm:$0xff]
        %v2488 = vld [vmem:[%s2462 + $0xc8] sm:$0xff]
        %v2490 = vsel %vm2269, %v2434, 0
        %2492 = vmatprep.subr.mxu0 0.0
        %2493 = vmatpush1.msra.mxu0 %v2463
        %2494 = vmatprep.subr.mxu0 0.0
        %2495 = vmatpush1.msra.mxu0 %v2464
        %2496 = vmatprep.subr.mxu0 0.0
        %2497 = vmatpush1.msra.mxu0 %v2465
        %2498 = vmatprep.subr.mxu0 0.0
        %2499 = vmatpush1.msra.mxu0 %v2466
        %2500 = vmatprep.subr.mxu0 0.0
        %2501 = vmatpush1.msra.mxu0 %v2467
        %2502 = vmatprep.subr.mxu0 0.0
        %2503 = vmatpush1.msra.mxu0 %v2468
        %2504 = vmatprep.subr.mxu0 0.0
        %2505 = vmatpush1.msra.mxu0 %v2469
        %2506 = vmatprep.subr.mxu0 0.0
        %2507 = vmatpush1.msra.mxu0 %v2470
        %2508 = vmatprep.subr.mxu0 0.0
        %2509 = vmatpush1.msra.mxu0 %v2471
        %2510 = vmatprep.subr.mxu0 0.0
        %2511 = vmatpush1.msra.mxu0 %v2472
        %2512 = vmatprep.subr.mxu0 0.0
        %2513 = vmatpush1.msra.mxu0 %v2473
        %2514 = vmatprep.subr.mxu0 0.0
        %2515 = vmatpush1.msra.mxu0 %v2474
        %2516 = vmatprep.subr.mxu0 0.0
        %2517 = vmatpush1.msra.mxu0 %v2475
        %2518 = vmatprep.subr.mxu0 0.0
        %2519 = vmatpush1.msra.mxu0 %v2476
        %2520 = vmatprep.subr.mxu0 0.0
        %2521 = vmatpush1.msra.mxu0 %v2477
        %2522 = vmatprep.subr.mxu0 0.0
        %2523 = vmatpush1.msra.mxu0 %v2478
        %2524 = vmatprep.subr.mxu0 0.0
        %2525 = vmatpush1.msra.mxu0 %v2479
        %2526 = vmatprep.subr.mxu0 0.0
        %2527 = vmatpush1.msra.mxu0 %v2480
        %2528 = vmatprep.subr.mxu0 0.0
        %2529 = vmatpush1.msra.mxu0 %v2481
        %2530 = vmatprep.subr.mxu0 0.0
        %2531 = vmatpush1.msra.mxu0 %v2482
        %2532 = vmatprep.subr.mxu0 0.0
        %2533 = vmatpush1.msra.mxu0 %v2483
        %2534 = vmatprep.subr.mxu0 0.0
        %2535 = vmatpush1.msra.mxu0 %v2484
        %2536 = vmatprep.subr.mxu0 0.0
        %2537 = vmatpush1.msra.mxu0 %v2485
        %2538 = vmatprep.subr.mxu0 0.0
        %2539 = vmatpush1.msra.mxu0 %v2486
        %2540 = vmatprep.subr.mxu0 0.0
        %2541 = vmatpush1.msra.mxu0 %v2487
        %2542 = vmatprep.subr.mxu0 0.0
        %2543 = vmatpush1.msra.mxu0 %v2488
        %2544 = vmatprep.subr.mxu0 0.0
        %2545 = vmatpush1.msra.mxu0 0.0
        %2546 = vmatprep.subr.mxu0 0.0
        %2547 = vmatpush1.msra.mxu0 0.0
        %2548 = vmatprep.subr.mxu0 0.0
        %2549 = vmatpush1.msra.mxu0 0.0
        %2550 = vmatprep.subr.mxu0 0.0
        %2551 = vmatpush1.msra.mxu0 0.0
        %2552 = vmatprep.subr.mxu0 0.0
        %2553 = vmatpush1.msra.mxu0 0.0
        %2554 = vmatprep.subr.mxu0 0.0
        %2555 = vmatpush1.msra.mxu0 0.0
        %2556 = vmatprep.mubr.f32.mxu0 %v2490
        %2557 = vmatmul.mubr.f32.gmra.mrb[0].mxu0 %v2432
        %v2558 = vpop.f32.mrb[0].mxu0
        %v2559 = vadd.f32 0.0, %v2558
        %v2560 = vpop.f32.mrb[0].mxu0
        %2561 = vdwg.mxu0
        %vm2562 = vcmask 48128
        %v2563 = vsel %vm2562, %v403, 0
        %vm2565 = vcmask 1045504
        %v2567 = vsel %vm2565, %v2559, 0
        %2569 = vmatprep.subr.mxu0 0.0
        %2570 = vmatpush1.msra.mxu0 %v2567
        %2571 = vmatprep.subr.mxu0 0.0
        %2572 = vmatpush1.msra.mxu0 0.0
        %2573 = vmatprep.subr.mxu0 0.0
        %2574 = vmatpush1.msra.mxu0 0.0
        %2575 = vmatprep.subr.mxu0 0.0
        %2576 = vmatpush1.msra.mxu0 0.0
        %2577 = vmatprep.subr.mxu0 0.0
        %2578 = vmatpush1.msra.mxu0 0.0
        %2579 = vmatprep.subr.mxu0 0.0
        %2580 = vmatpush1.msra.mxu0 0.0
        %2581 = vmatprep.subr.mxu0 0.0
        %2582 = vmatpush1.msra.mxu0 0.0
        %2583 = vmatprep.subr.mxu0 0.0
        %2584 = vmatpush1.msra.mxu0 0.0
        %2585 = vmatprep.subr.mxu0 0.0
        %2586 = vmatpush1.msra.mxu0 0.0
        %2587 = vmatprep.subr.mxu0 0.0
        %2588 = vmatpush1.msra.mxu0 0.0
        %2589 = vmatprep.subr.mxu0 0.0
        %2590 = vmatpush1.msra.mxu0 0.0
        %2591 = vmatprep.subr.mxu0 0.0
        %2592 = vmatpush1.msra.mxu0 0.0
        %2593 = vmatprep.subr.mxu0 0.0
        %2594 = vmatpush1.msra.mxu0 0.0
        %2595 = vmatprep.subr.mxu0 0.0
        %2596 = vmatpush1.msra.mxu0 0.0
        %2597 = vmatprep.subr.mxu0 0.0
        %2598 = vmatpush1.msra.mxu0 0.0
        %2599 = vmatprep.subr.mxu0 0.0
        %2600 = vmatpush1.msra.mxu0 0.0
        %2601 = vmatprep.subr.mxu0 0.0
        %2602 = vmatpush1.msra.mxu0 0.0
        %2603 = vmatprep.subr.mxu0 0.0
        %2604 = vmatpush1.msra.mxu0 0.0
        %2605 = vmatprep.subr.mxu0 0.0
        %2606 = vmatpush1.msra.mxu0 0.0
        %2607 = vmatprep.subr.mxu0 0.0
        %2608 = vmatpush1.msra.mxu0 0.0
        %2609 = vmatprep.subr.mxu0 0.0
        %2610 = vmatpush1.msra.mxu0 0.0
        %2611 = vmatprep.subr.mxu0 0.0
        %2612 = vmatpush1.msra.mxu0 0.0
        %2613 = vmatprep.subr.mxu0 0.0
        %2614 = vmatpush1.msra.mxu0 0.0
        %2615 = vmatprep.subr.mxu0 0.0
        %2616 = vmatpush1.msra.mxu0 0.0
        %2617 = vmatprep.subr.mxu0 0.0
        %2618 = vmatpush1.msra.mxu0 0.0
        %2619 = vmatprep.subr.mxu0 0.0
        %2620 = vmatpush1.msra.mxu0 0.0
        %2621 = vmatprep.subr.mxu0 0.0
        %2622 = vmatpush1.msra.mxu0 0.0
        %2623 = vmatprep.subr.mxu0 0.0
        %2624 = vmatpush1.msra.mxu0 0.0
        %2625 = vmatprep.subr.mxu0 0.0
        %2626 = vmatpush1.msra.mxu0 0.0
        %2627 = vmatprep.subr.mxu0 0.0
        %2628 = vmatpush1.msra.mxu0 0.0
        %2629 = vmatprep.subr.mxu0 0.0
        %2630 = vmatpush1.msra.mxu0 0.0
        %2631 = vmatprep.subr.mxu0 0.0
        %2632 = vmatpush1.msra.mxu0 0.0
        %2633 = vmatprep.mubr.f32.mxu0 0.0
        %2634 = vmatmul.mubr.f32.gmra.mrb[0].mxu0 %v2563
        %v2635 = vpop.f32.mrb[0].mxu0
        %v2636 = vadd.f32 0.0, %v2635
        %v2637 = vpop.f32.mrb[0].mxu0
        %2638 = vdwg.mxu0
        %2639 = vmatprep.subr.mxu0 0.0
        %2640 = vmatpush1.msra.mxu0 %v2436
        %2641 = vmatprep.subr.mxu0 0.0
        %2642 = vmatpush1.msra.mxu0 %v2437
        %2643 = vmatprep.subr.mxu0 0.0
        %2644 = vmatpush1.msra.mxu0 %v2438
        %2645 = vmatprep.subr.mxu0 0.0
        %2646 = vmatpush1.msra.mxu0 %v2439
        %2647 = vmatprep.subr.mxu0 0.0
        %2648 = vmatpush1.msra.mxu0 %v2440
        %2649 = vmatprep.subr.mxu0 0.0
        %2650 = vmatpush1.msra.mxu0 %v2441
        %2651 = vmatprep.subr.mxu0 0.0
        %2652 = vmatpush1.msra.mxu0 %v2442
        %2653 = vmatprep.subr.mxu0 0.0
        %2654 = vmatpush1.msra.mxu0 %v2443
        %2655 = vmatprep.subr.mxu0 0.0
        %2656 = vmatpush1.msra.mxu0 %v2444
        %2657 = vmatprep.subr.mxu0 0.0
        %2658 = vmatpush1.msra.mxu0 %v2445
        %2659 = vmatprep.subr.mxu0 0.0
        %2660 = vmatpush1.msra.mxu0 %v2446
        %2661 = vmatprep.subr.mxu0 0.0
        %2662 = vmatpush1.msra.mxu0 %v2447
        %2663 = vmatprep.subr.mxu0 0.0
        %2664 = vmatpush1.msra.mxu0 %v2448
        %2665 = vmatprep.subr.mxu0 0.0
        %2666 = vmatpush1.msra.mxu0 %v2449
        %2667 = vmatprep.subr.mxu0 0.0
        %2668 = vmatpush1.msra.mxu0 %v2450
        %2669 = vmatprep.subr.mxu0 0.0
        %2670 = vmatpush1.msra.mxu0 %v2451
        %2671 = vmatprep.subr.mxu0 0.0
        %2672 = vmatpush1.msra.mxu0 %v2452
        %2673 = vmatprep.subr.mxu0 0.0
        %2674 = vmatpush1.msra.mxu0 %v2453
        %2675 = vmatprep.subr.mxu0 0.0
        %2676 = vmatpush1.msra.mxu0 %v2454
        %2677 = vmatprep.subr.mxu0 0.0
        %2678 = vmatpush1.msra.mxu0 %v2455
        %2679 = vmatprep.subr.mxu0 0.0
        %2680 = vmatpush1.msra.mxu0 %v2456
        %2681 = vmatprep.subr.mxu0 0.0
        %2682 = vmatpush1.msra.mxu0 %v2457
        %2683 = vmatprep.subr.mxu0 0.0
        %2684 = vmatpush1.msra.mxu0 %v2458
        %2685 = vmatprep.subr.mxu0 0.0
        %2686 = vmatpush1.msra.mxu0 %v2459
        %2687 = vmatprep.subr.mxu0 0.0
        %2688 = vmatpush1.msra.mxu0 %v2460
        %2689 = vmatprep.subr.mxu0 0.0
        %2690 = vmatpush1.msra.mxu0 %v2461
        %2691 = vmatprep.subr.mxu0 0.0
        %2692 = vmatpush1.msra.mxu0 0.0
        %2693 = vmatprep.subr.mxu0 0.0
        %2694 = vmatpush1.msra.mxu0 0.0
        %2695 = vmatprep.subr.mxu0 0.0
        %2696 = vmatpush1.msra.mxu0 0.0
        %2697 = vmatprep.subr.mxu0 0.0
        %2698 = vmatpush1.msra.mxu0 0.0
        %2699 = vmatprep.subr.mxu0 0.0
        %2700 = vmatpush1.msra.mxu0 0.0
        %2701 = vmatprep.subr.mxu0 0.0
        %2702 = vmatpush1.msra.mxu0 0.0
        %2703 = vmatprep.mubr.f32.mxu0 %v2490
        %2704 = vmatmul.mubr.f32.gmra.mrb[0].mxu0 %v2432
        %v2705 = vpop.f32.mrb[0].mxu0
        %v2706 = vadd.f32 %v2636, %v2705
        %v2707 = vpop.f32.mrb[0].mxu0
        %2708 = vdwg.mxu0
        %s2709 = scalar_lea.vmem %s5, 416
        %v2710 = vld [vmem:[%s2709] sm:$0xff]
        %v2711 = vld [vmem:[%s2709 + $0x8] sm:$0xff]
        %v2712 = vld [vmem:[%s2709 + $0x10] sm:$0xff]
        %v2713 = vld [vmem:[%s2709 + $0x18] sm:$0xff]
        %v2714 = vld [vmem:[%s2709 + $0x20] sm:$0xff]
        %v2715 = vld [vmem:[%s2709 + $0x28] sm:$0xff]
        %v2716 = vld [vmem:[%s2709 + $0x30] sm:$0xff]
        %v2717 = vld [vmem:[%s2709 + $0x38] sm:$0xff]
        %v2718 = vld [vmem:[%s2709 + $0x40] sm:$0xff]
        %v2719 = vld [vmem:[%s2709 + $0x48] sm:$0xff]
        %v2720 = vld [vmem:[%s2709 + $0x50] sm:$0xff]
        %v2721 = vld [vmem:[%s2709 + $0x58] sm:$0xff]
        %v2722 = vld [vmem:[%s2709 + $0x60] sm:$0xff]
        %v2723 = vld [vmem:[%s2709 + $0x68] sm:$0xff]
        %v2724 = vld [vmem:[%s2709 + $0x70] sm:$0xff]
        %v2725 = vld [vmem:[%s2709 + $0x78] sm:$0xff]
        %v2726 = vld [vmem:[%s2709 + $0x80] sm:$0xff]
        %v2727 = vld [vmem:[%s2709 + $0x88] sm:$0xff]
        %v2728 = vld [vmem:[%s2709 + $0x90] sm:$0xff]
        %v2729 = vld [vmem:[%s2709 + $0x98] sm:$0xff]
        %v2730 = vld [vmem:[%s2709 + $0xa0] sm:$0xff]
        %v2731 = vld [vmem:[%s2709 + $0xa8] sm:$0xff]
        %v2732 = vld [vmem:[%s2709 + $0xb0] sm:$0xff]
        %v2733 = vld [vmem:[%s2709 + $0xb8] sm:$0xff]
        %v2734 = vld [vmem:[%s2709 + $0xc0] sm:$0xff]
        %v2735 = vld [vmem:[%s2709 + $0xc8] sm:$0xff]
        %2736 = vmatprep.subr.mxu0 0.0
        %2737 = vmatpush1.msra.mxu0 %v2710
        %2738 = vmatprep.subr.mxu0 0.0
        %2739 = vmatpush1.msra.mxu0 %v2711
        %2740 = vmatprep.subr.mxu0 0.0
        %2741 = vmatpush1.msra.mxu0 %v2712
        %2742 = vmatprep.subr.mxu0 0.0
        %2743 = vmatpush1.msra.mxu0 %v2713
        %2744 = vmatprep.subr.mxu0 0.0
        %2745 = vmatpush1.msra.mxu0 %v2714
        %2746 = vmatprep.subr.mxu0 0.0
        %2747 = vmatpush1.msra.mxu0 %v2715
        %2748 = vmatprep.subr.mxu0 0.0
        %2749 = vmatpush1.msra.mxu0 %v2716
        %2750 = vmatprep.subr.mxu0 0.0
        %2751 = vmatpush1.msra.mxu0 %v2717
        %2752 = vmatprep.subr.mxu0 0.0
        %2753 = vmatpush1.msra.mxu0 %v2718
        %2754 = vmatprep.subr.mxu0 0.0
        %2755 = vmatpush1.msra.mxu0 %v2719
        %2756 = vmatprep.subr.mxu0 0.0
        %2757 = vmatpush1.msra.mxu0 %v2720
        %2758 = vmatprep.subr.mxu0 0.0
        %2759 = vmatpush1.msra.mxu0 %v2721
        %2760 = vmatprep.subr.mxu0 0.0
        %2761 = vmatpush1.msra.mxu0 %v2722
        %2762 = vmatprep.subr.mxu0 0.0
        %2763 = vmatpush1.msra.mxu0 %v2723
        %2764 = vmatprep.subr.mxu0 0.0
        %2765 = vmatpush1.msra.mxu0 %v2724
        %2766 = vmatprep.subr.mxu0 0.0
        %2767 = vmatpush1.msra.mxu0 %v2725
        %2768 = vmatprep.subr.mxu0 0.0
        %2769 = vmatpush1.msra.mxu0 %v2726
        %2770 = vmatprep.subr.mxu0 0.0
        %2771 = vmatpush1.msra.mxu0 %v2727
        %2772 = vmatprep.subr.mxu0 0.0
        %2773 = vmatpush1.msra.mxu0 %v2728
        %2774 = vmatprep.subr.mxu0 0.0
        %2775 = vmatpush1.msra.mxu0 %v2729
        %2776 = vmatprep.subr.mxu0 0.0
        %2777 = vmatpush1.msra.mxu0 %v2730
        %2778 = vmatprep.subr.mxu0 0.0
        %2779 = vmatpush1.msra.mxu0 %v2731
        %2780 = vmatprep.subr.mxu0 0.0
        %2781 = vmatpush1.msra.mxu0 %v2732
        %2782 = vmatprep.subr.mxu0 0.0
        %2783 = vmatpush1.msra.mxu0 %v2733
        %2784 = vmatprep.subr.mxu0 0.0
        %2785 = vmatpush1.msra.mxu0 %v2734
        %2786 = vmatprep.subr.mxu0 0.0
        %2787 = vmatpush1.msra.mxu0 %v2735
        %2788 = vmatprep.subr.mxu0 0.0
        %2789 = vmatpush1.msra.mxu0 0.0
        %2790 = vmatprep.subr.mxu0 0.0
        %2791 = vmatpush1.msra.mxu0 0.0
        %2792 = vmatprep.subr.mxu0 0.0
        %2793 = vmatpush1.msra.mxu0 0.0
        %2794 = vmatprep.subr.mxu0 0.0
        %2795 = vmatpush1.msra.mxu0 0.0
        %2796 = vmatprep.subr.mxu0 0.0
        %2797 = vmatpush1.msra.mxu0 0.0
        %2798 = vmatprep.subr.mxu0 0.0
        %2799 = vmatpush1.msra.mxu0 0.0
        %2800 = vmatprep.mubr.f32.mxu0 %v2490
        %2801 = vmatmul.mubr.f32.gmra.mrb[0].mxu0 %v2432
        %v2802 = vpop.f32.mrb[0].mxu0
        %v2803 = vadd.f32 0.0, %v2802
        %v2804 = vpop.f32.mrb[0].mxu0
        %2805 = vdwg.mxu0
        %v2806 = vsel %vm2562, %v415, 0
        %v2809 = vsel %vm2565, %v2803, 0
        %2811 = vmatprep.subr.mxu0 0.0
        %2812 = vmatpush1.msra.mxu0 %v2809
        %2813 = vmatprep.subr.mxu0 0.0
        %2814 = vmatpush1.msra.mxu0 0.0
        %2815 = vmatprep.subr.mxu0 0.0
        %2816 = vmatpush1.msra.mxu0 0.0
        %2817 = vmatprep.subr.mxu0 0.0
        %2818 = vmatpush1.msra.mxu0 0.0
        %2819 = vmatprep.subr.mxu0 0.0
        %2820 = vmatpush1.msra.mxu0 0.0
        %2821 = vmatprep.subr.mxu0 0.0
        %2822 = vmatpush1.msra.mxu0 0.0
        %2823 = vmatprep.subr.mxu0 0.0
        %2824 = vmatpush1.msra.mxu0 0.0
        %2825 = vmatprep.subr.mxu0 0.0
        %2826 = vmatpush1.msra.mxu0 0.0
        %2827 = vmatprep.subr.mxu0 0.0
        %2828 = vmatpush1.msra.mxu0 0.0
        %2829 = vmatprep.subr.mxu0 0.0
        %2830 = vmatpush1.msra.mxu0 0.0
        %2831 = vmatprep.subr.mxu0 0.0
        %2832 = vmatpush1.msra.mxu0 0.0
        %2833 = vmatprep.subr.mxu0 0.0
        %2834 = vmatpush1.msra.mxu0 0.0
        %2835 = vmatprep.subr.mxu0 0.0
        %2836 = vmatpush1.msra.mxu0 0.0
        %2837 = vmatprep.subr.mxu0 0.0
        %2838 = vmatpush1.msra.mxu0 0.0
        %2839 = vmatprep.subr.mxu0 0.0
        %2840 = vmatpush1.msra.mxu0 0.0
        %2841 = vmatprep.subr.mxu0 0.0
        %2842 = vmatpush1.msra.mxu0 0.0
        %2843 = vmatprep.subr.mxu0 0.0
        %2844 = vmatpush1.msra.mxu0 0.0
        %2845 = vmatprep.subr.mxu0 0.0
        %2846 = vmatpush1.msra.mxu0 0.0
        %2847 = vmatprep.subr.mxu0 0.0
        %2848 = vmatpush1.msra.mxu0 0.0
        %2849 = vmatprep.subr.mxu0 0.0
        %2850 = vmatpush1.msra.mxu0 0.0
        %2851 = vmatprep.subr.mxu0 0.0
        %2852 = vmatpush1.msra.mxu0 0.0
        %2853 = vmatprep.subr.mxu0 0.0
        %2854 = vmatpush1.msra.mxu0 0.0
        %2855 = vmatprep.subr.mxu0 0.0
        %2856 = vmatpush1.msra.mxu0 0.0
        %2857 = vmatprep.subr.mxu0 0.0
        %2858 = vmatpush1.msra.mxu0 0.0
        %2859 = vmatprep.subr.mxu0 0.0
        %2860 = vmatpush1.msra.mxu0 0.0
        %2861 = vmatprep.subr.mxu0 0.0
        %2862 = vmatpush1.msra.mxu0 0.0
        %2863 = vmatprep.subr.mxu0 0.0
        %2864 = vmatpush1.msra.mxu0 0.0
        %2865 = vmatprep.subr.mxu0 0.0
        %2866 = vmatpush1.msra.mxu0 0.0
        %2867 = vmatprep.subr.mxu0 0.0
        %2868 = vmatpush1.msra.mxu0 0.0
        %2869 = vmatprep.subr.mxu0 0.0
        %2870 = vmatpush1.msra.mxu0 0.0
        %2871 = vmatprep.subr.mxu0 0.0
        %2872 = vmatpush1.msra.mxu0 0.0
        %2873 = vmatprep.subr.mxu0 0.0
        %2874 = vmatpush1.msra.mxu0 0.0
        %2875 = vmatprep.mubr.f32.mxu0 0.0
        %2876 = vmatmul.mubr.f32.gmra.mrb[0].mxu0 %v2806
        %v2877 = vpop.f32.mrb[0].mxu0
        %v2878 = vadd.f32 0.0, %v2877
        %v2879 = vpop.f32.mrb[0].mxu0
        %2880 = vdwg.mxu0
        %v2881 = vadd.f32 %v2706, %v2878
        %v2882 = vld [vmem:[%s6] sm:$0x1]
        %v2884 = vlaneseq
        %v2885 = vshrl.u32 %v2884, 7
        %v2886 = vsub.s32 0, %v2885
        %v2887 = vrot.slane %v2882, %v2886
        %v2889 = vadd.f32 %v2881, %v2887
        %v2890 = vmax.f32 %v2889, 0.0
        %v2892 = vsel %vm2565, %v2890, 0
        %2894 = vmatprep.subr.mxu0 0.0
        %2895 = vmatpush1.msra.mxu0 %v2892
        %2896 = vmatprep.subr.mxu0 0.0
        %2897 = vmatpush1.msra.mxu0 0.0
        %2898 = vmatprep.subr.mxu0 0.0
        %2899 = vmatpush1.msra.mxu0 0.0
        %2900 = vmatprep.subr.mxu0 0.0
        %2901 = vmatpush1.msra.mxu0 0.0
        %2902 = vmatprep.subr.mxu0 0.0
        %2903 = vmatpush1.msra.mxu0 0.0
        %2904 = vmatprep.subr.mxu0 0.0
        %2905 = vmatpush1.msra.mxu0 0.0
        %2906 = vmatprep.subr.mxu0 0.0
        %2907 = vmatpush1.msra.mxu0 0.0
        %2908 = vmatprep.subr.mxu0 0.0
        %2909 = vmatpush1.msra.mxu0 0.0
        %2910 = vmatprep.subr.mxu0 0.0
        %2911 = vmatpush1.msra.mxu0 0.0
        %2912 = vmatprep.subr.mxu0 0.0
        %2913 = vmatpush1.msra.mxu0 0.0
        %2914 = vmatprep.subr.mxu0 0.0
        %2915 = vmatpush1.msra.mxu0 0.0
        %2916 = vmatprep.subr.mxu0 0.0
        %2917 = vmatpush1.msra.mxu0 0.0
        %2918 = vmatprep.subr.mxu0 0.0
        %2919 = vmatpush1.msra.mxu0 0.0
        %2920 = vmatprep.subr.mxu0 0.0
        %2921 = vmatpush1.msra.mxu0 0.0
        %2922 = vmatprep.subr.mxu0 0.0
        %2923 = vmatpush1.msra.mxu0 0.0
        %2924 = vmatprep.subr.mxu0 0.0
        %2925 = vmatpush1.msra.mxu0 0.0
        %2926 = vmatprep.subr.mxu0 0.0
        %2927 = vmatpush1.msra.mxu0 0.0
        %2928 = vmatprep.subr.mxu0 0.0
        %2929 = vmatpush1.msra.mxu0 0.0
        %2930 = vmatprep.subr.mxu0 0.0
        %2931 = vmatpush1.msra.mxu0 0.0
        %2932 = vmatprep.subr.mxu0 0.0
        %2933 = vmatpush1.msra.mxu0 0.0
        %2934 = vmatprep.subr.mxu0 0.0
        %2935 = vmatpush1.msra.mxu0 0.0
        %2936 = vmatprep.subr.mxu0 0.0
        %2937 = vmatpush1.msra.mxu0 0.0
        %2938 = vmatprep.subr.mxu0 0.0
        %2939 = vmatpush1.msra.mxu0 0.0
        %2940 = vmatprep.subr.mxu0 0.0
        %2941 = vmatpush1.msra.mxu0 0.0
        %2942 = vmatprep.subr.mxu0 0.0
        %2943 = vmatpush1.msra.mxu0 0.0
        %2944 = vmatprep.subr.mxu0 0.0
        %2945 = vmatpush1.msra.mxu0 0.0
        %2946 = vmatprep.subr.mxu0 0.0
        %2947 = vmatpush1.msra.mxu0 0.0
        %2948 = vmatprep.subr.mxu0 0.0
        %2949 = vmatpush1.msra.mxu0 0.0
        %2950 = vmatprep.subr.mxu0 0.0
        %2951 = vmatpush1.msra.mxu0 0.0
        %2952 = vmatprep.subr.mxu0 0.0
        %2953 = vmatpush1.msra.mxu0 0.0
        %2954 = vmatprep.subr.mxu0 0.0
        %2955 = vmatpush1.msra.mxu0 0.0
        %2956 = vmatprep.subr.mxu0 0.0
        %2957 = vmatpush1.msra.mxu0 0.0
        %2958 = vmatprep.mubr.f32.mxu0 0.0
        %2959 = vmatmul.mubr.f32.gmra.mrb[0].mxu0 %v2563
        %v2960 = vpop.f32.mrb[0].mxu0
        %v2961 = vadd.f32 0.0, %v2960
        %v2962 = vpop.f32.mrb[0].mxu0
        %2963 = vdwg.mxu0
        %v2964 = vmax.f32 %v2890, %v2961
        %v2965 = vadd.s32 %v394, 32
        %vm2966 = vcmp.eq.s32.totalorder %v389, %v2965
        %vm2967 = vcmp.eq.s32.totalorder %v390, %v2965
        %vm2968 = vcmp.eq.s32.totalorder %v391, %v2965
        %vm2969 = vcmp.eq.s32.totalorder %v392, %v2965
        %vm2970 = vcmp.eq.s32.totalorder %v1109, %v2965
        %vm2971 = vcmp.eq.s32.totalorder %v1110, %v2965
        %vm2972 = vcmp.eq.s32.totalorder %v1111, %v2965
        %vm2973 = vcmp.eq.s32.totalorder %v1112, %v2965
        %vm2974 = vcmp.eq.s32.totalorder %v1113, %v2965
        %vm2975 = vcmp.eq.s32.totalorder %v1114, %v2965
        %vm2976 = vcmp.eq.s32.totalorder %v1115, %v2965
        %vm2977 = vcmp.eq.s32.totalorder %v1116, %v2965
        %vm2978 = vcmp.eq.s32.totalorder %v1117, %v2965
        %vm2979 = vcmp.eq.s32.totalorder %v1118, %v2965
        %vm2980 = vcmp.eq.s32.totalorder %v1119, %v2965
        %vm2981 = vcmp.eq.s32.totalorder %v1120, %v2965
        %v2982 = vsel %vm2966, 1.0, 0.0
        %v2983 = vsel %vm2967, 1.0, 0.0
        %v2984 = vsel %vm2968, 1.0, 0.0
        %v2985 = vsel %vm2969, 1.0, 0.0
        %v2986 = vsel %vm2970, 1.0, 0.0
        %v2987 = vsel %vm2971, 1.0, 0.0
        %v2988 = vsel %vm2972, 1.0, 0.0
        %v2989 = vsel %vm2973, 1.0, 0.0
        %v2990 = vsel %vm2974, 1.0, 0.0
        %v2991 = vsel %vm2975, 1.0, 0.0
        %v2992 = vsel %vm2976, 1.0, 0.0
        %v2993 = vsel %vm2977, 1.0, 0.0
        %v2994 = vsel %vm2978, 1.0, 0.0
        %v2995 = vsel %vm2979, 1.0, 0.0
        %v2996 = vsel %vm2980, 1.0, 0.0
        %v2997 = vsel %vm2981, 1.0, 0.0
        %2998 = vmatprep.subr.mxu0 0.0
        %2999 = vmatpush1.msra.mxu0 %v2982
        %3000 = vmatprep.subr.mxu0 0.0
        %3001 = vmatpush1.msra.mxu0 %v2983
        %3002 = vmatprep.subr.mxu0 0.0
        %3003 = vmatpush1.msra.mxu0 %v2984
        %3004 = vmatprep.subr.mxu0 0.0
        %3005 = vmatpush1.msra.mxu0 %v2985
        %3006 = vmatprep.subr.mxu0 0.0
        %3007 = vmatpush1.msra.mxu0 %v2986
        %3008 = vmatprep.subr.mxu0 0.0
        %3009 = vmatpush1.msra.mxu0 %v2987
        %3010 = vmatprep.subr.mxu0 0.0
        %3011 = vmatpush1.msra.mxu0 %v2988
        %3012 = vmatprep.subr.mxu0 0.0
        %3013 = vmatpush1.msra.mxu0 %v2989
        %3014 = vmatprep.subr.mxu0 0.0
        %3015 = vmatpush1.msra.mxu0 %v2990
        %3016 = vmatprep.subr.mxu0 0.0
        %3017 = vmatpush1.msra.mxu0 %v2991
        %3018 = vmatprep.subr.mxu0 0.0
        %3019 = vmatpush1.msra.mxu0 %v2992
        %3020 = vmatprep.subr.mxu0 0.0
        %3021 = vmatpush1.msra.mxu0 %v2993
        %3022 = vmatprep.subr.mxu0 0.0
        %3023 = vmatpush1.msra.mxu0 %v2994
        %3024 = vmatprep.subr.mxu0 0.0
        %3025 = vmatpush1.msra.mxu0 %v2995
        %3026 = vmatprep.subr.mxu0 0.0
        %3027 = vmatpush1.msra.mxu0 %v2996
        %3028 = vmatprep.subr.mxu0 0.0
        %3029 = vmatpush1.msra.mxu0 %v2997
        %3030 = vmatprep.subr.mxu0 0.0
        %3031 = vmatpush1.msra.mxu0 0.0
        %3032 = vmatprep.subr.mxu0 0.0
        %3033 = vmatpush1.msra.mxu0 0.0
        %3034 = vmatprep.subr.mxu0 0.0
        %3035 = vmatpush1.msra.mxu0 0.0
        %3036 = vmatprep.subr.mxu0 0.0
        %3037 = vmatpush1.msra.mxu0 0.0
        %3038 = vmatprep.subr.mxu0 0.0
        %3039 = vmatpush1.msra.mxu0 0.0
        %3040 = vmatprep.subr.mxu0 0.0
        %3041 = vmatpush1.msra.mxu0 0.0
        %3042 = vmatprep.subr.mxu0 0.0
        %3043 = vmatpush1.msra.mxu0 0.0
        %3044 = vmatprep.subr.mxu0 0.0
        %3045 = vmatpush1.msra.mxu0 0.0
        %3046 = vmatprep.subr.mxu0 0.0
        %3047 = vmatpush1.msra.mxu0 0.0
        %3048 = vmatprep.subr.mxu0 0.0
        %3049 = vmatpush1.msra.mxu0 0.0
        %3050 = vmatprep.subr.mxu0 0.0
        %3051 = vmatpush1.msra.mxu0 0.0
        %3052 = vmatprep.subr.mxu0 0.0
        %3053 = vmatpush1.msra.mxu0 0.0
        %3054 = vmatprep.subr.mxu0 0.0
        %3055 = vmatpush1.msra.mxu0 0.0
        %3056 = vmatprep.subr.mxu0 0.0
        %3057 = vmatpush1.msra.mxu0 0.0
        %3058 = vmatprep.subr.mxu0 0.0
        %3059 = vmatpush1.msra.mxu0 0.0
        %3060 = vmatprep.subr.mxu0 0.0
        %3061 = vmatpush1.msra.mxu0 0.0
        %3062 = vmatprep.mubr.f32.mxu0 0.0
        %3063 = vmatmul.mubr.f32.gmra.mrb[0].mxu0 %v2964
        %v3064 = vpop.f32.mrb[0].mxu0
        %v3065 = vadd.f32 0.0, %v3064
        %v3066 = vpop.f32.mrb[0].mxu0
        %3067 = vdwg.mxu0
        %v3068 = vmax.f32 %v2964, %v3065
        %v3069 = vsel %vm2562, %v1372, 0
        %v3072 = vsel %vm2565, %v3068, 0
        %3074 = vmatprep.subr.mxu0 0.0
        %3075 = vmatpush1.msra.mxu0 %v3072
        %3076 = vmatprep.subr.mxu0 0.0
        %3077 = vmatpush1.msra.mxu0 0.0
        %3078 = vmatprep.subr.mxu0 0.0
        %3079 = vmatpush1.msra.mxu0 0.0
        %3080 = vmatprep.subr.mxu0 0.0
        %3081 = vmatpush1.msra.mxu0 0.0
        %3082 = vmatprep.subr.mxu0 0.0
        %3083 = vmatpush1.msra.mxu0 0.0
        %3084 = vmatprep.subr.mxu0 0.0
        %3085 = vmatpush1.msra.mxu0 0.0
        %3086 = vmatprep.subr.mxu0 0.0
        %3087 = vmatpush1.msra.mxu0 0.0
        %3088 = vmatprep.subr.mxu0 0.0
        %3089 = vmatpush1.msra.mxu0 0.0
        %3090 = vmatprep.subr.mxu0 0.0
        %3091 = vmatpush1.msra.mxu0 0.0
        %3092 = vmatprep.subr.mxu0 0.0
        %3093 = vmatpush1.msra.mxu0 0.0
        %3094 = vmatprep.subr.mxu0 0.0
        %3095 = vmatpush1.msra.mxu0 0.0
        %3096 = vmatprep.subr.mxu0 0.0
        %3097 = vmatpush1.msra.mxu0 0.0
        %3098 = vmatprep.subr.mxu0 0.0
        %3099 = vmatpush1.msra.mxu0 0.0
        %3100 = vmatprep.subr.mxu0 0.0
        %3101 = vmatpush1.msra.mxu0 0.0
        %3102 = vmatprep.subr.mxu0 0.0
        %3103 = vmatpush1.msra.mxu0 0.0
        %3104 = vmatprep.subr.mxu0 0.0
        %3105 = vmatpush1.msra.mxu0 0.0
        %3106 = vmatprep.subr.mxu0 0.0
        %3107 = vmatpush1.msra.mxu0 0.0
        %3108 = vmatprep.subr.mxu0 0.0
        %3109 = vmatpush1.msra.mxu0 0.0
        %3110 = vmatprep.subr.mxu0 0.0
        %3111 = vmatpush1.msra.mxu0 0.0
        %3112 = vmatprep.subr.mxu0 0.0
        %3113 = vmatpush1.msra.mxu0 0.0
        %3114 = vmatprep.subr.mxu0 0.0
        %3115 = vmatpush1.msra.mxu0 0.0
        %3116 = vmatprep.subr.mxu0 0.0
        %3117 = vmatpush1.msra.mxu0 0.0
        %3118 = vmatprep.subr.mxu0 0.0
        %3119 = vmatpush1.msra.mxu0 0.0
        %3120 = vmatprep.subr.mxu0 0.0
        %3121 = vmatpush1.msra.mxu0 0.0
        %3122 = vmatprep.subr.mxu0 0.0
        %3123 = vmatpush1.msra.mxu0 0.0
        %3124 = vmatprep.subr.mxu0 0.0
        %3125 = vmatpush1.msra.mxu0 0.0
        %3126 = vmatprep.subr.mxu0 0.0
        %3127 = vmatpush1.msra.mxu0 0.0
        %3128 = vmatprep.subr.mxu0 0.0
        %3129 = vmatpush1.msra.mxu0 0.0
        %3130 = vmatprep.subr.mxu0 0.0
        %3131 = vmatpush1.msra.mxu0 0.0
        %3132 = vmatprep.subr.mxu0 0.0
        %3133 = vmatpush1.msra.mxu0 0.0
        %3134 = vmatprep.subr.mxu0 0.0
        %3135 = vmatpush1.msra.mxu0 0.0
        %3136 = vmatprep.subr.mxu0 0.0
        %3137 = vmatpush1.msra.mxu0 0.0
        %3138 = vmatprep.mubr.f32.mxu0 0.0
        %3139 = vmatmul.mubr.f32.gmra.mrb[0].mxu0 %v3069
        %v3140 = vpop.f32.mrb[0].mxu0
        %v3141 = vadd.f32 0.0, %v3140
        %v3142 = vpop.f32.mrb[0].mxu0
        %3143 = vdwg.mxu0
        %v3144 = vld [vmem:[%s7] sm:$0xff]
        %v3145 = vld [vmem:[%s7 + $0x8] sm:$0xff]
        %v3146 = vld [vmem:[%s7 + $0x10] sm:$0xff]
        %v3147 = vld [vmem:[%s7 + $0x18] sm:$0xff]
        %v3148 = vld [vmem:[%s7 + $0x20] sm:$0xff]
        %v3149 = vld [vmem:[%s7 + $0x28] sm:$0xff]
        %v3150 = vld [vmem:[%s7 + $0x30] sm:$0xff]
        %v3151 = vld [vmem:[%s7 + $0x38] sm:$0xff]
        %v3152 = vld [vmem:[%s7 + $0x40] sm:$0xff]
        %v3153 = vld [vmem:[%s7 + $0x48] sm:$0xff]
        %v3154 = vld [vmem:[%s7 + $0x50] sm:$0xff]
        %v3155 = vld [vmem:[%s7 + $0x58] sm:$0xff]
        %v3156 = vld [vmem:[%s7 + $0x60] sm:$0xff]
        %v3157 = vld [vmem:[%s7 + $0x68] sm:$0xff]
        %v3158 = vld [vmem:[%s7 + $0x70] sm:$0xff]
        %v3159 = vld [vmem:[%s7 + $0x78] sm:$0xff]
        %s3160 = scalar_lea.vmem %s7, 128
        %v3161 = vld [vmem:[%s3160] sm:$0xff]
        %v3162 = vld [vmem:[%s3160 + $0x8] sm:$0xff]
        %v3163 = vld [vmem:[%s3160 + $0x10] sm:$0xff]
        %v3164 = vld [vmem:[%s3160 + $0x18] sm:$0xff]
        %v3165 = vld [vmem:[%s3160 + $0x20] sm:$0xff]
        %v3166 = vld [vmem:[%s3160 + $0x28] sm:$0xff]
        %v3167 = vld [vmem:[%s3160 + $0x30] sm:$0xff]
        %v3168 = vld [vmem:[%s3160 + $0x38] sm:$0xff]
        %v3169 = vld [vmem:[%s3160 + $0x40] sm:$0xff]
        %v3170 = vld [vmem:[%s3160 + $0x48] sm:$0xff]
        %v3171 = vld [vmem:[%s3160 + $0x50] sm:$0xff]
        %v3172 = vld [vmem:[%s3160 + $0x58] sm:$0xff]
        %v3173 = vld [vmem:[%s3160 + $0x60] sm:$0xff]
        %v3174 = vld [vmem:[%s3160 + $0x68] sm:$0xff]
        %v3175 = vld [vmem:[%s3160 + $0x70] sm:$0xff]
        %v3176 = vld [vmem:[%s3160 + $0x78] sm:$0xff]
        %v3178 = vrot.slane %v3141, 1
        %3180 = vmatprep.subr.mxu0 0.0
        %3181 = vmatpush1.msra.mxu0 %v3161
        %3182 = vmatprep.subr.mxu0 0.0
        %3183 = vmatpush1.msra.mxu0 %v3162
        %3184 = vmatprep.subr.mxu0 0.0
        %3185 = vmatpush1.msra.mxu0 %v3163
        %3186 = vmatprep.subr.mxu0 0.0
        %3187 = vmatpush1.msra.mxu0 %v3164
        %3188 = vmatprep.subr.mxu0 0.0
        %3189 = vmatpush1.msra.mxu0 %v3165
        %3190 = vmatprep.subr.mxu0 0.0
        %3191 = vmatpush1.msra.mxu0 %v3166
        %3192 = vmatprep.subr.mxu0 0.0
        %3193 = vmatpush1.msra.mxu0 %v3167
        %3194 = vmatprep.subr.mxu0 0.0
        %3195 = vmatpush1.msra.mxu0 %v3168
        %3196 = vmatprep.subr.mxu0 0.0
        %3197 = vmatpush1.msra.mxu0 %v3169
        %3198 = vmatprep.subr.mxu0 0.0
        %3199 = vmatpush1.msra.mxu0 %v3170
        %3200 = vmatprep.subr.mxu0 0.0
        %3201 = vmatpush1.msra.mxu0 %v3171
        %3202 = vmatprep.subr.mxu0 0.0
        %3203 = vmatpush1.msra.mxu0 %v3172
        %3204 = vmatprep.subr.mxu0 0.0
        %3205 = vmatpush1.msra.mxu0 %v3173
        %3206 = vmatprep.subr.mxu0 0.0
        %3207 = vmatpush1.msra.mxu0 %v3174
        %3208 = vmatprep.subr.mxu0 0.0
        %3209 = vmatpush1.msra.mxu0 %v3175
        %3210 = vmatprep.subr.mxu0 0.0
        %3211 = vmatpush1.msra.mxu0 %v3176
        %3212 = vmatprep.subr.mxu0 0.0
        %3213 = vmatpush1.msra.mxu0 0.0
        %3214 = vmatprep.subr.mxu0 0.0
        %3215 = vmatpush1.msra.mxu0 0.0
        %3216 = vmatprep.subr.mxu0 0.0
        %3217 = vmatpush1.msra.mxu0 0.0
        %3218 = vmatprep.subr.mxu0 0.0
        %3219 = vmatpush1.msra.mxu0 0.0
        %3220 = vmatprep.subr.mxu0 0.0
        %3221 = vmatpush1.msra.mxu0 0.0
        %3222 = vmatprep.subr.mxu0 0.0
        %3223 = vmatpush1.msra.mxu0 0.0
        %3224 = vmatprep.subr.mxu0 0.0
        %3225 = vmatpush1.msra.mxu0 0.0
        %3226 = vmatprep.subr.mxu0 0.0
        %3227 = vmatpush1.msra.mxu0 0.0
        %3228 = vmatprep.subr.mxu0 0.0
        %3229 = vmatpush1.msra.mxu0 0.0
        %3230 = vmatprep.subr.mxu0 0.0
        %3231 = vmatpush1.msra.mxu0 0.0
        %3232 = vmatprep.subr.mxu0 0.0
        %3233 = vmatpush1.msra.mxu0 0.0
        %3234 = vmatprep.subr.mxu0 0.0
        %3235 = vmatpush1.msra.mxu0 0.0
        %3236 = vmatprep.subr.mxu0 0.0
        %3237 = vmatpush1.msra.mxu0 0.0
        %3238 = vmatprep.subr.mxu0 0.0
        %3239 = vmatpush1.msra.mxu0 0.0
        %3240 = vmatprep.subr.mxu0 0.0
        %3241 = vmatpush1.msra.mxu0 0.0
        %3242 = vmatprep.subr.mxu0 0.0
        %3243 = vmatpush1.msra.mxu0 0.0
        %3244 = vmatprep.mubr.f32.mxu0 0.0
        %3245 = vmatmul.mubr.f32.gmra.mrb[0].mxu0 %v3178
        %v3246 = vpop.f32.mrb[0].mxu0
        %v3247 = vadd.f32 0.0, %v3246
        %v3248 = vpop.f32.mrb[0].mxu0
        %3249 = vdwg.mxu0
        %3250 = vmatprep.subr.mxu0 0.0
        %3251 = vmatpush1.msra.mxu0 %v3144
        %3252 = vmatprep.subr.mxu0 0.0
        %3253 = vmatpush1.msra.mxu0 %v3145
        %3254 = vmatprep.subr.mxu0 0.0
        %3255 = vmatpush1.msra.mxu0 %v3146
        %3256 = vmatprep.subr.mxu0 0.0
        %3257 = vmatpush1.msra.mxu0 %v3147
        %3258 = vmatprep.subr.mxu0 0.0
        %3259 = vmatpush1.msra.mxu0 %v3148
        %3260 = vmatprep.subr.mxu0 0.0
        %3261 = vmatpush1.msra.mxu0 %v3149
        %3262 = vmatprep.subr.mxu0 0.0
        %3263 = vmatpush1.msra.mxu0 %v3150
        %3264 = vmatprep.subr.mxu0 0.0
        %3265 = vmatpush1.msra.mxu0 %v3151
        %3266 = vmatprep.subr.mxu0 0.0
        %3267 = vmatpush1.msra.mxu0 %v3152
        %3268 = vmatprep.subr.mxu0 0.0
        %3269 = vmatpush1.msra.mxu0 %v3153
        %3270 = vmatprep.subr.mxu0 0.0
        %3271 = vmatpush1.msra.mxu0 %v3154
        %3272 = vmatprep.subr.mxu0 0.0
        %3273 = vmatpush1.msra.mxu0 %v3155
        %3274 = vmatprep.subr.mxu0 0.0
        %3275 = vmatpush1.msra.mxu0 %v3156
        %3276 = vmatprep.subr.mxu0 0.0
        %3277 = vmatpush1.msra.mxu0 %v3157
        %3278 = vmatprep.subr.mxu0 0.0
        %3279 = vmatpush1.msra.mxu0 %v3158
        %3280 = vmatprep.subr.mxu0 0.0
        %3281 = vmatpush1.msra.mxu0 %v3159
        %3282 = vmatprep.subr.mxu0 0.0
        %3283 = vmatpush1.msra.mxu0 0.0
        %3284 = vmatprep.subr.mxu0 0.0
        %3285 = vmatpush1.msra.mxu0 0.0
        %3286 = vmatprep.subr.mxu0 0.0
        %3287 = vmatpush1.msra.mxu0 0.0
        %3288 = vmatprep.subr.mxu0 0.0
        %3289 = vmatpush1.msra.mxu0 0.0
        %3290 = vmatprep.subr.mxu0 0.0
        %3291 = vmatpush1.msra.mxu0 0.0
        %3292 = vmatprep.subr.mxu0 0.0
        %3293 = vmatpush1.msra.mxu0 0.0
        %3294 = vmatprep.subr.mxu0 0.0
        %3295 = vmatpush1.msra.mxu0 0.0
        %3296 = vmatprep.subr.mxu0 0.0
        %3297 = vmatpush1.msra.mxu0 0.0
        %3298 = vmatprep.subr.mxu0 0.0
        %3299 = vmatpush1.msra.mxu0 0.0
        %3300 = vmatprep.subr.mxu0 0.0
        %3301 = vmatpush1.msra.mxu0 0.0
        %3302 = vmatprep.subr.mxu0 0.0
        %3303 = vmatpush1.msra.mxu0 0.0
        %3304 = vmatprep.subr.mxu0 0.0
        %3305 = vmatpush1.msra.mxu0 0.0
        %3306 = vmatprep.subr.mxu0 0.0
        %3307 = vmatpush1.msra.mxu0 0.0
        %3308 = vmatprep.subr.mxu0 0.0
        %3309 = vmatpush1.msra.mxu0 0.0
        %3310 = vmatprep.subr.mxu0 0.0
        %3311 = vmatpush1.msra.mxu0 0.0
        %3312 = vmatprep.subr.mxu0 0.0
        %3313 = vmatpush1.msra.mxu0 0.0
        %3314 = vmatprep.mubr.f32.mxu0 0.0
        %3315 = vmatmul.mubr.f32.gmra.mrb[0].mxu0 %v3141
        %v3316 = vpop.f32.mrb[0].mxu0
        %v3317 = vadd.f32 %v3247, %v3316
        %v3318 = vpop.f32.mrb[0].mxu0
        %3319 = vdwg.mxu0
        %v3320 = vld [vmem:[%s8] sm:$0x1]
        %v3321 = vadd.f32 %v3317, %v3320
        %v3322 = vmax.f32 %v3321, 0.0
        %v3323 = vld [vmem:[%s9] sm:$0xff]
        %v3324 = vld [vmem:[%s9 + $0x8] sm:$0xff]
        %v3325 = vld [vmem:[%s9 + $0x10] sm:$0xff]
        %v3326 = vld [vmem:[%s9 + $0x18] sm:$0xff]
        %v3327 = vld [vmem:[%s9 + $0x20] sm:$0xff]
        %v3328 = vld [vmem:[%s9 + $0x28] sm:$0xff]
        %v3329 = vld [vmem:[%s9 + $0x30] sm:$0xff]
        %v3330 = vld [vmem:[%s9 + $0x38] sm:$0xff]
        %v3331 = vld [vmem:[%s10] sm:$0x1]
        %vm3332 = vcmask 523264
        %v3334 = vsel %vm3332, %v3322, 0
        %3336 = vmatprep.subr.mxu0 0.0
        %3337 = vmatpush1.msra.mxu0 %v3323
        %3338 = vmatprep.subr.mxu0 0.0
        %3339 = vmatpush1.msra.mxu0 %v3324
        %3340 = vmatprep.subr.mxu0 0.0
        %3341 = vmatpush1.msra.mxu0 %v3325
        %3342 = vmatprep.subr.mxu0 0.0
        %3343 = vmatpush1.msra.mxu0 %v3326
        %3344 = vmatprep.subr.mxu0 0.0
        %3345 = vmatpush1.msra.mxu0 %v3327
        %3346 = vmatprep.subr.mxu0 0.0
        %3347 = vmatpush1.msra.mxu0 %v3328
        %3348 = vmatprep.subr.mxu0 0.0
        %3349 = vmatpush1.msra.mxu0 %v3329
        %3350 = vmatprep.subr.mxu0 0.0
        %3351 = vmatpush1.msra.mxu0 %v3330
        %3352 = vmatprep.subr.mxu0 0.0
        %3353 = vmatpush1.msra.mxu0 0.0
        %3354 = vmatprep.subr.mxu0 0.0
        %3355 = vmatpush1.msra.mxu0 0.0
        %3356 = vmatprep.subr.mxu0 0.0
        %3357 = vmatpush1.msra.mxu0 0.0
        %3358 = vmatprep.subr.mxu0 0.0
        %3359 = vmatpush1.msra.mxu0 0.0
        %3360 = vmatprep.subr.mxu0 0.0
        %3361 = vmatpush1.msra.mxu0 0.0
        %3362 = vmatprep.subr.mxu0 0.0
        %3363 = vmatpush1.msra.mxu0 0.0
        %3364 = vmatprep.subr.mxu0 0.0
        %3365 = vmatpush1.msra.mxu0 0.0
        %3366 = vmatprep.subr.mxu0 0.0
        %3367 = vmatpush1.msra.mxu0 0.0
        %3368 = vmatprep.subr.mxu0 0.0
        %3369 = vmatpush1.msra.mxu0 0.0
        %3370 = vmatprep.subr.mxu0 0.0
        %3371 = vmatpush1.msra.mxu0 0.0
        %3372 = vmatprep.subr.mxu0 0.0
        %3373 = vmatpush1.msra.mxu0 0.0
        %3374 = vmatprep.subr.mxu0 0.0
        %3375 = vmatpush1.msra.mxu0 0.0
        %3376 = vmatprep.subr.mxu0 0.0
        %3377 = vmatpush1.msra.mxu0 0.0
        %3378 = vmatprep.subr.mxu0 0.0
        %3379 = vmatpush1.msra.mxu0 0.0
        %3380 = vmatprep.subr.mxu0 0.0
        %3381 = vmatpush1.msra.mxu0 0.0
        %3382 = vmatprep.subr.mxu0 0.0
        %3383 = vmatpush1.msra.mxu0 0.0
        %3384 = vmatprep.subr.mxu0 0.0
        %3385 = vmatpush1.msra.mxu0 0.0
        %3386 = vmatprep.subr.mxu0 0.0
        %3387 = vmatpush1.msra.mxu0 0.0
        %3388 = vmatprep.subr.mxu0 0.0
        %3389 = vmatpush1.msra.mxu0 0.0
        %3390 = vmatprep.subr.mxu0 0.0
        %3391 = vmatpush1.msra.mxu0 0.0
        %3392 = vmatprep.subr.mxu0 0.0
        %3393 = vmatpush1.msra.mxu0 0.0
        %3394 = vmatprep.subr.mxu0 0.0
        %3395 = vmatpush1.msra.mxu0 0.0
        %3396 = vmatprep.subr.mxu0 0.0
        %3397 = vmatpush1.msra.mxu0 0.0
        %3398 = vmatprep.subr.mxu0 0.0
        %3399 = vmatpush1.msra.mxu0 0.0
        %3400 = vmatprep.mubr.f32.mxu0 0.0
        %3401 = vmatmul.mubr.f32.gmra.mrb[0].mxu0 %v3334
        %v3402 = vpop.f32.mrb[0].mxu0
        %v3403 = vadd.f32 %v3331, %v3402
        %v3404 = vpop.f32.mrb[0].mxu0
        %3405 = vdwg.mxu0
        %vm3406 = vcmask 73728
        %3407 = vst.msk [vmem:[%s378] sm:$0x1] %vm3406, %v3403
        %s3408 = sand.u32 %s269, 1
        %s3409 = scalar_lea.sflag [#allocation3], %s3408
        %s3410 = sand.u32 %s269, 1
        %s3411 = scalar_lea.vmem [#allocation2], %s3410
        // Predicated region
        $region65: #{net_forward.1} parent=63 // pred_check
          %p3412 = pneg %p279
        $region66: #{net_forward.1} parent=63 // pred_check_branch
          %3414 = sbr.rel (%p3412) target = $region68
        $region67: #{net_forward.1} parent=63 // pred_region
          %s3416 = ssub.s32 16, 16
          %3417 = vsyncadd %s3409, %s3416
          %s3418 = smul.addr %s25, 16
          %s3419 = scalar_lea.hbm %s11, %s3418
          %s3421 = sshll.u32 %s3411, 4
          %s3422 = int_to_ptr.vmem [resolvable:$true] %s3421
          %3424 = dma.vmem_to_hbm [thread:$0]  %s3422, 16, %s3419, %s3409
        $region68: #{net_forward.1} parent=63 // pred_fallthru
          _
      $region64: #{net_forward.1} parent=5 // pred_fallthru
        _
      %p3425 = scmp.le.s32.totalorder 2, %s20
      // Predicated region
      $region69: #{net_forward.1} parent=5 // pred_check
        %p3426 = pneg %p3425
      $region70: #{net_forward.1} parent=5 // pred_check_branch
        %3428 = sbr.rel (%p3426) target = $region72
      $region71: #{net_forward.1} parent=5 // pred_region
        %s3429 = ssub.s32 %s20, 2
        // Predicated region
        $region73: #{net_forward.1} parent=71 // pred_check
          %p3430 = pneg %p285
        $region74: #{net_forward.1} parent=71 // pred_check_branch
          %3432 = sbr.rel (%p3430) target = $region76
        $region75: #{net_forward.1} parent=71 // pred_region
          %s3433 = sand.u32 %s270, 1
          %s3434 = scalar_lea.sflag [#allocation3], %s3433
          %s3435 = sand.u32 %s270, 1
          %s3436 = scalar_lea.vmem [#allocation2], %s3435
          %3437 = dma.done %s3434, 16
        $region76: #{net_forward.1} parent=71 // pred_fallthru
          _
      $region72: #{net_forward.1} parent=5 // pred_fallthru
        _
    $region6: #{net_forward.1} parent=1 // loop_footer
      %s24 = sadd.s32 1, %s20
    $region7: #{net_forward.1} parent=1 // loop_footer_branch
      %19 = sbr.rel target = $region3
    $region8: #{net_forward.1} parent=1 // loop_exit
      _
    %3438 = vsyncpa [#allocation3], 1
    %s3439 = scalar_lea.sflag [#allocation3], 1
    %3440 = vsyncpa %s3439, 1

</llo_original>
